<compile_context>
chip_gen: v7x
topology: tpu7x:2x2x1
jax: 0.10.0
libtpu: 0.0.40
codegen_flags: <defaults>
</compile_context>

<pallas_src>
import inspect

import jax
import jax.numpy as jnp
from jax.experimental import pallas as pl
from jax.experimental.pallas import tpu as pltpu

LANE = 128

# Feature-detect pipeline_mode support (review: no bare `except Exception`).
try:
  _HAS_PIPELINE_MODE = (
      hasattr(pl, "Buffered")
      and "pipeline_mode" in inspect.signature(pl.BlockSpec).parameters)
except (TypeError, ValueError):  # builtins / odd signatures
  _HAS_PIPELINE_MODE = False


def _round_up(n, m):
  return ((n + m - 1) // m) * m


# --------------------------------------------------------------------------- #
# Kernel                                                                      #
# --------------------------------------------------------------------------- #
def _segment_predictor_kernel(
    xh_ref, xc_ref,
    wl1_ref, bl1_ref, wlf_ref, blf_ref,   # latent branch (fc2 @ latent_proj folded)
    wh1_ref, bh1_ref, whf_ref, bhf_ref,   # hidden branch (fc2 @ hidden_up_proj folded)
    out_ref,
):
  """One grid step: a (TM, *) tile of token rows -> one lane-dense (1, TM) row.

  Streamed inputs are cast to the weights' dtype in-kernel (right before each
  matmul); MXU matmuls accumulate in f32; SiLU / sigmoid / the final per-token
  dot stay in f32.
  """
  f32 = jnp.float32
  mxu_dtype = wl1_ref.dtype

  # ----- latent branch: concept_tokens -> fc1 -> SiLU -> folded(fc2 @ latent_proj)
  xc = xc_ref[...].astype(mxu_dtype)                       # in-kernel cast (VPU pack)
  ac = jnp.dot(xc, wl1_ref[...], preferred_element_type=f32) + bl1_ref[...]
  ac = (ac * jax.nn.sigmoid(ac)).astype(mxu_dtype)         # SiLU in f32, cast for MXU
  c = jnp.dot(ac, wlf_ref[...], preferred_element_type=f32) + blf_ref[...]

  # ----- hidden branch: hidden_states -> fc1 -> SiLU -> folded(fc2 @ hidden_up_proj)
  xh = xh_ref[...].astype(mxu_dtype)
  ah = jnp.dot(xh, wh1_ref[...], preferred_element_type=f32) + bh1_ref[...]
  ah = (ah * jax.nn.sigmoid(ah)).astype(mxu_dtype)
  h = jnp.dot(ah, whf_ref[...], preferred_element_type=f32) + bhf_ref[...]

  # ----- per-token dot over concept_dim, stored lane-dense as one (1, TM) row.
  g = c * h                                      # (TM, Dc)  f32
  gt = jnp.transpose(g)                          # (Dc, TM)  XLU transpose (free slot)
  pred = jnp.sum(gt, axis=0, keepdims=True)      # (1, TM)   sublane reduce
  out_ref[...] = jax.nn.sigmoid(pred).astype(out_ref.dtype)


# --------------------------------------------------------------------------- #
# Parameter prep (hoisted out of the per-call path)                           #
# --------------------------------------------------------------------------- #
def prepare_params(params, compute_dtype=jnp.bfloat16):
  """Fold the back-to-back linears and cast weights once (call outside hot loop).

  latent:  (x @ wl2 + bl2) @ wlp + blp  ==  x @ (wl2 @ wlp) + (bl2 @ wlp + blp)
  hidden:  (x @ wh2 + bh2) @ wu  + bu   ==  x @ (wh2 @ wu)  + (bh2 @ wu  + bu)
  """
  (wl1, bl1, wl2, bl2, wlp, blp, wh1, bh1, wh2, bh2, wu, bu) = params
  f32 = jnp.float32

  wlf = wl2.astype(f32) @ wlp.astype(f32)
  blf = bl2.astype(f32) @ wlp.astype(f32) + blp.astype(f32)
  whf = wh2.astype(f32) @ wu.astype(f32)
  bhf = bh2.astype(f32) @ wu.astype(f32) + bu.astype(f32)

  # Weights in the MXU compute dtype; biases stay f32 (added to f32 accumulator).
  return (wl1.astype(compute_dtype), bl1.astype(f32),
          wlf.astype(compute_dtype), blf,
          wh1.astype(compute_dtype), bh1.astype(f32),
          whf.astype(compute_dtype), bhf)


# --------------------------------------------------------------------------- #
# Wrapper                                                                     #
# --------------------------------------------------------------------------- #
def decoder_segment_predictor(decoder_last_hidden_states, concept_tokens,
                              prepared_params, *, tile_m=1024, input_buffers=None):
  """decoder_last_hidden_states: (B, S, H); concept_tokens: (B, S, Dc)
  -> (B, S, 1) segment predictions."""
  B, S, H = decoder_last_hidden_states.shape
  _, _, Dc = concept_tokens.shape
  M = B * S

  (wl1, bl1, wlf, blf, wh1, bh1, whf, bhf) = prepared_params

  # Streamed inputs: plain reshapes (views), no pad / dtype copy in the wrapper.
  xh = decoder_last_hidden_states.reshape(M, H)
  xc = concept_tokens.reshape(M, Dc)

  # Tile over tokens only.  Clamp tile_m to the (128-rounded) token count so a
  # tiny call doesn't request a block bigger than the array.
  tile_m = max(LANE, min(tile_m, _round_up(M, LANE)))
  assert tile_m % LANE == 0, "tile_m must be a multiple of 128 (lane geometry)"
  num_tiles = pl.cdiv(M, tile_m)
  Mp = num_tiles * tile_m          # output row rounded up (4 B/token); inputs unpadded.
  out_dtype = decoder_last_hidden_states.dtype

  def row(d):
    # Streamed token tiles; optionally deepen the pipeline if DMA is exposed.
    if _HAS_PIPELINE_MODE and input_buffers is not None:
      return pl.BlockSpec((tile_m, d), lambda i: (i, 0),
                          pipeline_mode=pl.Buffered(input_buffers))
    return pl.BlockSpec((tile_m, d), lambda i: (i, 0))

  def const(shape):
    # Constant-index weight/bias blocks; single-buffer them when supported so
    # their VMEM footprint is not doubled (matters on v7x's 64 MiB VMEM).
    if _HAS_PIPELINE_MODE:
      return pl.BlockSpec(shape, lambda i: (0, 0), pipeline_mode=pl.Buffered(1))
    return pl.BlockSpec(shape, lambda i: (0, 0))

  out = pl.pallas_call(
      _segment_predictor_kernel,
      out_shape=jax.ShapeDtypeStruct((1, Mp), out_dtype),
      grid_spec=pltpu.PrefetchScalarGridSpec(
          num_scalar_prefetch=0,
          grid=(num_tiles,),
          in_specs=[
              row(H),                                    # xh tile (tile_m, H)
              row(Dc),                                   # xc tile (tile_m, Dc)
              const(wl1.shape), const(bl1.shape),        # latent fc1
              const(wlf.shape), const(blf.shape),        # latent fc2 @ latent_proj
              const(wh1.shape), const(bh1.shape),        # hidden fc1
              const(whf.shape), const(bhf.shape),        # hidden fc2 @ hidden_up_proj
          ],
          out_specs=pl.BlockSpec((1, tile_m), lambda i: (0, i)),  # lane-dense row
      ),
      compiler_params=pltpu.CompilerParams(
          dimension_semantics=("parallel",)),
  )(xh, xc, wl1, bl1, wlf, blf, wh1, bh1, whf, bhf)

  # Rows >= M in the last tile are garbage (row-independent) and discarded here.
  return out[0, :M].reshape(B, S, 1)


# --------------------------------------------------------------------------- #
# Synthetic params + pure-JAX reference                                       #
# --------------------------------------------------------------------------- #
def init_params(key, hidden_dim, concept_dim, inner_dim, dtype=jnp.float32):
  """Deterministic synthetic parameter init (weights stored as (in, out))."""
  ks = jax.random.split(key, 12)
  s = 0.05
  wl1 = jax.random.normal(ks[0], (concept_dim, inner_dim), dtype) * s
  bl1 = jax.random.normal(ks[1], (1, inner_dim), dtype) * s
  wl2 = jax.random.normal(ks[2], (inner_dim, concept_dim), dtype) * s
  bl2 = jax.random.normal(ks[3], (1, concept_dim), dtype) * s
  wlp = jax.random.normal(ks[4], (concept_dim, concept_dim), dtype) * s
  blp = jax.random.normal(ks[5], (1, concept_dim), dtype) * s
  wh1 = jax.random.normal(ks[6], (hidden_dim, inner_dim), dtype) * s
  bh1 = jax.random.normal(ks[7], (1, inner_dim), dtype) * s
  wh2 = jax.random.normal(ks[8], (inner_dim, hidden_dim), dtype) * s
  bh2 = jax.random.normal(ks[9], (1, hidden_dim), dtype) * s
  wu = jax.random.normal(ks[10], (hidden_dim, concept_dim), dtype) * s
  bu = jax.random.normal(ks[11], (1, concept_dim), dtype) * s
  return (wl1, bl1, wl2, bl2, wlp, blp, wh1, bh1, wh2, bh2, wu, bu)


def _reference(xh, xc, params):
  """Pure-JAX reference of the original (unfolded, f32) forward pass."""
  (wl1, bl1, wl2, bl2, wlp, blp, wh1, bh1, wh2, bh2, wu, bu) = params
  silu = lambda x: x * jax.nn.sigmoid(x)
  c = silu(xc @ wl1 + bl1) @ wl2 + bl2
  c = c @ wlp + blp
  h = silu(xh @ wh1 + bh1) @ wh2 + bh2
  h = h @ wu + bu
  return jax.nn.sigmoid(jnp.sum(c * h, axis=-1, keepdims=True))


if __name__ == "__main__":
  batch, seq, hidden_dim, concept_dim, inner_dim = 2, 256, 32, 16, 64

  key = jax.random.PRNGKey(0)
  k_h, k_c, k_p = jax.random.split(key, 3)

  decoder_last_hidden_states = jax.random.normal(
      k_h, (batch, seq, hidden_dim), jnp.float32)
  concept_tokens = jax.random.normal(
      k_c, (batch, seq, concept_dim), jnp.float32)
  params = init_params(k_p, hidden_dim, concept_dim, inner_dim)

  ref = _reference(decoder_last_hidden_states, concept_tokens, params)

  # f32 MXU path (near-exact vs. reference; on v5e this costs no wall clock
  # since the kernel is memory-bound at these dims).
  prepared_f32 = prepare_params(params, compute_dtype=jnp.float32)
  out_f32 = decoder_segment_predictor(decoder_last_hidden_states, concept_tokens,
                                      prepared_f32, tile_m=1024)
  out_f32 = jax.block_until_ready(out_f32)
  assert out_f32.shape == (batch, seq, 1)
  assert jnp.allclose(out_f32, ref, atol=1e-3, rtol=1e-3), "f32 mismatch vs reference"

  # bf16 MXU inputs + f32 accumulation (the fast MXU path on v6e/v7x).
  prepared_bf16 = prepare_params(params, compute_dtype=jnp.bfloat16)
  out_bf16 = decoder_segment_predictor(decoder_last_hidden_states, concept_tokens,
                                       prepared_bf16, tile_m=1024)
  out_bf16 = jax.block_until_ready(out_bf16)
  assert out_bf16.shape == (batch, seq, 1)
  assert jnp.allclose(out_bf16.astype(jnp.float32), ref,
                      atol=1e-2, rtol=1e-2), "bf16 mismatch vs reference"

  print("KERNEL_OK")
</pallas_src>

<mosaic_0001>
module attributes {stable_mosaic.version = 11 : i64} {
  func.func @_segment_predictor_kernel(%arg0: i32, %arg1: memref<512x32xf32, #tpu.memory_space<vmem>>, %arg2: memref<512x16xf32, #tpu.memory_space<vmem>>, %arg3: memref<16x64xf32, #tpu.memory_space<vmem>>, %arg4: memref<1x64xf32, #tpu.memory_space<vmem>>, %arg5: memref<64x16xf32, #tpu.memory_space<vmem>>, %arg6: memref<1x16xf32, #tpu.memory_space<vmem>>, %arg7: memref<32x64xf32, #tpu.memory_space<vmem>>, %arg8: memref<1x64xf32, #tpu.memory_space<vmem>>, %arg9: memref<64x16xf32, #tpu.memory_space<vmem>>, %arg10: memref<1x16xf32, #tpu.memory_space<vmem>>, %arg11: memref<1x512xf32, #tpu.memory_space<vmem>>) attributes {dimension_semantics = [#tpu.dimension_semantics<parallel>], iteration_bounds = array<i64: 1>, scalar_prefetch = 0 : i64, scratch_operands = 0 : i64, tpu.core_type = #tpu.core_type<tc>, window_params = [{transform_indices = @transform_0, window_bounds = array<i64: 512, 32>}, {transform_indices = @transform_1, window_bounds = array<i64: 512, 16>}, {pipeline_mode = #tpu.pipeline_mode<synchronous>, transform_indices = @transform_2, window_bounds = array<i64: 16, 64>}, {pipeline_mode = #tpu.pipeline_mode<synchronous>, transform_indices = @transform_3, window_bounds = array<i64: 1, 64>}, {pipeline_mode = #tpu.pipeline_mode<synchronous>, transform_indices = @transform_4, window_bounds = array<i64: 64, 16>}, {pipeline_mode = #tpu.pipeline_mode<synchronous>, transform_indices = @transform_5, window_bounds = array<i64: 1, 16>}, {pipeline_mode = #tpu.pipeline_mode<synchronous>, transform_indices = @transform_6, window_bounds = array<i64: 32, 64>}, {pipeline_mode = #tpu.pipeline_mode<synchronous>, transform_indices = @transform_7, window_bounds = array<i64: 1, 64>}, {pipeline_mode = #tpu.pipeline_mode<synchronous>, transform_indices = @transform_8, window_bounds = array<i64: 64, 16>}, {pipeline_mode = #tpu.pipeline_mode<synchronous>, transform_indices = @transform_9, window_bounds = array<i64: 1, 16>}, {transform_indices = @transform_10, window_bounds = array<i64: 1, 512>}]} {
    %c0 = arith.constant 0 : index
    %c0_0 = arith.constant 0 : index
    %0 = vector.load %arg2[%c0, %c0_0] : memref<512x16xf32, #tpu.memory_space<vmem>>, vector<512x16xf32>
    %c0_1 = arith.constant 0 : index
    %c0_2 = arith.constant 0 : index
    %1 = vector.load %arg3[%c0_1, %c0_2] : memref<16x64xf32, #tpu.memory_space<vmem>>, vector<16x64xf32>
    %cst = arith.constant dense<0.000000e+00> : vector<512x64xf32>
    %2 = tpu.matmul %0, %1, %cst {dimension_numbers = #tpu.dot_dimension_numbers<[1], [0], [0], [1], [0, 0, 1, 1], [], []>} : vector<512x16xf32>, vector<16x64xf32>, vector<512x64xf32> -> vector<512x64xf32>
    %c0_3 = arith.constant 0 : index
    %c0_4 = arith.constant 0 : index
    %3 = vector.load %arg4[%c0_3, %c0_4] : memref<1x64xf32, #tpu.memory_space<vmem>>, vector<1x64xf32>
    %4 = vector.broadcast %3 : vector<1x64xf32> to vector<512x64xf32>
    %5 = arith.addf %2, %4 : vector<512x64xf32>
    %6 = arith.negf %5 : vector<512x64xf32>
    %7 = math.exp %6 : vector<512x64xf32>
    %cst_5 = arith.constant 1.000000e+00 : f32
    %8 = vector.broadcast %cst_5 : f32 to vector<512x64xf32>
    %9 = arith.addf %8, %7 : vector<512x64xf32>
    %10 = arith.divf %8, %9 : vector<512x64xf32>
    %11 = arith.mulf %5, %10 : vector<512x64xf32>
    %c0_6 = arith.constant 0 : index
    %c0_7 = arith.constant 0 : index
    %12 = vector.load %arg5[%c0_6, %c0_7] : memref<64x16xf32, #tpu.memory_space<vmem>>, vector<64x16xf32>
    %cst_8 = arith.constant dense<0.000000e+00> : vector<512x16xf32>
    %13 = tpu.matmul %11, %12, %cst_8 {dimension_numbers = #tpu.dot_dimension_numbers<[1], [0], [0], [1], [0, 0, 1, 1], [], []>} : vector<512x64xf32>, vector<64x16xf32>, vector<512x16xf32> -> vector<512x16xf32>
    %c0_9 = arith.constant 0 : index
    %c0_10 = arith.constant 0 : index
    %14 = vector.load %arg6[%c0_9, %c0_10] : memref<1x16xf32, #tpu.memory_space<vmem>>, vector<1x16xf32>
    %15 = vector.broadcast %14 : vector<1x16xf32> to vector<512x16xf32>
    %16 = arith.addf %13, %15 : vector<512x16xf32>
    %c0_11 = arith.constant 0 : index
    %c0_12 = arith.constant 0 : index
    %17 = vector.load %arg1[%c0_11, %c0_12] : memref<512x32xf32, #tpu.memory_space<vmem>>, vector<512x32xf32>
    %c0_13 = arith.constant 0 : index
    %c0_14 = arith.constant 0 : index
    %18 = vector.load %arg7[%c0_13, %c0_14] : memref<32x64xf32, #tpu.memory_space<vmem>>, vector<32x64xf32>
    %cst_15 = arith.constant dense<0.000000e+00> : vector<512x64xf32>
    %19 = tpu.matmul %17, %18, %cst_15 {dimension_numbers = #tpu.dot_dimension_numbers<[1], [0], [0], [1], [0, 0, 1, 1], [], []>} : vector<512x32xf32>, vector<32x64xf32>, vector<512x64xf32> -> vector<512x64xf32>
    %c0_16 = arith.constant 0 : index
    %c0_17 = arith.constant 0 : index
    %20 = vector.load %arg8[%c0_16, %c0_17] : memref<1x64xf32, #tpu.memory_space<vmem>>, vector<1x64xf32>
    %21 = vector.broadcast %20 : vector<1x64xf32> to vector<512x64xf32>
    %22 = arith.addf %19, %21 : vector<512x64xf32>
    %23 = arith.negf %22 : vector<512x64xf32>
    %24 = math.exp %23 : vector<512x64xf32>
    %cst_18 = arith.constant 1.000000e+00 : f32
    %25 = vector.broadcast %cst_18 : f32 to vector<512x64xf32>
    %26 = arith.addf %25, %24 : vector<512x64xf32>
    %27 = arith.divf %25, %26 : vector<512x64xf32>
    %28 = arith.mulf %22, %27 : vector<512x64xf32>
    %c0_19 = arith.constant 0 : index
    %c0_20 = arith.constant 0 : index
    %29 = vector.load %arg9[%c0_19, %c0_20] : memref<64x16xf32, #tpu.memory_space<vmem>>, vector<64x16xf32>
    %cst_21 = arith.constant dense<0.000000e+00> : vector<512x16xf32>
    %30 = tpu.matmul %28, %29, %cst_21 {dimension_numbers = #tpu.dot_dimension_numbers<[1], [0], [0], [1], [0, 0, 1, 1], [], []>} : vector<512x64xf32>, vector<64x16xf32>, vector<512x16xf32> -> vector<512x16xf32>
    %c0_22 = arith.constant 0 : index
    %c0_23 = arith.constant 0 : index
    %31 = vector.load %arg10[%c0_22, %c0_23] : memref<1x16xf32, #tpu.memory_space<vmem>>, vector<1x16xf32>
    %32 = vector.broadcast %31 : vector<1x16xf32> to vector<512x16xf32>
    %33 = arith.addf %30, %32 : vector<512x16xf32>
    %34 = arith.mulf %16, %33 : vector<512x16xf32>
    %35 = tpu.transpose %34, [1, 0] : vector<512x16xf32> -> vector<16x512xf32>
    %cst_24 = arith.constant dense<0.000000e+00> : vector<512xf32>
    %36 = vector.multi_reduction <add>, %35, %cst_24 [0] : vector<16x512xf32> to vector<512xf32>
    %37 = vector.shape_cast %36 : vector<512xf32> to vector<1x512xf32>
    %38 = arith.negf %37 : vector<1x512xf32>
    %39 = math.exp %38 : vector<1x512xf32>
    %cst_25 = arith.constant 1.000000e+00 : f32
    %40 = vector.broadcast %cst_25 : f32 to vector<1x512xf32>
    %41 = arith.addf %40, %39 : vector<1x512xf32>
    %42 = arith.divf %40, %41 : vector<1x512xf32>
    %c0_26 = arith.constant 0 : index
    %c0_27 = arith.constant 0 : index
    %43 = vector.load %arg11[%c0_26, %c0_27] : memref<1x512xf32, #tpu.memory_space<vmem>>, vector<1x512xf32>
    tpu.vector_store %arg11[%c0_26, %c0_27], %42 {strides = array<i32>} : memref<1x512xf32, #tpu.memory_space<vmem>>, vector<1x512xf32>,
    return
  }
  func.func @transform_0(%arg0: i32) -> (i32, i32) {
    %c0_i32 = arith.constant 0 : i32
    %c0_i32_0 = arith.constant 0 : i32
    return %arg0, %c0_i32 : i32, i32
  }
  func.func @transform_1(%arg0: i32) -> (i32, i32) {
    %c0_i32 = arith.constant 0 : i32
    %c0_i32_0 = arith.constant 0 : i32
    return %arg0, %c0_i32 : i32, i32
  }
  func.func @transform_2(%arg0: i32) -> (i32, i32) {
    %c0_i32 = arith.constant 0 : i32
    %c0_i32_0 = arith.constant 0 : i32
    %c0_i32_1 = arith.constant 0 : i32
    return %c0_i32, %c0_i32_0 : i32, i32
  }
  func.func @transform_3(%arg0: i32) -> (i32, i32) {
    %c0_i32 = arith.constant 0 : i32
    %c0_i32_0 = arith.constant 0 : i32
    %c0_i32_1 = arith.constant 0 : i32
    return %c0_i32, %c0_i32_0 : i32, i32
  }
  func.func @transform_4(%arg0: i32) -> (i32, i32) {
    %c0_i32 = arith.constant 0 : i32
    %c0_i32_0 = arith.constant 0 : i32
    %c0_i32_1 = arith.constant 0 : i32
    return %c0_i32, %c0_i32_0 : i32, i32
  }
  func.func @transform_5(%arg0: i32) -> (i32, i32) {
    %c0_i32 = arith.constant 0 : i32
    %c0_i32_0 = arith.constant 0 : i32
    %c0_i32_1 = arith.constant 0 : i32
    return %c0_i32, %c0_i32_0 : i32, i32
  }
  func.func @transform_6(%arg0: i32) -> (i32, i32) {
    %c0_i32 = arith.constant 0 : i32
    %c0_i32_0 = arith.constant 0 : i32
    %c0_i32_1 = arith.constant 0 : i32
    return %c0_i32, %c0_i32_0 : i32, i32
  }
  func.func @transform_7(%arg0: i32) -> (i32, i32) {
    %c0_i32 = arith.constant 0 : i32
    %c0_i32_0 = arith.constant 0 : i32
    %c0_i32_1 = arith.constant 0 : i32
    return %c0_i32, %c0_i32_0 : i32, i32
  }
  func.func @transform_8(%arg0: i32) -> (i32, i32) {
    %c0_i32 = arith.constant 0 : i32
    %c0_i32_0 = arith.constant 0 : i32
    %c0_i32_1 = arith.constant 0 : i32
    return %c0_i32, %c0_i32_0 : i32, i32
  }
  func.func @transform_9(%arg0: i32) -> (i32, i32) {
    %c0_i32 = arith.constant 0 : i32
    %c0_i32_0 = arith.constant 0 : i32
    %c0_i32_1 = arith.constant 0 : i32
    return %c0_i32, %c0_i32_0 : i32, i32
  }
  func.func @transform_10(%arg0: i32) -> (i32, i32) {
    %c0_i32 = arith.constant 0 : i32
    %c0_i32_0 = arith.constant 0 : i32
    return %c0_i32, %arg0 : i32, i32
  }
}

</mosaic_0001>

<llo_original>
// kernel: tpu_custom_call.1
$region0: #{tpu_custom_call.1}
  #allocation0 [shape = 'u32[]', space=smem, size = 0x4, offset = 0x4, fixed_abs, tag = 'smem constant byte address 0x4 - core index']
  #allocation1 [shape = 'u32[144,128]{1,0:T(1,128)}', space=vmem, size = 0x12000, scoped, tag = 'internal scratch']
  %s0 = inlined_call_operand.vmem [shape: f32[512,32], index: 0, kind: input, shape index: {}]
  %s1 = inlined_call_operand.vmem [shape: f32[512,16], index: 1, kind: input, shape index: {}]
  %s2 = inlined_call_operand.vmem [shape: f32[16,64], index: 2, kind: input, shape index: {}]
  %s3 = inlined_call_operand.vmem [shape: f32[1,64], index: 3, kind: input, shape index: {}]
  %s4 = inlined_call_operand.vmem [shape: f32[64,16], index: 4, kind: input, shape index: {}]
  %s5 = inlined_call_operand.vmem [shape: f32[1,16], index: 5, kind: input, shape index: {}]
  %s6 = inlined_call_operand.vmem [shape: f32[32,64], index: 6, kind: input, shape index: {}]
  %s7 = inlined_call_operand.vmem [shape: f32[1,64], index: 7, kind: input, shape index: {}]
  %s8 = inlined_call_operand.vmem [shape: f32[64,16], index: 8, kind: input, shape index: {}]
  %s9 = inlined_call_operand.vmem [shape: f32[1,16], index: 9, kind: input, shape index: {}]
  %s10 = inlined_call_operand.hbm [shape: f32[1,512], index: 10, kind: output, shape index: {}]
  %s11 = sld [smem:[#allocation0]]
  $region50: #{tpu_custom_call.1} parent=0
    _
  %s13 = ssub.s32 1, %s11
  %s14 = scalar_select 0, %s13, %s11
  $region1: #{tpu_custom_call.1} parent=0
    #allocation2 [shape = 'u8[2048]{0}', space=vmem, size = 0x800, scoped, tag = 'output window, operand 0, single buffered']
    #allocation3 [shape = 's32[1]{0}', space=sflag, size = 0x4, scoped, tag = 'scoped memory for tpu_custom_call.1']
    %15 = vsyncpa [#allocation3], 0
    // Predicated region
    $region2: #{tpu_custom_call.1} parent=1 // pred_check
      _
    $region3: #{tpu_custom_call.1} parent=1 // pred_check_branch
      %17 = sbr.rel (0) target = $region5
    $region4: #{tpu_custom_call.1} parent=1 // pred_region
      _
    $region5: #{tpu_custom_call.1} parent=1 // pred_fallthru
      _
    // Predicated region
    $region6: #{tpu_custom_call.1} parent=1 // pred_check
      _
    $region7: #{tpu_custom_call.1} parent=1 // pred_check_branch
      %19 = sbr.rel (0) target = $region9
    $region8: #{tpu_custom_call.1} parent=1 // pred_region
      _
    $region9: #{tpu_custom_call.1} parent=1 // pred_fallthru
      _
    // Predicated region
    $region10: #{tpu_custom_call.1} parent=1 // pred_check
      _
    $region11: #{tpu_custom_call.1} parent=1 // pred_check_branch
      %21 = sbr.rel (0) target = $region13
    $region12: #{tpu_custom_call.1} parent=1 // pred_region
      _
    $region13: #{tpu_custom_call.1} parent=1 // pred_fallthru
      _
    // Predicated region
    $region14: #{tpu_custom_call.1} parent=1 // pred_check
      _
    $region15: #{tpu_custom_call.1} parent=1 // pred_check_branch
      %23 = sbr.rel (0) target = $region17
    $region16: #{tpu_custom_call.1} parent=1 // pred_region
      _
    $region17: #{tpu_custom_call.1} parent=1 // pred_fallthru
      _
    // Predicated region
    $region18: #{tpu_custom_call.1} parent=1 // pred_check
      _
    $region19: #{tpu_custom_call.1} parent=1 // pred_check_branch
      %25 = sbr.rel (0) target = $region21
    $region20: #{tpu_custom_call.1} parent=1 // pred_region
      _
    $region21: #{tpu_custom_call.1} parent=1 // pred_fallthru
      _
    // Predicated region
    $region22: #{tpu_custom_call.1} parent=1 // pred_check
      _
    $region23: #{tpu_custom_call.1} parent=1 // pred_check_branch
      %27 = sbr.rel (0) target = $region25
    $region24: #{tpu_custom_call.1} parent=1 // pred_region
      _
    $region25: #{tpu_custom_call.1} parent=1 // pred_fallthru
      _
    // Predicated region
    $region26: #{tpu_custom_call.1} parent=1 // pred_check
      _
    $region27: #{tpu_custom_call.1} parent=1 // pred_check_branch
      %29 = sbr.rel (0) target = $region29
    $region28: #{tpu_custom_call.1} parent=1 // pred_region
      _
    $region29: #{tpu_custom_call.1} parent=1 // pred_fallthru
      _
    // Predicated region
    $region30: #{tpu_custom_call.1} parent=1 // pred_check
      _
    $region31: #{tpu_custom_call.1} parent=1 // pred_check_branch
      %31 = sbr.rel (0) target = $region33
    $region32: #{tpu_custom_call.1} parent=1 // pred_region
      _
    $region33: #{tpu_custom_call.1} parent=1 // pred_fallthru
      _
    // Predicated region
    $region34: #{tpu_custom_call.1} parent=1 // pred_check
      _
    $region35: #{tpu_custom_call.1} parent=1 // pred_check_branch
      %33 = sbr.rel (0) target = $region37
    $region36: #{tpu_custom_call.1} parent=1 // pred_region
      _
    $region37: #{tpu_custom_call.1} parent=1 // pred_fallthru
      _
    // Predicated region
    $region38: #{tpu_custom_call.1} parent=1 // pred_check
      _
    $region39: #{tpu_custom_call.1} parent=1 // pred_check_branch
      %35 = sbr.rel (0) target = $region41
    $region40: #{tpu_custom_call.1} parent=1 // pred_region
      _
    $region41: #{tpu_custom_call.1} parent=1 // pred_fallthru
      _
    %v36 = vld [vmem:[%s1] sm:$0xff]
    %v37 = vld [vmem:[%s1 + $0x8] sm:$0xff]
    %v38 = vld [vmem:[%s1 + $0x10] sm:$0xff]
    %v39 = vld [vmem:[%s1 + $0x18] sm:$0xff]
    %v40 = vld [vmem:[%s1 + $0x20] sm:$0xff]
    %v41 = vld [vmem:[%s1 + $0x28] sm:$0xff]
    %v42 = vld [vmem:[%s1 + $0x30] sm:$0xff]
    %v43 = vld [vmem:[%s1 + $0x38] sm:$0xff]
    %v44 = vld [vmem:[%s1 + $0x40] sm:$0xff]
    %v45 = vld [vmem:[%s1 + $0x48] sm:$0xff]
    %v46 = vld [vmem:[%s1 + $0x50] sm:$0xff]
    %v47 = vld [vmem:[%s1 + $0x58] sm:$0xff]
    %v48 = vld [vmem:[%s1 + $0x60] sm:$0xff]
    %v49 = vld [vmem:[%s1 + $0x68] sm:$0xff]
    %v50 = vld [vmem:[%s1 + $0x70] sm:$0xff]
    %v51 = vld [vmem:[%s1 + $0x78] sm:$0xff]
    %v52 = vld [vmem:[%s1 + $0x80] sm:$0xff]
    %v53 = vld [vmem:[%s1 + $0x88] sm:$0xff]
    %v54 = vld [vmem:[%s1 + $0x90] sm:$0xff]
    %v55 = vld [vmem:[%s1 + $0x98] sm:$0xff]
    %v56 = vld [vmem:[%s1 + $0xa0] sm:$0xff]
    %v57 = vld [vmem:[%s1 + $0xa8] sm:$0xff]
    %v58 = vld [vmem:[%s1 + $0xb0] sm:$0xff]
    %v59 = vld [vmem:[%s1 + $0xb8] sm:$0xff]
    %v60 = vld [vmem:[%s1 + $0xc0] sm:$0xff]
    %v61 = vld [vmem:[%s1 + $0xc8] sm:$0xff]
    %v62 = vld [vmem:[%s1 + $0xd0] sm:$0xff]
    %v63 = vld [vmem:[%s1 + $0xd8] sm:$0xff]
    %v64 = vld [vmem:[%s1 + $0xe0] sm:$0xff]
    %v65 = vld [vmem:[%s1 + $0xe8] sm:$0xff]
    %v66 = vld [vmem:[%s1 + $0xf0] sm:$0xff]
    %v67 = vld [vmem:[%s1 + $0xf8] sm:$0xff]
    %v68 = vld [vmem:[%s1 + $0x100] sm:$0xff]
    %v69 = vld [vmem:[%s1 + $0x108] sm:$0xff]
    %v70 = vld [vmem:[%s1 + $0x110] sm:$0xff]
    %v71 = vld [vmem:[%s1 + $0x118] sm:$0xff]
    %v72 = vld [vmem:[%s1 + $0x120] sm:$0xff]
    %v73 = vld [vmem:[%s1 + $0x128] sm:$0xff]
    %v74 = vld [vmem:[%s1 + $0x130] sm:$0xff]
    %v75 = vld [vmem:[%s1 + $0x138] sm:$0xff]
    %v76 = vld [vmem:[%s1 + $0x140] sm:$0xff]
    %v77 = vld [vmem:[%s1 + $0x148] sm:$0xff]
    %v78 = vld [vmem:[%s1 + $0x150] sm:$0xff]
    %v79 = vld [vmem:[%s1 + $0x158] sm:$0xff]
    %v80 = vld [vmem:[%s1 + $0x160] sm:$0xff]
    %v81 = vld [vmem:[%s1 + $0x168] sm:$0xff]
    %v82 = vld [vmem:[%s1 + $0x170] sm:$0xff]
    %v83 = vld [vmem:[%s1 + $0x178] sm:$0xff]
    %v84 = vld [vmem:[%s1 + $0x180] sm:$0xff]
    %v85 = vld [vmem:[%s1 + $0x188] sm:$0xff]
    %v86 = vld [vmem:[%s1 + $0x190] sm:$0xff]
    %v87 = vld [vmem:[%s1 + $0x198] sm:$0xff]
    %v88 = vld [vmem:[%s1 + $0x1a0] sm:$0xff]
    %v89 = vld [vmem:[%s1 + $0x1a8] sm:$0xff]
    %v90 = vld [vmem:[%s1 + $0x1b0] sm:$0xff]
    %v91 = vld [vmem:[%s1 + $0x1b8] sm:$0xff]
    %v92 = vld [vmem:[%s1 + $0x1c0] sm:$0xff]
    %v93 = vld [vmem:[%s1 + $0x1c8] sm:$0xff]
    %v94 = vld [vmem:[%s1 + $0x1d0] sm:$0xff]
    %v95 = vld [vmem:[%s1 + $0x1d8] sm:$0xff]
    %v96 = vld [vmem:[%s1 + $0x1e0] sm:$0xff]
    %v97 = vld [vmem:[%s1 + $0x1e8] sm:$0xff]
    %v98 = vld [vmem:[%s1 + $0x1f0] sm:$0xff]
    %v99 = vld [vmem:[%s1 + $0x1f8] sm:$0xff]
    %v100 = vld [vmem:[%s2] sm:$0xff]
    %v101 = vld [vmem:[%s2 + $0x8] sm:$0xff]
    %v102 = vld [vmem:[%s3] sm:$0x1]
    %v104 = vlaneseq
    %v105 = vshrl.u32 %v104, 7
    %v106 = vsub.s32 0, %v105
    %v107 = vrot.slane %v102, %v106
    %vm109 = vcmask 130048
    %v111 = vsel %vm109, %v36, 0
    %v114 = vsel %vm109, %v37, 0
    %v117 = vsel %vm109, %v38, 0
    %v120 = vsel %vm109, %v39, 0
    %v123 = vsel %vm109, %v40, 0
    %v126 = vsel %vm109, %v41, 0
    %v129 = vsel %vm109, %v42, 0
    %v132 = vsel %vm109, %v43, 0
    %v135 = vsel %vm109, %v44, 0
    %v138 = vsel %vm109, %v45, 0
    %v141 = vsel %vm109, %v46, 0
    %v144 = vsel %vm109, %v47, 0
    %v147 = vsel %vm109, %v48, 0
    %v150 = vsel %vm109, %v49, 0
    %v153 = vsel %vm109, %v50, 0
    %v156 = vsel %vm109, %v51, 0
    %v159 = vsel %vm109, %v52, 0
    %v162 = vsel %vm109, %v53, 0
    %v165 = vsel %vm109, %v54, 0
    %v168 = vsel %vm109, %v55, 0
    %v171 = vsel %vm109, %v56, 0
    %v174 = vsel %vm109, %v57, 0
    %v177 = vsel %vm109, %v58, 0
    %v180 = vsel %vm109, %v59, 0
    %v183 = vsel %vm109, %v60, 0
    %v186 = vsel %vm109, %v61, 0
    %v189 = vsel %vm109, %v62, 0
    %v192 = vsel %vm109, %v63, 0
    %v195 = vsel %vm109, %v64, 0
    %v198 = vsel %vm109, %v65, 0
    %v201 = vsel %vm109, %v66, 0
    %v204 = vsel %vm109, %v67, 0
    %v207 = vsel %vm109, %v68, 0
    %v210 = vsel %vm109, %v69, 0
    %v213 = vsel %vm109, %v70, 0
    %v216 = vsel %vm109, %v71, 0
    %v219 = vsel %vm109, %v72, 0
    %v222 = vsel %vm109, %v73, 0
    %v225 = vsel %vm109, %v74, 0
    %v228 = vsel %vm109, %v75, 0
    %v231 = vsel %vm109, %v76, 0
    %v234 = vsel %vm109, %v77, 0
    %v237 = vsel %vm109, %v78, 0
    %v240 = vsel %vm109, %v79, 0
    %v243 = vsel %vm109, %v80, 0
    %v246 = vsel %vm109, %v81, 0
    %v249 = vsel %vm109, %v82, 0
    %v252 = vsel %vm109, %v83, 0
    %v255 = vsel %vm109, %v84, 0
    %v258 = vsel %vm109, %v85, 0
    %v261 = vsel %vm109, %v86, 0
    %v264 = vsel %vm109, %v87, 0
    %v267 = vsel %vm109, %v88, 0
    %v270 = vsel %vm109, %v89, 0
    %v273 = vsel %vm109, %v90, 0
    %v276 = vsel %vm109, %v91, 0
    %v279 = vsel %vm109, %v92, 0
    %v282 = vsel %vm109, %v93, 0
    %v285 = vsel %vm109, %v94, 0
    %v288 = vsel %vm109, %v95, 0
    %v291 = vsel %vm109, %v96, 0
    %v294 = vsel %vm109, %v97, 0
    %v297 = vsel %vm109, %v98, 0
    %v300 = vsel %vm109, %v99, 0
    %302 = vmatprep.subr.mxu0 0.0
    %303 = vmatpush1.msra.mxu0 %v100
    %304 = vmatprep.subr.mxu0 0.0
    %305 = vmatpush1.msra.mxu0 %v101
    %306 = vmatprep.subr.mxu0 0.0
    %307 = vmatpush1.msra.mxu0 0.0
    %308 = vmatprep.subr.mxu0 0.0
    %309 = vmatpush1.msra.mxu0 0.0
    %310 = vmatprep.subr.mxu0 0.0
    %311 = vmatpush1.msra.mxu0 0.0
    %312 = vmatprep.subr.mxu0 0.0
    %313 = vmatpush1.msra.mxu0 0.0
    %314 = vmatprep.subr.mxu0 0.0
    %315 = vmatpush1.msra.mxu0 0.0
    %316 = vmatprep.subr.mxu0 0.0
    %317 = vmatpush1.msra.mxu0 0.0
    %318 = vmatprep.subr.mxu0 0.0
    %319 = vmatpush1.msra.mxu0 0.0
    %320 = vmatprep.subr.mxu0 0.0
    %321 = vmatpush1.msra.mxu0 0.0
    %322 = vmatprep.subr.mxu0 0.0
    %323 = vmatpush1.msra.mxu0 0.0
    %324 = vmatprep.subr.mxu0 0.0
    %325 = vmatpush1.msra.mxu0 0.0
    %326 = vmatprep.subr.mxu0 0.0
    %327 = vmatpush1.msra.mxu0 0.0
    %328 = vmatprep.subr.mxu0 0.0
    %329 = vmatpush1.msra.mxu0 0.0
    %330 = vmatprep.subr.mxu0 0.0
    %331 = vmatpush1.msra.mxu0 0.0
    %332 = vmatprep.subr.mxu0 0.0
    %333 = vmatpush1.msra.mxu0 0.0
    %334 = vmatprep.subr.mxu0 0.0
    %335 = vmatpush1.msra.mxu0 0.0
    %336 = vmatprep.subr.mxu0 0.0
    %337 = vmatpush1.msra.mxu0 0.0
    %338 = vmatprep.subr.mxu0 0.0
    %339 = vmatpush1.msra.mxu0 0.0
    %340 = vmatprep.subr.mxu0 0.0
    %341 = vmatpush1.msra.mxu0 0.0
    %342 = vmatprep.subr.mxu0 0.0
    %343 = vmatpush1.msra.mxu0 0.0
    %344 = vmatprep.subr.mxu0 0.0
    %345 = vmatpush1.msra.mxu0 0.0
    %346 = vmatprep.subr.mxu0 0.0
    %347 = vmatpush1.msra.mxu0 0.0
    %348 = vmatprep.subr.mxu0 0.0
    %349 = vmatpush1.msra.mxu0 0.0
    %350 = vmatprep.subr.mxu0 0.0
    %351 = vmatpush1.msra.mxu0 0.0
    %352 = vmatprep.subr.mxu0 0.0
    %353 = vmatpush1.msra.mxu0 0.0
    %354 = vmatprep.subr.mxu0 0.0
    %355 = vmatpush1.msra.mxu0 0.0
    %356 = vmatprep.subr.mxu0 0.0
    %357 = vmatpush1.msra.mxu0 0.0
    %358 = vmatprep.subr.mxu0 0.0
    %359 = vmatpush1.msra.mxu0 0.0
    %360 = vmatprep.subr.mxu0 0.0
    %361 = vmatpush1.msra.mxu0 0.0
    %362 = vmatprep.subr.mxu0 0.0
    %363 = vmatpush1.msra.mxu0 0.0
    %364 = vmatprep.subr.mxu0 0.0
    %365 = vmatpush1.msra.mxu0 0.0
    %366 = vmatprep.mubr.f32.mxu0 0.0
    %367 = vmatmul.mubr.f32.gmra.mrb[0].mxu0 %v111
    %v368 = vpop.f32.mrb[0].mxu0
    %v369 = vadd.f32 %v107, %v368
    %v370 = vpop.f32.mrb[0].mxu0
    %371 = vmatprep.mubr.f32.mxu0 0.0
    %372 = vmatmul.mubr.f32.gmra.mrb[0].mxu0 %v114
    %v373 = vpop.f32.mrb[0].mxu0
    %v374 = vadd.f32 %v107, %v373
    %v375 = vpop.f32.mrb[0].mxu0
    %376 = vmatprep.mubr.f32.mxu0 0.0
    %377 = vmatmul.mubr.f32.gmra.mrb[0].mxu0 %v117
    %v378 = vpop.f32.mrb[0].mxu0
    %v379 = vadd.f32 %v107, %v378
    %v380 = vpop.f32.mrb[0].mxu0
    %381 = vmatprep.mubr.f32.mxu0 0.0
    %382 = vmatmul.mubr.f32.gmra.mrb[0].mxu0 %v120
    %v383 = vpop.f32.mrb[0].mxu0
    %v384 = vadd.f32 %v107, %v383
    %v385 = vpop.f32.mrb[0].mxu0
    %386 = vmatprep.mubr.f32.mxu0 0.0
    %387 = vmatmul.mubr.f32.gmra.mrb[0].mxu0 %v123
    %v388 = vpop.f32.mrb[0].mxu0
    %v389 = vadd.f32 %v107, %v388
    %v390 = vpop.f32.mrb[0].mxu0
    %391 = vmatprep.mubr.f32.mxu0 0.0
    %392 = vmatmul.mubr.f32.gmra.mrb[0].mxu0 %v126
    %v393 = vpop.f32.mrb[0].mxu0
    %v394 = vadd.f32 %v107, %v393
    %v395 = vpop.f32.mrb[0].mxu0
    %396 = vmatprep.mubr.f32.mxu0 0.0
    %397 = vmatmul.mubr.f32.gmra.mrb[0].mxu0 %v129
    %v398 = vpop.f32.mrb[0].mxu0
    %v399 = vadd.f32 %v107, %v398
    %v400 = vpop.f32.mrb[0].mxu0
    %401 = vmatprep.mubr.f32.mxu0 0.0
    %402 = vmatmul.mubr.f32.gmra.mrb[0].mxu0 %v132
    %v403 = vpop.f32.mrb[0].mxu0
    %v404 = vadd.f32 %v107, %v403
    %v405 = vpop.f32.mrb[0].mxu0
    %406 = vmatprep.mubr.f32.mxu0 0.0
    %407 = vmatmul.mubr.f32.gmra.mrb[0].mxu0 %v135
    %v408 = vpop.f32.mrb[0].mxu0
    %v409 = vadd.f32 %v107, %v408
    %v410 = vpop.f32.mrb[0].mxu0
    %411 = vmatprep.mubr.f32.mxu0 0.0
    %412 = vmatmul.mubr.f32.gmra.mrb[0].mxu0 %v138
    %v413 = vpop.f32.mrb[0].mxu0
    %v414 = vadd.f32 %v107, %v413
    %v415 = vpop.f32.mrb[0].mxu0
    %416 = vmatprep.mubr.f32.mxu0 0.0
    %417 = vmatmul.mubr.f32.gmra.mrb[0].mxu0 %v141
    %v418 = vpop.f32.mrb[0].mxu0
    %v419 = vadd.f32 %v107, %v418
    %v420 = vpop.f32.mrb[0].mxu0
    %421 = vmatprep.mubr.f32.mxu0 0.0
    %422 = vmatmul.mubr.f32.gmra.mrb[0].mxu0 %v144
    %v423 = vpop.f32.mrb[0].mxu0
    %v424 = vadd.f32 %v107, %v423
    %v425 = vpop.f32.mrb[0].mxu0
    %426 = vmatprep.mubr.f32.mxu0 0.0
    %427 = vmatmul.mubr.f32.gmra.mrb[0].mxu0 %v147
    %v428 = vpop.f32.mrb[0].mxu0
    %v429 = vadd.f32 %v107, %v428
    %v430 = vpop.f32.mrb[0].mxu0
    %431 = vmatprep.mubr.f32.mxu0 0.0
    %432 = vmatmul.mubr.f32.gmra.mrb[0].mxu0 %v150
    %v433 = vpop.f32.mrb[0].mxu0
    %v434 = vadd.f32 %v107, %v433
    %v435 = vpop.f32.mrb[0].mxu0
    %436 = vmatprep.mubr.f32.mxu0 0.0
    %437 = vmatmul.mubr.f32.gmra.mrb[0].mxu0 %v153
    %v438 = vpop.f32.mrb[0].mxu0
    %v439 = vadd.f32 %v107, %v438
    %v440 = vpop.f32.mrb[0].mxu0
    %441 = vmatprep.mubr.f32.mxu0 0.0
    %442 = vmatmul.mubr.f32.gmra.mrb[0].mxu0 %v156
    %v443 = vpop.f32.mrb[0].mxu0
    %v444 = vadd.f32 %v107, %v443
    %v445 = vpop.f32.mrb[0].mxu0
    %446 = vmatprep.mubr.f32.mxu0 0.0
    %447 = vmatmul.mubr.f32.gmra.mrb[0].mxu0 %v159
    %v448 = vpop.f32.mrb[0].mxu0
    %v449 = vadd.f32 %v107, %v448
    %v450 = vpop.f32.mrb[0].mxu0
    %451 = vmatprep.mubr.f32.mxu0 0.0
    %452 = vmatmul.mubr.f32.gmra.mrb[0].mxu0 %v162
    %v453 = vpop.f32.mrb[0].mxu0
    %v454 = vadd.f32 %v107, %v453
    %v455 = vpop.f32.mrb[0].mxu0
    %456 = vmatprep.mubr.f32.mxu0 0.0
    %457 = vmatmul.mubr.f32.gmra.mrb[0].mxu0 %v165
    %v458 = vpop.f32.mrb[0].mxu0
    %v459 = vadd.f32 %v107, %v458
    %v460 = vpop.f32.mrb[0].mxu0
    %461 = vmatprep.mubr.f32.mxu0 0.0
    %462 = vmatmul.mubr.f32.gmra.mrb[0].mxu0 %v168
    %v463 = vpop.f32.mrb[0].mxu0
    %v464 = vadd.f32 %v107, %v463
    %v465 = vpop.f32.mrb[0].mxu0
    %466 = vmatprep.mubr.f32.mxu0 0.0
    %467 = vmatmul.mubr.f32.gmra.mrb[0].mxu0 %v171
    %v468 = vpop.f32.mrb[0].mxu0
    %v469 = vadd.f32 %v107, %v468
    %v470 = vpop.f32.mrb[0].mxu0
    %471 = vmatprep.mubr.f32.mxu0 0.0
    %472 = vmatmul.mubr.f32.gmra.mrb[0].mxu0 %v174
    %v473 = vpop.f32.mrb[0].mxu0
    %v474 = vadd.f32 %v107, %v473
    %v475 = vpop.f32.mrb[0].mxu0
    %476 = vmatprep.mubr.f32.mxu0 0.0
    %477 = vmatmul.mubr.f32.gmra.mrb[0].mxu0 %v177
    %v478 = vpop.f32.mrb[0].mxu0
    %v479 = vadd.f32 %v107, %v478
    %v480 = vpop.f32.mrb[0].mxu0
    %481 = vmatprep.mubr.f32.mxu0 0.0
    %482 = vmatmul.mubr.f32.gmra.mrb[0].mxu0 %v180
    %v483 = vpop.f32.mrb[0].mxu0
    %v484 = vadd.f32 %v107, %v483
    %v485 = vpop.f32.mrb[0].mxu0
    %486 = vmatprep.mubr.f32.mxu0 0.0
    %487 = vmatmul.mubr.f32.gmra.mrb[0].mxu0 %v183
    %v488 = vpop.f32.mrb[0].mxu0
    %v489 = vadd.f32 %v107, %v488
    %v490 = vpop.f32.mrb[0].mxu0
    %491 = vmatprep.mubr.f32.mxu0 0.0
    %492 = vmatmul.mubr.f32.gmra.mrb[0].mxu0 %v186
    %v493 = vpop.f32.mrb[0].mxu0
    %v494 = vadd.f32 %v107, %v493
    %v495 = vpop.f32.mrb[0].mxu0
    %496 = vmatprep.mubr.f32.mxu0 0.0
    %497 = vmatmul.mubr.f32.gmra.mrb[0].mxu0 %v189
    %v498 = vpop.f32.mrb[0].mxu0
    %v499 = vadd.f32 %v107, %v498
    %v500 = vpop.f32.mrb[0].mxu0
    %501 = vmatprep.mubr.f32.mxu0 0.0
    %502 = vmatmul.mubr.f32.gmra.mrb[0].mxu0 %v192
    %v503 = vpop.f32.mrb[0].mxu0
    %v504 = vadd.f32 %v107, %v503
    %v505 = vpop.f32.mrb[0].mxu0
    %506 = vmatprep.mubr.f32.mxu0 0.0
    %507 = vmatmul.mubr.f32.gmra.mrb[0].mxu0 %v195
    %v508 = vpop.f32.mrb[0].mxu0
    %v509 = vadd.f32 %v107, %v508
    %v510 = vpop.f32.mrb[0].mxu0
    %511 = vmatprep.mubr.f32.mxu0 0.0
    %512 = vmatmul.mubr.f32.gmra.mrb[0].mxu0 %v198
    %v513 = vpop.f32.mrb[0].mxu0
    %v514 = vadd.f32 %v107, %v513
    %v515 = vpop.f32.mrb[0].mxu0
    %516 = vmatprep.mubr.f32.mxu0 0.0
    %517 = vmatmul.mubr.f32.gmra.mrb[0].mxu0 %v201
    %v518 = vpop.f32.mrb[0].mxu0
    %v519 = vadd.f32 %v107, %v518
    %v520 = vpop.f32.mrb[0].mxu0
    %521 = vmatprep.mubr.f32.mxu0 0.0
    %522 = vmatmul.mubr.f32.gmra.mrb[0].mxu0 %v204
    %v523 = vpop.f32.mrb[0].mxu0
    %v524 = vadd.f32 %v107, %v523
    %v525 = vpop.f32.mrb[0].mxu0
    %526 = vmatprep.mubr.f32.mxu0 0.0
    %527 = vmatmul.mubr.f32.gmra.mrb[0].mxu0 %v207
    %v528 = vpop.f32.mrb[0].mxu0
    %v529 = vadd.f32 %v107, %v528
    %v530 = vpop.f32.mrb[0].mxu0
    %531 = vmatprep.mubr.f32.mxu0 0.0
    %532 = vmatmul.mubr.f32.gmra.mrb[0].mxu0 %v210
    %v533 = vpop.f32.mrb[0].mxu0
    %v534 = vadd.f32 %v107, %v533
    %v535 = vpop.f32.mrb[0].mxu0
    %536 = vmatprep.mubr.f32.mxu0 0.0
    %537 = vmatmul.mubr.f32.gmra.mrb[0].mxu0 %v213
    %v538 = vpop.f32.mrb[0].mxu0
    %v539 = vadd.f32 %v107, %v538
    %v540 = vpop.f32.mrb[0].mxu0
    %541 = vmatprep.mubr.f32.mxu0 0.0
    %542 = vmatmul.mubr.f32.gmra.mrb[0].mxu0 %v216
    %v543 = vpop.f32.mrb[0].mxu0
    %v544 = vadd.f32 %v107, %v543
    %v545 = vpop.f32.mrb[0].mxu0
    %546 = vmatprep.mubr.f32.mxu0 0.0
    %547 = vmatmul.mubr.f32.gmra.mrb[0].mxu0 %v219
    %v548 = vpop.f32.mrb[0].mxu0
    %v549 = vadd.f32 %v107, %v548
    %v550 = vpop.f32.mrb[0].mxu0
    %551 = vmatprep.mubr.f32.mxu0 0.0
    %552 = vmatmul.mubr.f32.gmra.mrb[0].mxu0 %v222
    %v553 = vpop.f32.mrb[0].mxu0
    %v554 = vadd.f32 %v107, %v553
    %v555 = vpop.f32.mrb[0].mxu0
    %556 = vmatprep.mubr.f32.mxu0 0.0
    %557 = vmatmul.mubr.f32.gmra.mrb[0].mxu0 %v225
    %v558 = vpop.f32.mrb[0].mxu0
    %v559 = vadd.f32 %v107, %v558
    %v560 = vpop.f32.mrb[0].mxu0
    %561 = vmatprep.mubr.f32.mxu0 0.0
    %562 = vmatmul.mubr.f32.gmra.mrb[0].mxu0 %v228
    %v563 = vpop.f32.mrb[0].mxu0
    %v564 = vadd.f32 %v107, %v563
    %v565 = vpop.f32.mrb[0].mxu0
    %566 = vmatprep.mubr.f32.mxu0 0.0
    %567 = vmatmul.mubr.f32.gmra.mrb[0].mxu0 %v231
    %v568 = vpop.f32.mrb[0].mxu0
    %v569 = vadd.f32 %v107, %v568
    %v570 = vpop.f32.mrb[0].mxu0
    %571 = vmatprep.mubr.f32.mxu0 0.0
    %572 = vmatmul.mubr.f32.gmra.mrb[0].mxu0 %v234
    %v573 = vpop.f32.mrb[0].mxu0
    %v574 = vadd.f32 %v107, %v573
    %v575 = vpop.f32.mrb[0].mxu0
    %576 = vmatprep.mubr.f32.mxu0 0.0
    %577 = vmatmul.mubr.f32.gmra.mrb[0].mxu0 %v237
    %v578 = vpop.f32.mrb[0].mxu0
    %v579 = vadd.f32 %v107, %v578
    %v580 = vpop.f32.mrb[0].mxu0
    %581 = vmatprep.mubr.f32.mxu0 0.0
    %582 = vmatmul.mubr.f32.gmra.mrb[0].mxu0 %v240
    %v583 = vpop.f32.mrb[0].mxu0
    %v584 = vadd.f32 %v107, %v583
    %v585 = vpop.f32.mrb[0].mxu0
    %586 = vmatprep.mubr.f32.mxu0 0.0
    %587 = vmatmul.mubr.f32.gmra.mrb[0].mxu0 %v243
    %v588 = vpop.f32.mrb[0].mxu0
    %v589 = vadd.f32 %v107, %v588
    %v590 = vpop.f32.mrb[0].mxu0
    %591 = vmatprep.mubr.f32.mxu0 0.0
    %592 = vmatmul.mubr.f32.gmra.mrb[0].mxu0 %v246
    %v593 = vpop.f32.mrb[0].mxu0
    %v594 = vadd.f32 %v107, %v593
    %v595 = vpop.f32.mrb[0].mxu0
    %596 = vmatprep.mubr.f32.mxu0 0.0
    %597 = vmatmul.mubr.f32.gmra.mrb[0].mxu0 %v249
    %v598 = vpop.f32.mrb[0].mxu0
    %v599 = vadd.f32 %v107, %v598
    %v600 = vpop.f32.mrb[0].mxu0
    %601 = vmatprep.mubr.f32.mxu0 0.0
    %602 = vmatmul.mubr.f32.gmra.mrb[0].mxu0 %v252
    %v603 = vpop.f32.mrb[0].mxu0
    %v604 = vadd.f32 %v107, %v603
    %v605 = vpop.f32.mrb[0].mxu0
    %606 = vmatprep.mubr.f32.mxu0 0.0
    %607 = vmatmul.mubr.f32.gmra.mrb[0].mxu0 %v255
    %v608 = vpop.f32.mrb[0].mxu0
    %v609 = vadd.f32 %v107, %v608
    %v610 = vpop.f32.mrb[0].mxu0
    %611 = vmatprep.mubr.f32.mxu0 0.0
    %612 = vmatmul.mubr.f32.gmra.mrb[0].mxu0 %v258
    %v613 = vpop.f32.mrb[0].mxu0
    %v614 = vadd.f32 %v107, %v613
    %v615 = vpop.f32.mrb[0].mxu0
    %616 = vmatprep.mubr.f32.mxu0 0.0
    %617 = vmatmul.mubr.f32.gmra.mrb[0].mxu0 %v261
    %v618 = vpop.f32.mrb[0].mxu0
    %v619 = vadd.f32 %v107, %v618
    %v620 = vpop.f32.mrb[0].mxu0
    %621 = vmatprep.mubr.f32.mxu0 0.0
    %622 = vmatmul.mubr.f32.gmra.mrb[0].mxu0 %v264
    %v623 = vpop.f32.mrb[0].mxu0
    %v624 = vadd.f32 %v107, %v623
    %v625 = vpop.f32.mrb[0].mxu0
    %626 = vmatprep.mubr.f32.mxu0 0.0
    %627 = vmatmul.mubr.f32.gmra.mrb[0].mxu0 %v267
    %v628 = vpop.f32.mrb[0].mxu0
    %v629 = vadd.f32 %v107, %v628
    %v630 = vpop.f32.mrb[0].mxu0
    %631 = vmatprep.mubr.f32.mxu0 0.0
    %632 = vmatmul.mubr.f32.gmra.mrb[0].mxu0 %v270
    %v633 = vpop.f32.mrb[0].mxu0
    %v634 = vadd.f32 %v107, %v633
    %v635 = vpop.f32.mrb[0].mxu0
    %636 = vmatprep.mubr.f32.mxu0 0.0
    %637 = vmatmul.mubr.f32.gmra.mrb[0].mxu0 %v273
    %v638 = vpop.f32.mrb[0].mxu0
    %v639 = vadd.f32 %v107, %v638
    %v640 = vpop.f32.mrb[0].mxu0
    %641 = vmatprep.mubr.f32.mxu0 0.0
    %642 = vmatmul.mubr.f32.gmra.mrb[0].mxu0 %v276
    %v643 = vpop.f32.mrb[0].mxu0
    %v644 = vadd.f32 %v107, %v643
    %v645 = vpop.f32.mrb[0].mxu0
    %646 = vmatprep.mubr.f32.mxu0 0.0
    %647 = vmatmul.mubr.f32.gmra.mrb[0].mxu0 %v279
    %v648 = vpop.f32.mrb[0].mxu0
    %v649 = vadd.f32 %v107, %v648
    %v650 = vpop.f32.mrb[0].mxu0
    %651 = vmatprep.mubr.f32.mxu0 0.0
    %652 = vmatmul.mubr.f32.gmra.mrb[0].mxu0 %v282
    %v653 = vpop.f32.mrb[0].mxu0
    %v654 = vadd.f32 %v107, %v653
    %v655 = vpop.f32.mrb[0].mxu0
    %656 = vmatprep.mubr.f32.mxu0 0.0
    %657 = vmatmul.mubr.f32.gmra.mrb[0].mxu0 %v285
    %v658 = vpop.f32.mrb[0].mxu0
    %v659 = vadd.f32 %v107, %v658
    %v660 = vpop.f32.mrb[0].mxu0
    %661 = vmatprep.mubr.f32.mxu0 0.0
    %662 = vmatmul.mubr.f32.gmra.mrb[0].mxu0 %v288
    %v663 = vpop.f32.mrb[0].mxu0
    %v664 = vadd.f32 %v107, %v663
    %v665 = vpop.f32.mrb[0].mxu0
    %666 = vmatprep.mubr.f32.mxu0 0.0
    %667 = vmatmul.mubr.f32.gmra.mrb[0].mxu0 %v291
    %v668 = vpop.f32.mrb[0].mxu0
    %v669 = vadd.f32 %v107, %v668
    %v670 = vpop.f32.mrb[0].mxu0
    %671 = vmatprep.mubr.f32.mxu0 0.0
    %672 = vmatmul.mubr.f32.gmra.mrb[0].mxu0 %v294
    %v673 = vpop.f32.mrb[0].mxu0
    %v674 = vadd.f32 %v107, %v673
    %v675 = vpop.f32.mrb[0].mxu0
    %676 = vmatprep.mubr.f32.mxu0 0.0
    %677 = vmatmul.mubr.f32.gmra.mrb[0].mxu0 %v297
    %v678 = vpop.f32.mrb[0].mxu0
    %v679 = vadd.f32 %v107, %v678
    %v680 = vpop.f32.mrb[0].mxu0
    %681 = vmatprep.mubr.f32.mxu0 0.0
    %682 = vmatmul.mubr.f32.gmra.mrb[0].mxu0 %v300
    %v683 = vpop.f32.mrb[0].mxu0
    %v684 = vadd.f32 %v107, %v683
    %v685 = vpop.f32.mrb[0].mxu0
    %686 = vdwg.mxu0
    %v687 = vxor.u32 %v369, 2147483648
    %v688 = vxor.u32 %v374, 2147483648
    %v689 = vxor.u32 %v379, 2147483648
    %v690 = vxor.u32 %v384, 2147483648
    %v691 = vxor.u32 %v389, 2147483648
    %v692 = vxor.u32 %v394, 2147483648
    %v693 = vxor.u32 %v399, 2147483648
    %v694 = vxor.u32 %v404, 2147483648
    %v695 = vxor.u32 %v409, 2147483648
    %v696 = vxor.u32 %v414, 2147483648
    %v697 = vxor.u32 %v419, 2147483648
    %v698 = vxor.u32 %v424, 2147483648
    %v699 = vxor.u32 %v429, 2147483648
    %v700 = vxor.u32 %v434, 2147483648
    %v701 = vxor.u32 %v439, 2147483648
    %v702 = vxor.u32 %v444, 2147483648
    %v703 = vxor.u32 %v449, 2147483648
    %v704 = vxor.u32 %v454, 2147483648
    %v705 = vxor.u32 %v459, 2147483648
    %v706 = vxor.u32 %v464, 2147483648
    %v707 = vxor.u32 %v469, 2147483648
    %v708 = vxor.u32 %v474, 2147483648
    %v709 = vxor.u32 %v479, 2147483648
    %v710 = vxor.u32 %v484, 2147483648
    %v711 = vxor.u32 %v489, 2147483648
    %v712 = vxor.u32 %v494, 2147483648
    %v713 = vxor.u32 %v499, 2147483648
    %v714 = vxor.u32 %v504, 2147483648
    %v715 = vxor.u32 %v509, 2147483648
    %v716 = vxor.u32 %v514, 2147483648
    %v717 = vxor.u32 %v519, 2147483648
    %v718 = vxor.u32 %v524, 2147483648
    %v719 = vxor.u32 %v529, 2147483648
    %v720 = vxor.u32 %v534, 2147483648
    %v721 = vxor.u32 %v539, 2147483648
    %v722 = vxor.u32 %v544, 2147483648
    %v723 = vxor.u32 %v549, 2147483648
    %v724 = vxor.u32 %v554, 2147483648
    %v725 = vxor.u32 %v559, 2147483648
    %v726 = vxor.u32 %v564, 2147483648
    %v727 = vxor.u32 %v569, 2147483648
    %v728 = vxor.u32 %v574, 2147483648
    %v729 = vxor.u32 %v579, 2147483648
    %v730 = vxor.u32 %v584, 2147483648
    %v731 = vxor.u32 %v589, 2147483648
    %v732 = vxor.u32 %v594, 2147483648
    %v733 = vxor.u32 %v599, 2147483648
    %v734 = vxor.u32 %v604, 2147483648
    %v735 = vxor.u32 %v609, 2147483648
    %v736 = vxor.u32 %v614, 2147483648
    %v737 = vxor.u32 %v619, 2147483648
    %v738 = vxor.u32 %v624, 2147483648
    %v739 = vxor.u32 %v629, 2147483648
    %v740 = vxor.u32 %v634, 2147483648
    %v741 = vxor.u32 %v639, 2147483648
    %v742 = vxor.u32 %v644, 2147483648
    %v743 = vxor.u32 %v649, 2147483648
    %v744 = vxor.u32 %v654, 2147483648
    %v745 = vxor.u32 %v659, 2147483648
    %v746 = vxor.u32 %v664, 2147483648
    %v747 = vxor.u32 %v669, 2147483648
    %v748 = vxor.u32 %v674, 2147483648
    %v749 = vxor.u32 %v679, 2147483648
    %v750 = vxor.u32 %v684, 2147483648
    %v751 = vmul.f32 %v687, 1.442695
    %v752 = vpow.pop %v751
    %v753 = vmul.f32 %v688, 1.442695
    %v754 = vpow.pop %v753
    %v755 = vmul.f32 %v689, 1.442695
    %v756 = vpow.pop %v755
    %v757 = vmul.f32 %v690, 1.442695
    %v758 = vpow.pop %v757
    %v759 = vmul.f32 %v691, 1.442695
    %v760 = vpow.pop %v759
    %v761 = vmul.f32 %v692, 1.442695
    %v762 = vpow.pop %v761
    %v763 = vmul.f32 %v693, 1.442695
    %v764 = vpow.pop %v763
    %v765 = vmul.f32 %v694, 1.442695
    %v766 = vpow.pop %v765
    %v767 = vmul.f32 %v695, 1.442695
    %v768 = vpow.pop %v767
    %v769 = vmul.f32 %v696, 1.442695
    %v770 = vpow.pop %v769
    %v771 = vmul.f32 %v697, 1.442695
    %v772 = vpow.pop %v771
    %v773 = vmul.f32 %v698, 1.442695
    %v774 = vpow.pop %v773
    %v775 = vmul.f32 %v699, 1.442695
    %v776 = vpow.pop %v775
    %v777 = vmul.f32 %v700, 1.442695
    %v778 = vpow.pop %v777
    %v779 = vmul.f32 %v701, 1.442695
    %v780 = vpow.pop %v779
    %v781 = vmul.f32 %v702, 1.442695
    %v782 = vpow.pop %v781
    %v783 = vmul.f32 %v703, 1.442695
    %v784 = vpow.pop %v783
    %v785 = vmul.f32 %v704, 1.442695
    %v786 = vpow.pop %v785
    %v787 = vmul.f32 %v705, 1.442695
    %v788 = vpow.pop %v787
    %v789 = vmul.f32 %v706, 1.442695
    %v790 = vpow.pop %v789
    %v791 = vmul.f32 %v707, 1.442695
    %v792 = vpow.pop %v791
    %v793 = vmul.f32 %v708, 1.442695
    %v794 = vpow.pop %v793
    %v795 = vmul.f32 %v709, 1.442695
    %v796 = vpow.pop %v795
    %v797 = vmul.f32 %v710, 1.442695
    %v798 = vpow.pop %v797
    %v799 = vmul.f32 %v711, 1.442695
    %v800 = vpow.pop %v799
    %v801 = vmul.f32 %v712, 1.442695
    %v802 = vpow.pop %v801
    %v803 = vmul.f32 %v713, 1.442695
    %v804 = vpow.pop %v803
    %v805 = vmul.f32 %v714, 1.442695
    %v806 = vpow.pop %v805
    %v807 = vmul.f32 %v715, 1.442695
    %v808 = vpow.pop %v807
    %v809 = vmul.f32 %v716, 1.442695
    %v810 = vpow.pop %v809
    %v811 = vmul.f32 %v717, 1.442695
    %v812 = vpow.pop %v811
    %v813 = vmul.f32 %v718, 1.442695
    %v814 = vpow.pop %v813
    %v815 = vmul.f32 %v719, 1.442695
    %v816 = vpow.pop %v815
    %v817 = vmul.f32 %v720, 1.442695
    %v818 = vpow.pop %v817
    %v819 = vmul.f32 %v721, 1.442695
    %v820 = vpow.pop %v819
    %v821 = vmul.f32 %v722, 1.442695
    %v822 = vpow.pop %v821
    %v823 = vmul.f32 %v723, 1.442695
    %v824 = vpow.pop %v823
    %v825 = vmul.f32 %v724, 1.442695
    %v826 = vpow.pop %v825
    %v827 = vmul.f32 %v725, 1.442695
    %v828 = vpow.pop %v827
    %v829 = vmul.f32 %v726, 1.442695
    %v830 = vpow.pop %v829
    %v831 = vmul.f32 %v727, 1.442695
    %v832 = vpow.pop %v831
    %v833 = vmul.f32 %v728, 1.442695
    %v834 = vpow.pop %v833
    %v835 = vmul.f32 %v729, 1.442695
    %v836 = vpow.pop %v835
    %v837 = vmul.f32 %v730, 1.442695
    %v838 = vpow.pop %v837
    %v839 = vmul.f32 %v731, 1.442695
    %v840 = vpow.pop %v839
    %v841 = vmul.f32 %v732, 1.442695
    %v842 = vpow.pop %v841
    %v843 = vmul.f32 %v733, 1.442695
    %v844 = vpow.pop %v843
    %v845 = vmul.f32 %v734, 1.442695
    %v846 = vpow.pop %v845
    %v847 = vmul.f32 %v735, 1.442695
    %v848 = vpow.pop %v847
    %v849 = vmul.f32 %v736, 1.442695
    %v850 = vpow.pop %v849
    %v851 = vmul.f32 %v737, 1.442695
    %v852 = vpow.pop %v851
    %v853 = vmul.f32 %v738, 1.442695
    %v854 = vpow.pop %v853
    %v855 = vmul.f32 %v739, 1.442695
    %v856 = vpow.pop %v855
    %v857 = vmul.f32 %v740, 1.442695
    %v858 = vpow.pop %v857
    %v859 = vmul.f32 %v741, 1.442695
    %v860 = vpow.pop %v859
    %v861 = vmul.f32 %v742, 1.442695
    %v862 = vpow.pop %v861
    %v863 = vmul.f32 %v743, 1.442695
    %v864 = vpow.pop %v863
    %v865 = vmul.f32 %v744, 1.442695
    %v866 = vpow.pop %v865
    %v867 = vmul.f32 %v745, 1.442695
    %v868 = vpow.pop %v867
    %v869 = vmul.f32 %v746, 1.442695
    %v870 = vpow.pop %v869
    %v871 = vmul.f32 %v747, 1.442695
    %v872 = vpow.pop %v871
    %v873 = vmul.f32 %v748, 1.442695
    %v874 = vpow.pop %v873
    %v875 = vmul.f32 %v749, 1.442695
    %v876 = vpow.pop %v875
    %v877 = vmul.f32 %v750, 1.442695
    %v878 = vpow.pop %v877
    %v879 = vadd.f32 %v752, 1.0
    %v880 = vadd.f32 %v754, 1.0
    %v881 = vadd.f32 %v756, 1.0
    %v882 = vadd.f32 %v758, 1.0
    %v883 = vadd.f32 %v760, 1.0
    %v884 = vadd.f32 %v762, 1.0
    %v885 = vadd.f32 %v764, 1.0
    %v886 = vadd.f32 %v766, 1.0
    %v887 = vadd.f32 %v768, 1.0
    %v888 = vadd.f32 %v770, 1.0
    %v889 = vadd.f32 %v772, 1.0
    %v890 = vadd.f32 %v774, 1.0
    %v891 = vadd.f32 %v776, 1.0
    %v892 = vadd.f32 %v778, 1.0
    %v893 = vadd.f32 %v780, 1.0
    %v894 = vadd.f32 %v782, 1.0
    %v895 = vadd.f32 %v784, 1.0
    %v896 = vadd.f32 %v786, 1.0
    %v897 = vadd.f32 %v788, 1.0
    %v898 = vadd.f32 %v790, 1.0
    %v899 = vadd.f32 %v792, 1.0
    %v900 = vadd.f32 %v794, 1.0
    %v901 = vadd.f32 %v796, 1.0
    %v902 = vadd.f32 %v798, 1.0
    %v903 = vadd.f32 %v800, 1.0
    %v904 = vadd.f32 %v802, 1.0
    %v905 = vadd.f32 %v804, 1.0
    %v906 = vadd.f32 %v806, 1.0
    %v907 = vadd.f32 %v808, 1.0
    %v908 = vadd.f32 %v810, 1.0
    %v909 = vadd.f32 %v812, 1.0
    %v910 = vadd.f32 %v814, 1.0
    %v911 = vadd.f32 %v816, 1.0
    %v912 = vadd.f32 %v818, 1.0
    %v913 = vadd.f32 %v820, 1.0
    %v914 = vadd.f32 %v822, 1.0
    %v915 = vadd.f32 %v824, 1.0
    %v916 = vadd.f32 %v826, 1.0
    %v917 = vadd.f32 %v828, 1.0
    %v918 = vadd.f32 %v830, 1.0
    %v919 = vadd.f32 %v832, 1.0
    %v920 = vadd.f32 %v834, 1.0
    %v921 = vadd.f32 %v836, 1.0
    %v922 = vadd.f32 %v838, 1.0
    %v923 = vadd.f32 %v840, 1.0
    %v924 = vadd.f32 %v842, 1.0
    %v925 = vadd.f32 %v844, 1.0
    %v926 = vadd.f32 %v846, 1.0
    %v927 = vadd.f32 %v848, 1.0
    %v928 = vadd.f32 %v850, 1.0
    %v929 = vadd.f32 %v852, 1.0
    %v930 = vadd.f32 %v854, 1.0
    %v931 = vadd.f32 %v856, 1.0
    %v932 = vadd.f32 %v858, 1.0
    %v933 = vadd.f32 %v860, 1.0
    %v934 = vadd.f32 %v862, 1.0
    %v935 = vadd.f32 %v864, 1.0
    %v936 = vadd.f32 %v866, 1.0
    %v937 = vadd.f32 %v868, 1.0
    %v938 = vadd.f32 %v870, 1.0
    %v939 = vadd.f32 %v872, 1.0
    %v940 = vadd.f32 %v874, 1.0
    %v941 = vadd.f32 %v876, 1.0
    %v942 = vadd.f32 %v878, 1.0
    %v943 = vrcp.pop %v879
    %v944 = vmul.f32 1.0, %v943
    %v945 = vrcp.pop %v880
    %v946 = vmul.f32 1.0, %v945
    %v947 = vrcp.pop %v881
    %v948 = vmul.f32 1.0, %v947
    %v949 = vrcp.pop %v882
    %v950 = vmul.f32 1.0, %v949
    %v951 = vrcp.pop %v883
    %v952 = vmul.f32 1.0, %v951
    %v953 = vrcp.pop %v884
    %v954 = vmul.f32 1.0, %v953
    %v955 = vrcp.pop %v885
    %v956 = vmul.f32 1.0, %v955
    %v957 = vrcp.pop %v886
    %v958 = vmul.f32 1.0, %v957
    %v959 = vrcp.pop %v887
    %v960 = vmul.f32 1.0, %v959
    %v961 = vrcp.pop %v888
    %v962 = vmul.f32 1.0, %v961
    %v963 = vrcp.pop %v889
    %v964 = vmul.f32 1.0, %v963
    %v965 = vrcp.pop %v890
    %v966 = vmul.f32 1.0, %v965
    %v967 = vrcp.pop %v891
    %v968 = vmul.f32 1.0, %v967
    %v969 = vrcp.pop %v892
    %v970 = vmul.f32 1.0, %v969
    %v971 = vrcp.pop %v893
    %v972 = vmul.f32 1.0, %v971
    %v973 = vrcp.pop %v894
    %v974 = vmul.f32 1.0, %v973
    %v975 = vrcp.pop %v895
    %v976 = vmul.f32 1.0, %v975
    %v977 = vrcp.pop %v896
    %v978 = vmul.f32 1.0, %v977
    %v979 = vrcp.pop %v897
    %v980 = vmul.f32 1.0, %v979
    %v981 = vrcp.pop %v898
    %v982 = vmul.f32 1.0, %v981
    %v983 = vrcp.pop %v899
    %v984 = vmul.f32 1.0, %v983
    %v985 = vrcp.pop %v900
    %v986 = vmul.f32 1.0, %v985
    %v987 = vrcp.pop %v901
    %v988 = vmul.f32 1.0, %v987
    %v989 = vrcp.pop %v902
    %v990 = vmul.f32 1.0, %v989
    %v991 = vrcp.pop %v903
    %v992 = vmul.f32 1.0, %v991
    %v993 = vrcp.pop %v904
    %v994 = vmul.f32 1.0, %v993
    %v995 = vrcp.pop %v905
    %v996 = vmul.f32 1.0, %v995
    %v997 = vrcp.pop %v906
    %v998 = vmul.f32 1.0, %v997
    %v999 = vrcp.pop %v907
    %v1000 = vmul.f32 1.0, %v999
    %v1001 = vrcp.pop %v908
    %v1002 = vmul.f32 1.0, %v1001
    %v1003 = vrcp.pop %v909
    %v1004 = vmul.f32 1.0, %v1003
    %v1005 = vrcp.pop %v910
    %v1006 = vmul.f32 1.0, %v1005
    %v1007 = vrcp.pop %v911
    %v1008 = vmul.f32 1.0, %v1007
    %v1009 = vrcp.pop %v912
    %v1010 = vmul.f32 1.0, %v1009
    %v1011 = vrcp.pop %v913
    %v1012 = vmul.f32 1.0, %v1011
    %v1013 = vrcp.pop %v914
    %v1014 = vmul.f32 1.0, %v1013
    %v1015 = vrcp.pop %v915
    %v1016 = vmul.f32 1.0, %v1015
    %v1017 = vrcp.pop %v916
    %v1018 = vmul.f32 1.0, %v1017
    %v1019 = vrcp.pop %v917
    %v1020 = vmul.f32 1.0, %v1019
    %v1021 = vrcp.pop %v918
    %v1022 = vmul.f32 1.0, %v1021
    %v1023 = vrcp.pop %v919
    %v1024 = vmul.f32 1.0, %v1023
    %v1025 = vrcp.pop %v920
    %v1026 = vmul.f32 1.0, %v1025
    %v1027 = vrcp.pop %v921
    %v1028 = vmul.f32 1.0, %v1027
    %v1029 = vrcp.pop %v922
    %v1030 = vmul.f32 1.0, %v1029
    %v1031 = vrcp.pop %v923
    %v1032 = vmul.f32 1.0, %v1031
    %v1033 = vrcp.pop %v924
    %v1034 = vmul.f32 1.0, %v1033
    %v1035 = vrcp.pop %v925
    %v1036 = vmul.f32 1.0, %v1035
    %v1037 = vrcp.pop %v926
    %v1038 = vmul.f32 1.0, %v1037
    %v1039 = vrcp.pop %v927
    %v1040 = vmul.f32 1.0, %v1039
    %v1041 = vrcp.pop %v928
    %v1042 = vmul.f32 1.0, %v1041
    %v1043 = vrcp.pop %v929
    %v1044 = vmul.f32 1.0, %v1043
    %v1045 = vrcp.pop %v930
    %v1046 = vmul.f32 1.0, %v1045
    %v1047 = vrcp.pop %v931
    %v1048 = vmul.f32 1.0, %v1047
    %v1049 = vrcp.pop %v932
    %v1050 = vmul.f32 1.0, %v1049
    %v1051 = vrcp.pop %v933
    %v1052 = vmul.f32 1.0, %v1051
    %v1053 = vrcp.pop %v934
    %v1054 = vmul.f32 1.0, %v1053
    %v1055 = vrcp.pop %v935
    %v1056 = vmul.f32 1.0, %v1055
    %v1057 = vrcp.pop %v936
    %v1058 = vmul.f32 1.0, %v1057
    %v1059 = vrcp.pop %v937
    %v1060 = vmul.f32 1.0, %v1059
    %v1061 = vrcp.pop %v938
    %v1062 = vmul.f32 1.0, %v1061
    %v1063 = vrcp.pop %v939
    %v1064 = vmul.f32 1.0, %v1063
    %v1065 = vrcp.pop %v940
    %v1066 = vmul.f32 1.0, %v1065
    %v1067 = vrcp.pop %v941
    %v1068 = vmul.f32 1.0, %v1067
    %v1069 = vrcp.pop %v942
    %v1070 = vmul.f32 1.0, %v1069
    %v1071 = vmul.f32 %v369, %v944
    %v1072 = vmul.f32 %v374, %v946
    %v1073 = vmul.f32 %v379, %v948
    %v1074 = vmul.f32 %v384, %v950
    %v1075 = vmul.f32 %v389, %v952
    %v1076 = vmul.f32 %v394, %v954
    %v1077 = vmul.f32 %v399, %v956
    %v1078 = vmul.f32 %v404, %v958
    %v1079 = vmul.f32 %v409, %v960
    %v1080 = vmul.f32 %v414, %v962
    %v1081 = vmul.f32 %v419, %v964
    %v1082 = vmul.f32 %v424, %v966
    %v1083 = vmul.f32 %v429, %v968
    %v1084 = vmul.f32 %v434, %v970
    %v1085 = vmul.f32 %v439, %v972
    %v1086 = vmul.f32 %v444, %v974
    %v1087 = vmul.f32 %v449, %v976
    %v1088 = vmul.f32 %v454, %v978
    %v1089 = vmul.f32 %v459, %v980
    %v1090 = vmul.f32 %v464, %v982
    %v1091 = vmul.f32 %v469, %v984
    %v1092 = vmul.f32 %v474, %v986
    %v1093 = vmul.f32 %v479, %v988
    %v1094 = vmul.f32 %v484, %v990
    %v1095 = vmul.f32 %v489, %v992
    %v1096 = vmul.f32 %v494, %v994
    %v1097 = vmul.f32 %v499, %v996
    %v1098 = vmul.f32 %v504, %v998
    %v1099 = vmul.f32 %v509, %v1000
    %v1100 = vmul.f32 %v514, %v1002
    %v1101 = vmul.f32 %v519, %v1004
    %v1102 = vmul.f32 %v524, %v1006
    %v1103 = vmul.f32 %v529, %v1008
    %v1104 = vmul.f32 %v534, %v1010
    %v1105 = vmul.f32 %v539, %v1012
    %v1106 = vmul.f32 %v544, %v1014
    %v1107 = vmul.f32 %v549, %v1016
    %v1108 = vmul.f32 %v554, %v1018
    %v1109 = vmul.f32 %v559, %v1020
    %v1110 = vmul.f32 %v564, %v1022
    %v1111 = vmul.f32 %v569, %v1024
    %v1112 = vmul.f32 %v574, %v1026
    %v1113 = vmul.f32 %v579, %v1028
    %v1114 = vmul.f32 %v584, %v1030
    %v1115 = vmul.f32 %v589, %v1032
    %v1116 = vmul.f32 %v594, %v1034
    %v1117 = vmul.f32 %v599, %v1036
    %v1118 = vmul.f32 %v604, %v1038
    %v1119 = vmul.f32 %v609, %v1040
    %v1120 = vmul.f32 %v614, %v1042
    %v1121 = vmul.f32 %v619, %v1044
    %v1122 = vmul.f32 %v624, %v1046
    %v1123 = vmul.f32 %v629, %v1048
    %v1124 = vmul.f32 %v634, %v1050
    %v1125 = vmul.f32 %v639, %v1052
    %v1126 = vmul.f32 %v644, %v1054
    %v1127 = vmul.f32 %v649, %v1056
    %v1128 = vmul.f32 %v654, %v1058
    %v1129 = vmul.f32 %v659, %v1060
    %v1130 = vmul.f32 %v664, %v1062
    %v1131 = vmul.f32 %v669, %v1064
    %v1132 = vmul.f32 %v674, %v1066
    %v1133 = vmul.f32 %v679, %v1068
    %v1134 = vmul.f32 %v684, %v1070
    %v1135 = vld [vmem:[%s4] sm:$0xff]
    %v1136 = vld [vmem:[%s4 + $0x8] sm:$0xff]
    %v1137 = vld [vmem:[%s4 + $0x10] sm:$0xff]
    %v1138 = vld [vmem:[%s4 + $0x18] sm:$0xff]
    %v1139 = vld [vmem:[%s4 + $0x20] sm:$0xff]
    %v1140 = vld [vmem:[%s4 + $0x28] sm:$0xff]
    %v1141 = vld [vmem:[%s4 + $0x30] sm:$0xff]
    %v1142 = vld [vmem:[%s4 + $0x38] sm:$0xff]
    %v1143 = vld [vmem:[%s5] sm:$0x1]
    %v1145 = vlaneseq
    %v1146 = vshrl.u32 %v1145, 7
    %v1147 = vsub.s32 0, %v1146
    %v1148 = vrot.slane %v1143, %v1147
    %vm1150 = vcmask 523264
    %v1152 = vsel %vm1150, %v1071, 0
    %v1155 = vsel %vm1150, %v1072, 0
    %v1158 = vsel %vm1150, %v1073, 0
    %v1161 = vsel %vm1150, %v1074, 0
    %v1164 = vsel %vm1150, %v1075, 0
    %v1167 = vsel %vm1150, %v1076, 0
    %v1170 = vsel %vm1150, %v1077, 0
    %v1173 = vsel %vm1150, %v1078, 0
    %v1176 = vsel %vm1150, %v1079, 0
    %v1179 = vsel %vm1150, %v1080, 0
    %v1182 = vsel %vm1150, %v1081, 0
    %v1185 = vsel %vm1150, %v1082, 0
    %v1188 = vsel %vm1150, %v1083, 0
    %v1191 = vsel %vm1150, %v1084, 0
    %v1194 = vsel %vm1150, %v1085, 0
    %v1197 = vsel %vm1150, %v1086, 0
    %v1200 = vsel %vm1150, %v1087, 0
    %v1203 = vsel %vm1150, %v1088, 0
    %v1206 = vsel %vm1150, %v1089, 0
    %v1209 = vsel %vm1150, %v1090, 0
    %v1212 = vsel %vm1150, %v1091, 0
    %v1215 = vsel %vm1150, %v1092, 0
    %v1218 = vsel %vm1150, %v1093, 0
    %v1221 = vsel %vm1150, %v1094, 0
    %v1224 = vsel %vm1150, %v1095, 0
    %v1227 = vsel %vm1150, %v1096, 0
    %v1230 = vsel %vm1150, %v1097, 0
    %v1233 = vsel %vm1150, %v1098, 0
    %v1236 = vsel %vm1150, %v1099, 0
    %v1239 = vsel %vm1150, %v1100, 0
    %v1242 = vsel %vm1150, %v1101, 0
    %v1245 = vsel %vm1150, %v1102, 0
    %v1248 = vsel %vm1150, %v1103, 0
    %v1251 = vsel %vm1150, %v1104, 0
    %v1254 = vsel %vm1150, %v1105, 0
    %v1257 = vsel %vm1150, %v1106, 0
    %v1260 = vsel %vm1150, %v1107, 0
    %v1263 = vsel %vm1150, %v1108, 0
    %v1266 = vsel %vm1150, %v1109, 0
    %v1269 = vsel %vm1150, %v1110, 0
    %v1272 = vsel %vm1150, %v1111, 0
    %v1275 = vsel %vm1150, %v1112, 0
    %v1278 = vsel %vm1150, %v1113, 0
    %v1281 = vsel %vm1150, %v1114, 0
    %v1284 = vsel %vm1150, %v1115, 0
    %v1287 = vsel %vm1150, %v1116, 0
    %v1290 = vsel %vm1150, %v1117, 0
    %v1293 = vsel %vm1150, %v1118, 0
    %v1296 = vsel %vm1150, %v1119, 0
    %v1299 = vsel %vm1150, %v1120, 0
    %v1302 = vsel %vm1150, %v1121, 0
    %v1305 = vsel %vm1150, %v1122, 0
    %v1308 = vsel %vm1150, %v1123, 0
    %v1311 = vsel %vm1150, %v1124, 0
    %v1314 = vsel %vm1150, %v1125, 0
    %v1317 = vsel %vm1150, %v1126, 0
    %v1320 = vsel %vm1150, %v1127, 0
    %v1323 = vsel %vm1150, %v1128, 0
    %v1326 = vsel %vm1150, %v1129, 0
    %v1329 = vsel %vm1150, %v1130, 0
    %v1332 = vsel %vm1150, %v1131, 0
    %v1335 = vsel %vm1150, %v1132, 0
    %v1338 = vsel %vm1150, %v1133, 0
    %v1341 = vsel %vm1150, %v1134, 0
    %1343 = vmatprep.subr.mxu0 0.0
    %1344 = vmatpush1.msra.mxu0 %v1135
    %1345 = vmatprep.subr.mxu0 0.0
    %1346 = vmatpush1.msra.mxu0 %v1136
    %1347 = vmatprep.subr.mxu0 0.0
    %1348 = vmatpush1.msra.mxu0 %v1137
    %1349 = vmatprep.subr.mxu0 0.0
    %1350 = vmatpush1.msra.mxu0 %v1138
    %1351 = vmatprep.subr.mxu0 0.0
    %1352 = vmatpush1.msra.mxu0 %v1139
    %1353 = vmatprep.subr.mxu0 0.0
    %1354 = vmatpush1.msra.mxu0 %v1140
    %1355 = vmatprep.subr.mxu0 0.0
    %1356 = vmatpush1.msra.mxu0 %v1141
    %1357 = vmatprep.subr.mxu0 0.0
    %1358 = vmatpush1.msra.mxu0 %v1142
    %1359 = vmatprep.subr.mxu0 0.0
    %1360 = vmatpush1.msra.mxu0 0.0
    %1361 = vmatprep.subr.mxu0 0.0
    %1362 = vmatpush1.msra.mxu0 0.0
    %1363 = vmatprep.subr.mxu0 0.0
    %1364 = vmatpush1.msra.mxu0 0.0
    %1365 = vmatprep.subr.mxu0 0.0
    %1366 = vmatpush1.msra.mxu0 0.0
    %1367 = vmatprep.subr.mxu0 0.0
    %1368 = vmatpush1.msra.mxu0 0.0
    %1369 = vmatprep.subr.mxu0 0.0
    %1370 = vmatpush1.msra.mxu0 0.0
    %1371 = vmatprep.subr.mxu0 0.0
    %1372 = vmatpush1.msra.mxu0 0.0
    %1373 = vmatprep.subr.mxu0 0.0
    %1374 = vmatpush1.msra.mxu0 0.0
    %1375 = vmatprep.subr.mxu0 0.0
    %1376 = vmatpush1.msra.mxu0 0.0
    %1377 = vmatprep.subr.mxu0 0.0
    %1378 = vmatpush1.msra.mxu0 0.0
    %1379 = vmatprep.subr.mxu0 0.0
    %1380 = vmatpush1.msra.mxu0 0.0
    %1381 = vmatprep.subr.mxu0 0.0
    %1382 = vmatpush1.msra.mxu0 0.0
    %1383 = vmatprep.subr.mxu0 0.0
    %1384 = vmatpush1.msra.mxu0 0.0
    %1385 = vmatprep.subr.mxu0 0.0
    %1386 = vmatpush1.msra.mxu0 0.0
    %1387 = vmatprep.subr.mxu0 0.0
    %1388 = vmatpush1.msra.mxu0 0.0
    %1389 = vmatprep.subr.mxu0 0.0
    %1390 = vmatpush1.msra.mxu0 0.0
    %1391 = vmatprep.subr.mxu0 0.0
    %1392 = vmatpush1.msra.mxu0 0.0
    %1393 = vmatprep.subr.mxu0 0.0
    %1394 = vmatpush1.msra.mxu0 0.0
    %1395 = vmatprep.subr.mxu0 0.0
    %1396 = vmatpush1.msra.mxu0 0.0
    %1397 = vmatprep.subr.mxu0 0.0
    %1398 = vmatpush1.msra.mxu0 0.0
    %1399 = vmatprep.subr.mxu0 0.0
    %1400 = vmatpush1.msra.mxu0 0.0
    %1401 = vmatprep.subr.mxu0 0.0
    %1402 = vmatpush1.msra.mxu0 0.0
    %1403 = vmatprep.subr.mxu0 0.0
    %1404 = vmatpush1.msra.mxu0 0.0
    %1405 = vmatprep.subr.mxu0 0.0
    %1406 = vmatpush1.msra.mxu0 0.0
    %1407 = vmatprep.mubr.f32.mxu0 0.0
    %1408 = vmatmul.mubr.f32.gmra.mrb[0].mxu0 %v1152
    %v1409 = vpop.f32.mrb[0].mxu0
    %v1410 = vadd.f32 %v1148, %v1409
    %v1411 = vpop.f32.mrb[0].mxu0
    %1412 = vmatprep.mubr.f32.mxu0 0.0
    %1413 = vmatmul.mubr.f32.gmra.mrb[0].mxu0 %v1155
    %v1414 = vpop.f32.mrb[0].mxu0
    %v1415 = vadd.f32 %v1148, %v1414
    %v1416 = vpop.f32.mrb[0].mxu0
    %1417 = vmatprep.mubr.f32.mxu0 0.0
    %1418 = vmatmul.mubr.f32.gmra.mrb[0].mxu0 %v1158
    %v1419 = vpop.f32.mrb[0].mxu0
    %v1420 = vadd.f32 %v1148, %v1419
    %v1421 = vpop.f32.mrb[0].mxu0
    %1422 = vmatprep.mubr.f32.mxu0 0.0
    %1423 = vmatmul.mubr.f32.gmra.mrb[0].mxu0 %v1161
    %v1424 = vpop.f32.mrb[0].mxu0
    %v1425 = vadd.f32 %v1148, %v1424
    %v1426 = vpop.f32.mrb[0].mxu0
    %1427 = vmatprep.mubr.f32.mxu0 0.0
    %1428 = vmatmul.mubr.f32.gmra.mrb[0].mxu0 %v1164
    %v1429 = vpop.f32.mrb[0].mxu0
    %v1430 = vadd.f32 %v1148, %v1429
    %v1431 = vpop.f32.mrb[0].mxu0
    %1432 = vmatprep.mubr.f32.mxu0 0.0
    %1433 = vmatmul.mubr.f32.gmra.mrb[0].mxu0 %v1167
    %v1434 = vpop.f32.mrb[0].mxu0
    %v1435 = vadd.f32 %v1148, %v1434
    %v1436 = vpop.f32.mrb[0].mxu0
    %1437 = vmatprep.mubr.f32.mxu0 0.0
    %1438 = vmatmul.mubr.f32.gmra.mrb[0].mxu0 %v1170
    %v1439 = vpop.f32.mrb[0].mxu0
    %v1440 = vadd.f32 %v1148, %v1439
    %v1441 = vpop.f32.mrb[0].mxu0
    %1442 = vmatprep.mubr.f32.mxu0 0.0
    %1443 = vmatmul.mubr.f32.gmra.mrb[0].mxu0 %v1173
    %v1444 = vpop.f32.mrb[0].mxu0
    %v1445 = vadd.f32 %v1148, %v1444
    %v1446 = vpop.f32.mrb[0].mxu0
    %1447 = vmatprep.mubr.f32.mxu0 0.0
    %1448 = vmatmul.mubr.f32.gmra.mrb[0].mxu0 %v1176
    %v1449 = vpop.f32.mrb[0].mxu0
    %v1450 = vadd.f32 %v1148, %v1449
    %v1451 = vpop.f32.mrb[0].mxu0
    %1452 = vmatprep.mubr.f32.mxu0 0.0
    %1453 = vmatmul.mubr.f32.gmra.mrb[0].mxu0 %v1179
    %v1454 = vpop.f32.mrb[0].mxu0
    %v1455 = vadd.f32 %v1148, %v1454
    %v1456 = vpop.f32.mrb[0].mxu0
    %1457 = vmatprep.mubr.f32.mxu0 0.0
    %1458 = vmatmul.mubr.f32.gmra.mrb[0].mxu0 %v1182
    %v1459 = vpop.f32.mrb[0].mxu0
    %v1460 = vadd.f32 %v1148, %v1459
    %v1461 = vpop.f32.mrb[0].mxu0
    %1462 = vmatprep.mubr.f32.mxu0 0.0
    %1463 = vmatmul.mubr.f32.gmra.mrb[0].mxu0 %v1185
    %v1464 = vpop.f32.mrb[0].mxu0
    %v1465 = vadd.f32 %v1148, %v1464
    %v1466 = vpop.f32.mrb[0].mxu0
    %1467 = vmatprep.mubr.f32.mxu0 0.0
    %1468 = vmatmul.mubr.f32.gmra.mrb[0].mxu0 %v1188
    %v1469 = vpop.f32.mrb[0].mxu0
    %v1470 = vadd.f32 %v1148, %v1469
    %v1471 = vpop.f32.mrb[0].mxu0
    %1472 = vmatprep.mubr.f32.mxu0 0.0
    %1473 = vmatmul.mubr.f32.gmra.mrb[0].mxu0 %v1191
    %v1474 = vpop.f32.mrb[0].mxu0
    %v1475 = vadd.f32 %v1148, %v1474
    %v1476 = vpop.f32.mrb[0].mxu0
    %1477 = vmatprep.mubr.f32.mxu0 0.0
    %1478 = vmatmul.mubr.f32.gmra.mrb[0].mxu0 %v1194
    %v1479 = vpop.f32.mrb[0].mxu0
    %v1480 = vadd.f32 %v1148, %v1479
    %v1481 = vpop.f32.mrb[0].mxu0
    %1482 = vmatprep.mubr.f32.mxu0 0.0
    %1483 = vmatmul.mubr.f32.gmra.mrb[0].mxu0 %v1197
    %v1484 = vpop.f32.mrb[0].mxu0
    %v1485 = vadd.f32 %v1148, %v1484
    %v1486 = vpop.f32.mrb[0].mxu0
    %1487 = vmatprep.mubr.f32.mxu0 0.0
    %1488 = vmatmul.mubr.f32.gmra.mrb[0].mxu0 %v1200
    %v1489 = vpop.f32.mrb[0].mxu0
    %v1490 = vadd.f32 %v1148, %v1489
    %v1491 = vpop.f32.mrb[0].mxu0
    %1492 = vmatprep.mubr.f32.mxu0 0.0
    %1493 = vmatmul.mubr.f32.gmra.mrb[0].mxu0 %v1203
    %v1494 = vpop.f32.mrb[0].mxu0
    %v1495 = vadd.f32 %v1148, %v1494
    %v1496 = vpop.f32.mrb[0].mxu0
    %1497 = vmatprep.mubr.f32.mxu0 0.0
    %1498 = vmatmul.mubr.f32.gmra.mrb[0].mxu0 %v1206
    %v1499 = vpop.f32.mrb[0].mxu0
    %v1500 = vadd.f32 %v1148, %v1499
    %v1501 = vpop.f32.mrb[0].mxu0
    %1502 = vmatprep.mubr.f32.mxu0 0.0
    %1503 = vmatmul.mubr.f32.gmra.mrb[0].mxu0 %v1209
    %v1504 = vpop.f32.mrb[0].mxu0
    %v1505 = vadd.f32 %v1148, %v1504
    %v1506 = vpop.f32.mrb[0].mxu0
    %1507 = vmatprep.mubr.f32.mxu0 0.0
    %1508 = vmatmul.mubr.f32.gmra.mrb[0].mxu0 %v1212
    %v1509 = vpop.f32.mrb[0].mxu0
    %v1510 = vadd.f32 %v1148, %v1509
    %v1511 = vpop.f32.mrb[0].mxu0
    %1512 = vmatprep.mubr.f32.mxu0 0.0
    %1513 = vmatmul.mubr.f32.gmra.mrb[0].mxu0 %v1215
    %v1514 = vpop.f32.mrb[0].mxu0
    %v1515 = vadd.f32 %v1148, %v1514
    %v1516 = vpop.f32.mrb[0].mxu0
    %1517 = vmatprep.mubr.f32.mxu0 0.0
    %1518 = vmatmul.mubr.f32.gmra.mrb[0].mxu0 %v1218
    %v1519 = vpop.f32.mrb[0].mxu0
    %v1520 = vadd.f32 %v1148, %v1519
    %v1521 = vpop.f32.mrb[0].mxu0
    %1522 = vmatprep.mubr.f32.mxu0 0.0
    %1523 = vmatmul.mubr.f32.gmra.mrb[0].mxu0 %v1221
    %v1524 = vpop.f32.mrb[0].mxu0
    %v1525 = vadd.f32 %v1148, %v1524
    %v1526 = vpop.f32.mrb[0].mxu0
    %1527 = vmatprep.mubr.f32.mxu0 0.0
    %1528 = vmatmul.mubr.f32.gmra.mrb[0].mxu0 %v1224
    %v1529 = vpop.f32.mrb[0].mxu0
    %v1530 = vadd.f32 %v1148, %v1529
    %v1531 = vpop.f32.mrb[0].mxu0
    %1532 = vmatprep.mubr.f32.mxu0 0.0
    %1533 = vmatmul.mubr.f32.gmra.mrb[0].mxu0 %v1227
    %v1534 = vpop.f32.mrb[0].mxu0
    %v1535 = vadd.f32 %v1148, %v1534
    %v1536 = vpop.f32.mrb[0].mxu0
    %1537 = vmatprep.mubr.f32.mxu0 0.0
    %1538 = vmatmul.mubr.f32.gmra.mrb[0].mxu0 %v1230
    %v1539 = vpop.f32.mrb[0].mxu0
    %v1540 = vadd.f32 %v1148, %v1539
    %v1541 = vpop.f32.mrb[0].mxu0
    %1542 = vmatprep.mubr.f32.mxu0 0.0
    %1543 = vmatmul.mubr.f32.gmra.mrb[0].mxu0 %v1233
    %v1544 = vpop.f32.mrb[0].mxu0
    %v1545 = vadd.f32 %v1148, %v1544
    %v1546 = vpop.f32.mrb[0].mxu0
    %1547 = vmatprep.mubr.f32.mxu0 0.0
    %1548 = vmatmul.mubr.f32.gmra.mrb[0].mxu0 %v1236
    %v1549 = vpop.f32.mrb[0].mxu0
    %v1550 = vadd.f32 %v1148, %v1549
    %v1551 = vpop.f32.mrb[0].mxu0
    %1552 = vmatprep.mubr.f32.mxu0 0.0
    %1553 = vmatmul.mubr.f32.gmra.mrb[0].mxu0 %v1239
    %v1554 = vpop.f32.mrb[0].mxu0
    %v1555 = vadd.f32 %v1148, %v1554
    %v1556 = vpop.f32.mrb[0].mxu0
    %1557 = vmatprep.mubr.f32.mxu0 0.0
    %1558 = vmatmul.mubr.f32.gmra.mrb[0].mxu0 %v1242
    %v1559 = vpop.f32.mrb[0].mxu0
    %v1560 = vadd.f32 %v1148, %v1559
    %v1561 = vpop.f32.mrb[0].mxu0
    %1562 = vmatprep.mubr.f32.mxu0 0.0
    %1563 = vmatmul.mubr.f32.gmra.mrb[0].mxu0 %v1245
    %v1564 = vpop.f32.mrb[0].mxu0
    %v1565 = vadd.f32 %v1148, %v1564
    %v1566 = vpop.f32.mrb[0].mxu0
    %1567 = vmatprep.mubr.f32.mxu0 0.0
    %1568 = vmatmul.mubr.f32.gmra.mrb[0].mxu0 %v1248
    %v1569 = vpop.f32.mrb[0].mxu0
    %v1570 = vadd.f32 %v1148, %v1569
    %v1571 = vpop.f32.mrb[0].mxu0
    %1572 = vmatprep.mubr.f32.mxu0 0.0
    %1573 = vmatmul.mubr.f32.gmra.mrb[0].mxu0 %v1251
    %v1574 = vpop.f32.mrb[0].mxu0
    %v1575 = vadd.f32 %v1148, %v1574
    %v1576 = vpop.f32.mrb[0].mxu0
    %1577 = vmatprep.mubr.f32.mxu0 0.0
    %1578 = vmatmul.mubr.f32.gmra.mrb[0].mxu0 %v1254
    %v1579 = vpop.f32.mrb[0].mxu0
    %v1580 = vadd.f32 %v1148, %v1579
    %v1581 = vpop.f32.mrb[0].mxu0
    %1582 = vmatprep.mubr.f32.mxu0 0.0
    %1583 = vmatmul.mubr.f32.gmra.mrb[0].mxu0 %v1257
    %v1584 = vpop.f32.mrb[0].mxu0
    %v1585 = vadd.f32 %v1148, %v1584
    %v1586 = vpop.f32.mrb[0].mxu0
    %1587 = vmatprep.mubr.f32.mxu0 0.0
    %1588 = vmatmul.mubr.f32.gmra.mrb[0].mxu0 %v1260
    %v1589 = vpop.f32.mrb[0].mxu0
    %v1590 = vadd.f32 %v1148, %v1589
    %v1591 = vpop.f32.mrb[0].mxu0
    %1592 = vmatprep.mubr.f32.mxu0 0.0
    %1593 = vmatmul.mubr.f32.gmra.mrb[0].mxu0 %v1263
    %v1594 = vpop.f32.mrb[0].mxu0
    %v1595 = vadd.f32 %v1148, %v1594
    %v1596 = vpop.f32.mrb[0].mxu0
    %1597 = vmatprep.mubr.f32.mxu0 0.0
    %1598 = vmatmul.mubr.f32.gmra.mrb[0].mxu0 %v1266
    %v1599 = vpop.f32.mrb[0].mxu0
    %v1600 = vadd.f32 %v1148, %v1599
    %v1601 = vpop.f32.mrb[0].mxu0
    %1602 = vmatprep.mubr.f32.mxu0 0.0
    %1603 = vmatmul.mubr.f32.gmra.mrb[0].mxu0 %v1269
    %v1604 = vpop.f32.mrb[0].mxu0
    %v1605 = vadd.f32 %v1148, %v1604
    %v1606 = vpop.f32.mrb[0].mxu0
    %1607 = vmatprep.mubr.f32.mxu0 0.0
    %1608 = vmatmul.mubr.f32.gmra.mrb[0].mxu0 %v1272
    %v1609 = vpop.f32.mrb[0].mxu0
    %v1610 = vadd.f32 %v1148, %v1609
    %v1611 = vpop.f32.mrb[0].mxu0
    %1612 = vmatprep.mubr.f32.mxu0 0.0
    %1613 = vmatmul.mubr.f32.gmra.mrb[0].mxu0 %v1275
    %v1614 = vpop.f32.mrb[0].mxu0
    %v1615 = vadd.f32 %v1148, %v1614
    %v1616 = vpop.f32.mrb[0].mxu0
    %1617 = vmatprep.mubr.f32.mxu0 0.0
    %1618 = vmatmul.mubr.f32.gmra.mrb[0].mxu0 %v1278
    %v1619 = vpop.f32.mrb[0].mxu0
    %v1620 = vadd.f32 %v1148, %v1619
    %v1621 = vpop.f32.mrb[0].mxu0
    %1622 = vmatprep.mubr.f32.mxu0 0.0
    %1623 = vmatmul.mubr.f32.gmra.mrb[0].mxu0 %v1281
    %v1624 = vpop.f32.mrb[0].mxu0
    %v1625 = vadd.f32 %v1148, %v1624
    %v1626 = vpop.f32.mrb[0].mxu0
    %1627 = vmatprep.mubr.f32.mxu0 0.0
    %1628 = vmatmul.mubr.f32.gmra.mrb[0].mxu0 %v1284
    %v1629 = vpop.f32.mrb[0].mxu0
    %v1630 = vadd.f32 %v1148, %v1629
    %v1631 = vpop.f32.mrb[0].mxu0
    %1632 = vmatprep.mubr.f32.mxu0 0.0
    %1633 = vmatmul.mubr.f32.gmra.mrb[0].mxu0 %v1287
    %v1634 = vpop.f32.mrb[0].mxu0
    %v1635 = vadd.f32 %v1148, %v1634
    %v1636 = vpop.f32.mrb[0].mxu0
    %1637 = vmatprep.mubr.f32.mxu0 0.0
    %1638 = vmatmul.mubr.f32.gmra.mrb[0].mxu0 %v1290
    %v1639 = vpop.f32.mrb[0].mxu0
    %v1640 = vadd.f32 %v1148, %v1639
    %v1641 = vpop.f32.mrb[0].mxu0
    %1642 = vmatprep.mubr.f32.mxu0 0.0
    %1643 = vmatmul.mubr.f32.gmra.mrb[0].mxu0 %v1293
    %v1644 = vpop.f32.mrb[0].mxu0
    %v1645 = vadd.f32 %v1148, %v1644
    %v1646 = vpop.f32.mrb[0].mxu0
    %1647 = vmatprep.mubr.f32.mxu0 0.0
    %1648 = vmatmul.mubr.f32.gmra.mrb[0].mxu0 %v1296
    %v1649 = vpop.f32.mrb[0].mxu0
    %v1650 = vadd.f32 %v1148, %v1649
    %v1651 = vpop.f32.mrb[0].mxu0
    %1652 = vmatprep.mubr.f32.mxu0 0.0
    %1653 = vmatmul.mubr.f32.gmra.mrb[0].mxu0 %v1299
    %v1654 = vpop.f32.mrb[0].mxu0
    %v1655 = vadd.f32 %v1148, %v1654
    %v1656 = vpop.f32.mrb[0].mxu0
    %1657 = vmatprep.mubr.f32.mxu0 0.0
    %1658 = vmatmul.mubr.f32.gmra.mrb[0].mxu0 %v1302
    %v1659 = vpop.f32.mrb[0].mxu0
    %v1660 = vadd.f32 %v1148, %v1659
    %v1661 = vpop.f32.mrb[0].mxu0
    %1662 = vmatprep.mubr.f32.mxu0 0.0
    %1663 = vmatmul.mubr.f32.gmra.mrb[0].mxu0 %v1305
    %v1664 = vpop.f32.mrb[0].mxu0
    %v1665 = vadd.f32 %v1148, %v1664
    %v1666 = vpop.f32.mrb[0].mxu0
    %1667 = vmatprep.mubr.f32.mxu0 0.0
    %1668 = vmatmul.mubr.f32.gmra.mrb[0].mxu0 %v1308
    %v1669 = vpop.f32.mrb[0].mxu0
    %v1670 = vadd.f32 %v1148, %v1669
    %v1671 = vpop.f32.mrb[0].mxu0
    %1672 = vmatprep.mubr.f32.mxu0 0.0
    %1673 = vmatmul.mubr.f32.gmra.mrb[0].mxu0 %v1311
    %v1674 = vpop.f32.mrb[0].mxu0
    %v1675 = vadd.f32 %v1148, %v1674
    %v1676 = vpop.f32.mrb[0].mxu0
    %1677 = vmatprep.mubr.f32.mxu0 0.0
    %1678 = vmatmul.mubr.f32.gmra.mrb[0].mxu0 %v1314
    %v1679 = vpop.f32.mrb[0].mxu0
    %v1680 = vadd.f32 %v1148, %v1679
    %v1681 = vpop.f32.mrb[0].mxu0
    %1682 = vmatprep.mubr.f32.mxu0 0.0
    %1683 = vmatmul.mubr.f32.gmra.mrb[0].mxu0 %v1317
    %v1684 = vpop.f32.mrb[0].mxu0
    %v1685 = vadd.f32 %v1148, %v1684
    %v1686 = vpop.f32.mrb[0].mxu0
    %1687 = vmatprep.mubr.f32.mxu0 0.0
    %1688 = vmatmul.mubr.f32.gmra.mrb[0].mxu0 %v1320
    %v1689 = vpop.f32.mrb[0].mxu0
    %v1690 = vadd.f32 %v1148, %v1689
    %v1691 = vpop.f32.mrb[0].mxu0
    %1692 = vmatprep.mubr.f32.mxu0 0.0
    %1693 = vmatmul.mubr.f32.gmra.mrb[0].mxu0 %v1323
    %v1694 = vpop.f32.mrb[0].mxu0
    %v1695 = vadd.f32 %v1148, %v1694
    %v1696 = vpop.f32.mrb[0].mxu0
    %1697 = vmatprep.mubr.f32.mxu0 0.0
    %1698 = vmatmul.mubr.f32.gmra.mrb[0].mxu0 %v1326
    %v1699 = vpop.f32.mrb[0].mxu0
    %v1700 = vadd.f32 %v1148, %v1699
    %v1701 = vpop.f32.mrb[0].mxu0
    %1702 = vmatprep.mubr.f32.mxu0 0.0
    %1703 = vmatmul.mubr.f32.gmra.mrb[0].mxu0 %v1329
    %v1704 = vpop.f32.mrb[0].mxu0
    %v1705 = vadd.f32 %v1148, %v1704
    %v1706 = vpop.f32.mrb[0].mxu0
    %1707 = vmatprep.mubr.f32.mxu0 0.0
    %1708 = vmatmul.mubr.f32.gmra.mrb[0].mxu0 %v1332
    %v1709 = vpop.f32.mrb[0].mxu0
    %v1710 = vadd.f32 %v1148, %v1709
    %v1711 = vpop.f32.mrb[0].mxu0
    %1712 = vmatprep.mubr.f32.mxu0 0.0
    %1713 = vmatmul.mubr.f32.gmra.mrb[0].mxu0 %v1335
    %v1714 = vpop.f32.mrb[0].mxu0
    %v1715 = vadd.f32 %v1148, %v1714
    %v1716 = vpop.f32.mrb[0].mxu0
    %1717 = vmatprep.mubr.f32.mxu0 0.0
    %1718 = vmatmul.mubr.f32.gmra.mrb[0].mxu0 %v1338
    %v1719 = vpop.f32.mrb[0].mxu0
    %v1720 = vadd.f32 %v1148, %v1719
    %v1721 = vpop.f32.mrb[0].mxu0
    %1722 = vmatprep.mubr.f32.mxu0 0.0
    %1723 = vmatmul.mubr.f32.gmra.mrb[0].mxu0 %v1341
    %v1724 = vpop.f32.mrb[0].mxu0
    %v1725 = vadd.f32 %v1148, %v1724
    %v1726 = vpop.f32.mrb[0].mxu0
    %1727 = vdwg.mxu0
    %v1728 = vld [vmem:[%s0] sm:$0xff]
    %v1729 = vld [vmem:[%s0 + $0x8] sm:$0xff]
    %v1730 = vld [vmem:[%s0 + $0x10] sm:$0xff]
    %v1731 = vld [vmem:[%s0 + $0x18] sm:$0xff]
    %v1732 = vld [vmem:[%s0 + $0x20] sm:$0xff]
    %v1733 = vld [vmem:[%s0 + $0x28] sm:$0xff]
    %v1734 = vld [vmem:[%s0 + $0x30] sm:$0xff]
    %v1735 = vld [vmem:[%s0 + $0x38] sm:$0xff]
    %v1736 = vld [vmem:[%s0 + $0x40] sm:$0xff]
    %v1737 = vld [vmem:[%s0 + $0x48] sm:$0xff]
    %v1738 = vld [vmem:[%s0 + $0x50] sm:$0xff]
    %v1739 = vld [vmem:[%s0 + $0x58] sm:$0xff]
    %v1740 = vld [vmem:[%s0 + $0x60] sm:$0xff]
    %v1741 = vld [vmem:[%s0 + $0x68] sm:$0xff]
    %v1742 = vld [vmem:[%s0 + $0x70] sm:$0xff]
    %v1743 = vld [vmem:[%s0 + $0x78] sm:$0xff]
    %v1744 = vld [vmem:[%s0 + $0x80] sm:$0xff]
    %v1745 = vld [vmem:[%s0 + $0x88] sm:$0xff]
    %v1746 = vld [vmem:[%s0 + $0x90] sm:$0xff]
    %v1747 = vld [vmem:[%s0 + $0x98] sm:$0xff]
    %v1748 = vld [vmem:[%s0 + $0xa0] sm:$0xff]
    %v1749 = vld [vmem:[%s0 + $0xa8] sm:$0xff]
    %v1750 = vld [vmem:[%s0 + $0xb0] sm:$0xff]
    %v1751 = vld [vmem:[%s0 + $0xb8] sm:$0xff]
    %v1752 = vld [vmem:[%s0 + $0xc0] sm:$0xff]
    %v1753 = vld [vmem:[%s0 + $0xc8] sm:$0xff]
    %v1754 = vld [vmem:[%s0 + $0xd0] sm:$0xff]
    %v1755 = vld [vmem:[%s0 + $0xd8] sm:$0xff]
    %v1756 = vld [vmem:[%s0 + $0xe0] sm:$0xff]
    %v1757 = vld [vmem:[%s0 + $0xe8] sm:$0xff]
    %v1758 = vld [vmem:[%s0 + $0xf0] sm:$0xff]
    %v1759 = vld [vmem:[%s0 + $0xf8] sm:$0xff]
    %v1760 = vld [vmem:[%s0 + $0x100] sm:$0xff]
    %v1761 = vld [vmem:[%s0 + $0x108] sm:$0xff]
    %v1762 = vld [vmem:[%s0 + $0x110] sm:$0xff]
    %v1763 = vld [vmem:[%s0 + $0x118] sm:$0xff]
    %v1764 = vld [vmem:[%s0 + $0x120] sm:$0xff]
    %v1765 = vld [vmem:[%s0 + $0x128] sm:$0xff]
    %v1766 = vld [vmem:[%s0 + $0x130] sm:$0xff]
    %v1767 = vld [vmem:[%s0 + $0x138] sm:$0xff]
    %v1768 = vld [vmem:[%s0 + $0x140] sm:$0xff]
    %v1769 = vld [vmem:[%s0 + $0x148] sm:$0xff]
    %v1770 = vld [vmem:[%s0 + $0x150] sm:$0xff]
    %v1771 = vld [vmem:[%s0 + $0x158] sm:$0xff]
    %v1772 = vld [vmem:[%s0 + $0x160] sm:$0xff]
    %v1773 = vld [vmem:[%s0 + $0x168] sm:$0xff]
    %v1774 = vld [vmem:[%s0 + $0x170] sm:$0xff]
    %v1775 = vld [vmem:[%s0 + $0x178] sm:$0xff]
    %v1776 = vld [vmem:[%s0 + $0x180] sm:$0xff]
    %v1777 = vld [vmem:[%s0 + $0x188] sm:$0xff]
    %v1778 = vld [vmem:[%s0 + $0x190] sm:$0xff]
    %v1779 = vld [vmem:[%s0 + $0x198] sm:$0xff]
    %v1780 = vld [vmem:[%s0 + $0x1a0] sm:$0xff]
    %v1781 = vld [vmem:[%s0 + $0x1a8] sm:$0xff]
    %v1782 = vld [vmem:[%s0 + $0x1b0] sm:$0xff]
    %v1783 = vld [vmem:[%s0 + $0x1b8] sm:$0xff]
    %v1784 = vld [vmem:[%s0 + $0x1c0] sm:$0xff]
    %v1785 = vld [vmem:[%s0 + $0x1c8] sm:$0xff]
    %v1786 = vld [vmem:[%s0 + $0x1d0] sm:$0xff]
    %v1787 = vld [vmem:[%s0 + $0x1d8] sm:$0xff]
    %v1788 = vld [vmem:[%s0 + $0x1e0] sm:$0xff]
    %v1789 = vld [vmem:[%s0 + $0x1e8] sm:$0xff]
    %v1790 = vld [vmem:[%s0 + $0x1f0] sm:$0xff]
    %v1791 = vld [vmem:[%s0 + $0x1f8] sm:$0xff]
    %v1792 = vld [vmem:[%s6] sm:$0xff]
    %v1793 = vld [vmem:[%s6 + $0x8] sm:$0xff]
    %v1794 = vld [vmem:[%s6 + $0x10] sm:$0xff]
    %v1795 = vld [vmem:[%s6 + $0x18] sm:$0xff]
    %v1796 = vld [vmem:[%s7] sm:$0x1]
    %v1798 = vlaneseq
    %v1799 = vshrl.u32 %v1798, 7
    %v1800 = vsub.s32 0, %v1799
    %v1801 = vrot.slane %v1796, %v1800
    %vm1803 = vcmask 261120
    %v1805 = vsel %vm1803, %v1728, 0
    %v1808 = vsel %vm1803, %v1729, 0
    %v1811 = vsel %vm1803, %v1730, 0
    %v1814 = vsel %vm1803, %v1731, 0
    %v1817 = vsel %vm1803, %v1732, 0
    %v1820 = vsel %vm1803, %v1733, 0
    %v1823 = vsel %vm1803, %v1734, 0
    %v1826 = vsel %vm1803, %v1735, 0
    %v1829 = vsel %vm1803, %v1736, 0
    %v1832 = vsel %vm1803, %v1737, 0
    %v1835 = vsel %vm1803, %v1738, 0
    %v1838 = vsel %vm1803, %v1739, 0
    %v1841 = vsel %vm1803, %v1740, 0
    %v1844 = vsel %vm1803, %v1741, 0
    %v1847 = vsel %vm1803, %v1742, 0
    %v1850 = vsel %vm1803, %v1743, 0
    %v1853 = vsel %vm1803, %v1744, 0
    %v1856 = vsel %vm1803, %v1745, 0
    %v1859 = vsel %vm1803, %v1746, 0
    %v1862 = vsel %vm1803, %v1747, 0
    %v1865 = vsel %vm1803, %v1748, 0
    %v1868 = vsel %vm1803, %v1749, 0
    %v1871 = vsel %vm1803, %v1750, 0
    %v1874 = vsel %vm1803, %v1751, 0
    %v1877 = vsel %vm1803, %v1752, 0
    %v1880 = vsel %vm1803, %v1753, 0
    %v1883 = vsel %vm1803, %v1754, 0
    %v1886 = vsel %vm1803, %v1755, 0
    %v1889 = vsel %vm1803, %v1756, 0
    %v1892 = vsel %vm1803, %v1757, 0
    %v1895 = vsel %vm1803, %v1758, 0
    %v1898 = vsel %vm1803, %v1759, 0
    %v1901 = vsel %vm1803, %v1760, 0
    %v1904 = vsel %vm1803, %v1761, 0
    %v1907 = vsel %vm1803, %v1762, 0
    %v1910 = vsel %vm1803, %v1763, 0
    %v1913 = vsel %vm1803, %v1764, 0
    %v1916 = vsel %vm1803, %v1765, 0
    %v1919 = vsel %vm1803, %v1766, 0
    %v1922 = vsel %vm1803, %v1767, 0
    %v1925 = vsel %vm1803, %v1768, 0
    %v1928 = vsel %vm1803, %v1769, 0
    %v1931 = vsel %vm1803, %v1770, 0
    %v1934 = vsel %vm1803, %v1771, 0
    %v1937 = vsel %vm1803, %v1772, 0
    %v1940 = vsel %vm1803, %v1773, 0
    %v1943 = vsel %vm1803, %v1774, 0
    %v1946 = vsel %vm1803, %v1775, 0
    %v1949 = vsel %vm1803, %v1776, 0
    %v1952 = vsel %vm1803, %v1777, 0
    %v1955 = vsel %vm1803, %v1778, 0
    %v1958 = vsel %vm1803, %v1779, 0
    %v1961 = vsel %vm1803, %v1780, 0
    %v1964 = vsel %vm1803, %v1781, 0
    %v1967 = vsel %vm1803, %v1782, 0
    %v1970 = vsel %vm1803, %v1783, 0
    %v1973 = vsel %vm1803, %v1784, 0
    %v1976 = vsel %vm1803, %v1785, 0
    %v1979 = vsel %vm1803, %v1786, 0
    %v1982 = vsel %vm1803, %v1787, 0
    %v1985 = vsel %vm1803, %v1788, 0
    %v1988 = vsel %vm1803, %v1789, 0
    %v1991 = vsel %vm1803, %v1790, 0
    %v1994 = vsel %vm1803, %v1791, 0
    %1996 = vmatprep.subr.mxu0 0.0
    %1997 = vmatpush1.msra.mxu0 %v1792
    %1998 = vmatprep.subr.mxu0 0.0
    %1999 = vmatpush1.msra.mxu0 %v1793
    %2000 = vmatprep.subr.mxu0 0.0
    %2001 = vmatpush1.msra.mxu0 %v1794
    %2002 = vmatprep.subr.mxu0 0.0
    %2003 = vmatpush1.msra.mxu0 %v1795
    %2004 = vmatprep.subr.mxu0 0.0
    %2005 = vmatpush1.msra.mxu0 0.0
    %2006 = vmatprep.subr.mxu0 0.0
    %2007 = vmatpush1.msra.mxu0 0.0
    %2008 = vmatprep.subr.mxu0 0.0
    %2009 = vmatpush1.msra.mxu0 0.0
    %2010 = vmatprep.subr.mxu0 0.0
    %2011 = vmatpush1.msra.mxu0 0.0
    %2012 = vmatprep.subr.mxu0 0.0
    %2013 = vmatpush1.msra.mxu0 0.0
    %2014 = vmatprep.subr.mxu0 0.0
    %2015 = vmatpush1.msra.mxu0 0.0
    %2016 = vmatprep.subr.mxu0 0.0
    %2017 = vmatpush1.msra.mxu0 0.0
    %2018 = vmatprep.subr.mxu0 0.0
    %2019 = vmatpush1.msra.mxu0 0.0
    %2020 = vmatprep.subr.mxu0 0.0
    %2021 = vmatpush1.msra.mxu0 0.0
    %2022 = vmatprep.subr.mxu0 0.0
    %2023 = vmatpush1.msra.mxu0 0.0
    %2024 = vmatprep.subr.mxu0 0.0
    %2025 = vmatpush1.msra.mxu0 0.0
    %2026 = vmatprep.subr.mxu0 0.0
    %2027 = vmatpush1.msra.mxu0 0.0
    %2028 = vmatprep.subr.mxu0 0.0
    %2029 = vmatpush1.msra.mxu0 0.0
    %2030 = vmatprep.subr.mxu0 0.0
    %2031 = vmatpush1.msra.mxu0 0.0
    %2032 = vmatprep.subr.mxu0 0.0
    %2033 = vmatpush1.msra.mxu0 0.0
    %2034 = vmatprep.subr.mxu0 0.0
    %2035 = vmatpush1.msra.mxu0 0.0
    %2036 = vmatprep.subr.mxu0 0.0
    %2037 = vmatpush1.msra.mxu0 0.0
    %2038 = vmatprep.subr.mxu0 0.0
    %2039 = vmatpush1.msra.mxu0 0.0
    %2040 = vmatprep.subr.mxu0 0.0
    %2041 = vmatpush1.msra.mxu0 0.0
    %2042 = vmatprep.subr.mxu0 0.0
    %2043 = vmatpush1.msra.mxu0 0.0
    %2044 = vmatprep.subr.mxu0 0.0
    %2045 = vmatpush1.msra.mxu0 0.0
    %2046 = vmatprep.subr.mxu0 0.0
    %2047 = vmatpush1.msra.mxu0 0.0
    %2048 = vmatprep.subr.mxu0 0.0
    %2049 = vmatpush1.msra.mxu0 0.0
    %2050 = vmatprep.subr.mxu0 0.0
    %2051 = vmatpush1.msra.mxu0 0.0
    %2052 = vmatprep.subr.mxu0 0.0
    %2053 = vmatpush1.msra.mxu0 0.0
    %2054 = vmatprep.subr.mxu0 0.0
    %2055 = vmatpush1.msra.mxu0 0.0
    %2056 = vmatprep.subr.mxu0 0.0
    %2057 = vmatpush1.msra.mxu0 0.0
    %2058 = vmatprep.subr.mxu0 0.0
    %2059 = vmatpush1.msra.mxu0 0.0
    %2060 = vmatprep.mubr.f32.mxu0 0.0
    %2061 = vmatmul.mubr.f32.gmra.mrb[0].mxu0 %v1805
    %v2062 = vpop.f32.mrb[0].mxu0
    %v2063 = vadd.f32 %v1801, %v2062
    %v2064 = vpop.f32.mrb[0].mxu0
    %2065 = vmatprep.mubr.f32.mxu0 0.0
    %2066 = vmatmul.mubr.f32.gmra.mrb[0].mxu0 %v1808
    %v2067 = vpop.f32.mrb[0].mxu0
    %v2068 = vadd.f32 %v1801, %v2067
    %v2069 = vpop.f32.mrb[0].mxu0
    %2070 = vmatprep.mubr.f32.mxu0 0.0
    %2071 = vmatmul.mubr.f32.gmra.mrb[0].mxu0 %v1811
    %v2072 = vpop.f32.mrb[0].mxu0
    %v2073 = vadd.f32 %v1801, %v2072
    %v2074 = vpop.f32.mrb[0].mxu0
    %2075 = vmatprep.mubr.f32.mxu0 0.0
    %2076 = vmatmul.mubr.f32.gmra.mrb[0].mxu0 %v1814
    %v2077 = vpop.f32.mrb[0].mxu0
    %v2078 = vadd.f32 %v1801, %v2077
    %v2079 = vpop.f32.mrb[0].mxu0
    %2080 = vmatprep.mubr.f32.mxu0 0.0
    %2081 = vmatmul.mubr.f32.gmra.mrb[0].mxu0 %v1817
    %v2082 = vpop.f32.mrb[0].mxu0
    %v2083 = vadd.f32 %v1801, %v2082
    %v2084 = vpop.f32.mrb[0].mxu0
    %2085 = vmatprep.mubr.f32.mxu0 0.0
    %2086 = vmatmul.mubr.f32.gmra.mrb[0].mxu0 %v1820
    %v2087 = vpop.f32.mrb[0].mxu0
    %v2088 = vadd.f32 %v1801, %v2087
    %v2089 = vpop.f32.mrb[0].mxu0
    %2090 = vmatprep.mubr.f32.mxu0 0.0
    %2091 = vmatmul.mubr.f32.gmra.mrb[0].mxu0 %v1823
    %v2092 = vpop.f32.mrb[0].mxu0
    %v2093 = vadd.f32 %v1801, %v2092
    %v2094 = vpop.f32.mrb[0].mxu0
    %2095 = vmatprep.mubr.f32.mxu0 0.0
    %2096 = vmatmul.mubr.f32.gmra.mrb[0].mxu0 %v1826
    %v2097 = vpop.f32.mrb[0].mxu0
    %v2098 = vadd.f32 %v1801, %v2097
    %v2099 = vpop.f32.mrb[0].mxu0
    %2100 = vmatprep.mubr.f32.mxu0 0.0
    %2101 = vmatmul.mubr.f32.gmra.mrb[0].mxu0 %v1829
    %v2102 = vpop.f32.mrb[0].mxu0
    %v2103 = vadd.f32 %v1801, %v2102
    %v2104 = vpop.f32.mrb[0].mxu0
    %2105 = vmatprep.mubr.f32.mxu0 0.0
    %2106 = vmatmul.mubr.f32.gmra.mrb[0].mxu0 %v1832
    %v2107 = vpop.f32.mrb[0].mxu0
    %v2108 = vadd.f32 %v1801, %v2107
    %v2109 = vpop.f32.mrb[0].mxu0
    %2110 = vmatprep.mubr.f32.mxu0 0.0
    %2111 = vmatmul.mubr.f32.gmra.mrb[0].mxu0 %v1835
    %v2112 = vpop.f32.mrb[0].mxu0
    %v2113 = vadd.f32 %v1801, %v2112
    %v2114 = vpop.f32.mrb[0].mxu0
    %2115 = vmatprep.mubr.f32.mxu0 0.0
    %2116 = vmatmul.mubr.f32.gmra.mrb[0].mxu0 %v1838
    %v2117 = vpop.f32.mrb[0].mxu0
    %v2118 = vadd.f32 %v1801, %v2117
    %v2119 = vpop.f32.mrb[0].mxu0
    %2120 = vmatprep.mubr.f32.mxu0 0.0
    %2121 = vmatmul.mubr.f32.gmra.mrb[0].mxu0 %v1841
    %v2122 = vpop.f32.mrb[0].mxu0
    %v2123 = vadd.f32 %v1801, %v2122
    %v2124 = vpop.f32.mrb[0].mxu0
    %2125 = vmatprep.mubr.f32.mxu0 0.0
    %2126 = vmatmul.mubr.f32.gmra.mrb[0].mxu0 %v1844
    %v2127 = vpop.f32.mrb[0].mxu0
    %v2128 = vadd.f32 %v1801, %v2127
    %v2129 = vpop.f32.mrb[0].mxu0
    %2130 = vmatprep.mubr.f32.mxu0 0.0
    %2131 = vmatmul.mubr.f32.gmra.mrb[0].mxu0 %v1847
    %v2132 = vpop.f32.mrb[0].mxu0
    %v2133 = vadd.f32 %v1801, %v2132
    %v2134 = vpop.f32.mrb[0].mxu0
    %2135 = vmatprep.mubr.f32.mxu0 0.0
    %2136 = vmatmul.mubr.f32.gmra.mrb[0].mxu0 %v1850
    %v2137 = vpop.f32.mrb[0].mxu0
    %v2138 = vadd.f32 %v1801, %v2137
    %v2139 = vpop.f32.mrb[0].mxu0
    %2140 = vmatprep.mubr.f32.mxu0 0.0
    %2141 = vmatmul.mubr.f32.gmra.mrb[0].mxu0 %v1853
    %v2142 = vpop.f32.mrb[0].mxu0
    %v2143 = vadd.f32 %v1801, %v2142
    %v2144 = vpop.f32.mrb[0].mxu0
    %2145 = vmatprep.mubr.f32.mxu0 0.0
    %2146 = vmatmul.mubr.f32.gmra.mrb[0].mxu0 %v1856
    %v2147 = vpop.f32.mrb[0].mxu0
    %v2148 = vadd.f32 %v1801, %v2147
    %v2149 = vpop.f32.mrb[0].mxu0
    %2150 = vmatprep.mubr.f32.mxu0 0.0
    %2151 = vmatmul.mubr.f32.gmra.mrb[0].mxu0 %v1859
    %v2152 = vpop.f32.mrb[0].mxu0
    %v2153 = vadd.f32 %v1801, %v2152
    %v2154 = vpop.f32.mrb[0].mxu0
    %2155 = vmatprep.mubr.f32.mxu0 0.0
    %2156 = vmatmul.mubr.f32.gmra.mrb[0].mxu0 %v1862
    %v2157 = vpop.f32.mrb[0].mxu0
    %v2158 = vadd.f32 %v1801, %v2157
    %v2159 = vpop.f32.mrb[0].mxu0
    %2160 = vmatprep.mubr.f32.mxu0 0.0
    %2161 = vmatmul.mubr.f32.gmra.mrb[0].mxu0 %v1865
    %v2162 = vpop.f32.mrb[0].mxu0
    %v2163 = vadd.f32 %v1801, %v2162
    %v2164 = vpop.f32.mrb[0].mxu0
    %2165 = vmatprep.mubr.f32.mxu0 0.0
    %2166 = vmatmul.mubr.f32.gmra.mrb[0].mxu0 %v1868
    %v2167 = vpop.f32.mrb[0].mxu0
    %v2168 = vadd.f32 %v1801, %v2167
    %v2169 = vpop.f32.mrb[0].mxu0
    %2170 = vmatprep.mubr.f32.mxu0 0.0
    %2171 = vmatmul.mubr.f32.gmra.mrb[0].mxu0 %v1871
    %v2172 = vpop.f32.mrb[0].mxu0
    %v2173 = vadd.f32 %v1801, %v2172
    %v2174 = vpop.f32.mrb[0].mxu0
    %2175 = vmatprep.mubr.f32.mxu0 0.0
    %2176 = vmatmul.mubr.f32.gmra.mrb[0].mxu0 %v1874
    %v2177 = vpop.f32.mrb[0].mxu0
    %v2178 = vadd.f32 %v1801, %v2177
    %v2179 = vpop.f32.mrb[0].mxu0
    %2180 = vmatprep.mubr.f32.mxu0 0.0
    %2181 = vmatmul.mubr.f32.gmra.mrb[0].mxu0 %v1877
    %v2182 = vpop.f32.mrb[0].mxu0
    %v2183 = vadd.f32 %v1801, %v2182
    %v2184 = vpop.f32.mrb[0].mxu0
    %2185 = vmatprep.mubr.f32.mxu0 0.0
    %2186 = vmatmul.mubr.f32.gmra.mrb[0].mxu0 %v1880
    %v2187 = vpop.f32.mrb[0].mxu0
    %v2188 = vadd.f32 %v1801, %v2187
    %v2189 = vpop.f32.mrb[0].mxu0
    %2190 = vmatprep.mubr.f32.mxu0 0.0
    %2191 = vmatmul.mubr.f32.gmra.mrb[0].mxu0 %v1883
    %v2192 = vpop.f32.mrb[0].mxu0
    %v2193 = vadd.f32 %v1801, %v2192
    %v2194 = vpop.f32.mrb[0].mxu0
    %2195 = vmatprep.mubr.f32.mxu0 0.0
    %2196 = vmatmul.mubr.f32.gmra.mrb[0].mxu0 %v1886
    %v2197 = vpop.f32.mrb[0].mxu0
    %v2198 = vadd.f32 %v1801, %v2197
    %v2199 = vpop.f32.mrb[0].mxu0
    %2200 = vmatprep.mubr.f32.mxu0 0.0
    %2201 = vmatmul.mubr.f32.gmra.mrb[0].mxu0 %v1889
    %v2202 = vpop.f32.mrb[0].mxu0
    %v2203 = vadd.f32 %v1801, %v2202
    %v2204 = vpop.f32.mrb[0].mxu0
    %2205 = vmatprep.mubr.f32.mxu0 0.0
    %2206 = vmatmul.mubr.f32.gmra.mrb[0].mxu0 %v1892
    %v2207 = vpop.f32.mrb[0].mxu0
    %v2208 = vadd.f32 %v1801, %v2207
    %v2209 = vpop.f32.mrb[0].mxu0
    %2210 = vmatprep.mubr.f32.mxu0 0.0
    %2211 = vmatmul.mubr.f32.gmra.mrb[0].mxu0 %v1895
    %v2212 = vpop.f32.mrb[0].mxu0
    %v2213 = vadd.f32 %v1801, %v2212
    %v2214 = vpop.f32.mrb[0].mxu0
    %2215 = vmatprep.mubr.f32.mxu0 0.0
    %2216 = vmatmul.mubr.f32.gmra.mrb[0].mxu0 %v1898
    %v2217 = vpop.f32.mrb[0].mxu0
    %v2218 = vadd.f32 %v1801, %v2217
    %v2219 = vpop.f32.mrb[0].mxu0
    %2220 = vmatprep.mubr.f32.mxu0 0.0
    %2221 = vmatmul.mubr.f32.gmra.mrb[0].mxu0 %v1901
    %v2222 = vpop.f32.mrb[0].mxu0
    %v2223 = vadd.f32 %v1801, %v2222
    %v2224 = vpop.f32.mrb[0].mxu0
    %2225 = vmatprep.mubr.f32.mxu0 0.0
    %2226 = vmatmul.mubr.f32.gmra.mrb[0].mxu0 %v1904
    %v2227 = vpop.f32.mrb[0].mxu0
    %v2228 = vadd.f32 %v1801, %v2227
    %v2229 = vpop.f32.mrb[0].mxu0
    %2230 = vmatprep.mubr.f32.mxu0 0.0
    %2231 = vmatmul.mubr.f32.gmra.mrb[0].mxu0 %v1907
    %v2232 = vpop.f32.mrb[0].mxu0
    %v2233 = vadd.f32 %v1801, %v2232
    %v2234 = vpop.f32.mrb[0].mxu0
    %2235 = vmatprep.mubr.f32.mxu0 0.0
    %2236 = vmatmul.mubr.f32.gmra.mrb[0].mxu0 %v1910
    %v2237 = vpop.f32.mrb[0].mxu0
    %v2238 = vadd.f32 %v1801, %v2237
    %v2239 = vpop.f32.mrb[0].mxu0
    %2240 = vmatprep.mubr.f32.mxu0 0.0
    %2241 = vmatmul.mubr.f32.gmra.mrb[0].mxu0 %v1913
    %v2242 = vpop.f32.mrb[0].mxu0
    %v2243 = vadd.f32 %v1801, %v2242
    %v2244 = vpop.f32.mrb[0].mxu0
    %2245 = vmatprep.mubr.f32.mxu0 0.0
    %2246 = vmatmul.mubr.f32.gmra.mrb[0].mxu0 %v1916
    %v2247 = vpop.f32.mrb[0].mxu0
    %v2248 = vadd.f32 %v1801, %v2247
    %v2249 = vpop.f32.mrb[0].mxu0
    %2250 = vmatprep.mubr.f32.mxu0 0.0
    %2251 = vmatmul.mubr.f32.gmra.mrb[0].mxu0 %v1919
    %v2252 = vpop.f32.mrb[0].mxu0
    %v2253 = vadd.f32 %v1801, %v2252
    %v2254 = vpop.f32.mrb[0].mxu0
    %2255 = vmatprep.mubr.f32.mxu0 0.0
    %2256 = vmatmul.mubr.f32.gmra.mrb[0].mxu0 %v1922
    %v2257 = vpop.f32.mrb[0].mxu0
    %v2258 = vadd.f32 %v1801, %v2257
    %v2259 = vpop.f32.mrb[0].mxu0
    %2260 = vmatprep.mubr.f32.mxu0 0.0
    %2261 = vmatmul.mubr.f32.gmra.mrb[0].mxu0 %v1925
    %v2262 = vpop.f32.mrb[0].mxu0
    %v2263 = vadd.f32 %v1801, %v2262
    %v2264 = vpop.f32.mrb[0].mxu0
    %2265 = vmatprep.mubr.f32.mxu0 0.0
    %2266 = vmatmul.mubr.f32.gmra.mrb[0].mxu0 %v1928
    %v2267 = vpop.f32.mrb[0].mxu0
    %v2268 = vadd.f32 %v1801, %v2267
    %v2269 = vpop.f32.mrb[0].mxu0
    %2270 = vmatprep.mubr.f32.mxu0 0.0
    %2271 = vmatmul.mubr.f32.gmra.mrb[0].mxu0 %v1931
    %v2272 = vpop.f32.mrb[0].mxu0
    %v2273 = vadd.f32 %v1801, %v2272
    %v2274 = vpop.f32.mrb[0].mxu0
    %2275 = vmatprep.mubr.f32.mxu0 0.0
    %2276 = vmatmul.mubr.f32.gmra.mrb[0].mxu0 %v1934
    %v2277 = vpop.f32.mrb[0].mxu0
    %v2278 = vadd.f32 %v1801, %v2277
    %v2279 = vpop.f32.mrb[0].mxu0
    %2280 = vmatprep.mubr.f32.mxu0 0.0
    %2281 = vmatmul.mubr.f32.gmra.mrb[0].mxu0 %v1937
    %v2282 = vpop.f32.mrb[0].mxu0
    %v2283 = vadd.f32 %v1801, %v2282
    %v2284 = vpop.f32.mrb[0].mxu0
    %2285 = vmatprep.mubr.f32.mxu0 0.0
    %2286 = vmatmul.mubr.f32.gmra.mrb[0].mxu0 %v1940
    %v2287 = vpop.f32.mrb[0].mxu0
    %v2288 = vadd.f32 %v1801, %v2287
    %v2289 = vpop.f32.mrb[0].mxu0
    %2290 = vmatprep.mubr.f32.mxu0 0.0
    %2291 = vmatmul.mubr.f32.gmra.mrb[0].mxu0 %v1943
    %v2292 = vpop.f32.mrb[0].mxu0
    %v2293 = vadd.f32 %v1801, %v2292
    %v2294 = vpop.f32.mrb[0].mxu0
    %2295 = vmatprep.mubr.f32.mxu0 0.0
    %2296 = vmatmul.mubr.f32.gmra.mrb[0].mxu0 %v1946
    %v2297 = vpop.f32.mrb[0].mxu0
    %v2298 = vadd.f32 %v1801, %v2297
    %v2299 = vpop.f32.mrb[0].mxu0
    %2300 = vmatprep.mubr.f32.mxu0 0.0
    %2301 = vmatmul.mubr.f32.gmra.mrb[0].mxu0 %v1949
    %v2302 = vpop.f32.mrb[0].mxu0
    %v2303 = vadd.f32 %v1801, %v2302
    %v2304 = vpop.f32.mrb[0].mxu0
    %2305 = vmatprep.mubr.f32.mxu0 0.0
    %2306 = vmatmul.mubr.f32.gmra.mrb[0].mxu0 %v1952
    %v2307 = vpop.f32.mrb[0].mxu0
    %v2308 = vadd.f32 %v1801, %v2307
    %v2309 = vpop.f32.mrb[0].mxu0
    %2310 = vmatprep.mubr.f32.mxu0 0.0
    %2311 = vmatmul.mubr.f32.gmra.mrb[0].mxu0 %v1955
    %v2312 = vpop.f32.mrb[0].mxu0
    %v2313 = vadd.f32 %v1801, %v2312
    %v2314 = vpop.f32.mrb[0].mxu0
    %2315 = vmatprep.mubr.f32.mxu0 0.0
    %2316 = vmatmul.mubr.f32.gmra.mrb[0].mxu0 %v1958
    %v2317 = vpop.f32.mrb[0].mxu0
    %v2318 = vadd.f32 %v1801, %v2317
    %v2319 = vpop.f32.mrb[0].mxu0
    %2320 = vmatprep.mubr.f32.mxu0 0.0
    %2321 = vmatmul.mubr.f32.gmra.mrb[0].mxu0 %v1961
    %v2322 = vpop.f32.mrb[0].mxu0
    %v2323 = vadd.f32 %v1801, %v2322
    %v2324 = vpop.f32.mrb[0].mxu0
    %2325 = vmatprep.mubr.f32.mxu0 0.0
    %2326 = vmatmul.mubr.f32.gmra.mrb[0].mxu0 %v1964
    %v2327 = vpop.f32.mrb[0].mxu0
    %v2328 = vadd.f32 %v1801, %v2327
    %v2329 = vpop.f32.mrb[0].mxu0
    %2330 = vmatprep.mubr.f32.mxu0 0.0
    %2331 = vmatmul.mubr.f32.gmra.mrb[0].mxu0 %v1967
    %v2332 = vpop.f32.mrb[0].mxu0
    %v2333 = vadd.f32 %v1801, %v2332
    %v2334 = vpop.f32.mrb[0].mxu0
    %2335 = vmatprep.mubr.f32.mxu0 0.0
    %2336 = vmatmul.mubr.f32.gmra.mrb[0].mxu0 %v1970
    %v2337 = vpop.f32.mrb[0].mxu0
    %v2338 = vadd.f32 %v1801, %v2337
    %v2339 = vpop.f32.mrb[0].mxu0
    %2340 = vmatprep.mubr.f32.mxu0 0.0
    %2341 = vmatmul.mubr.f32.gmra.mrb[0].mxu0 %v1973
    %v2342 = vpop.f32.mrb[0].mxu0
    %v2343 = vadd.f32 %v1801, %v2342
    %v2344 = vpop.f32.mrb[0].mxu0
    %2345 = vmatprep.mubr.f32.mxu0 0.0
    %2346 = vmatmul.mubr.f32.gmra.mrb[0].mxu0 %v1976
    %v2347 = vpop.f32.mrb[0].mxu0
    %v2348 = vadd.f32 %v1801, %v2347
    %v2349 = vpop.f32.mrb[0].mxu0
    %2350 = vmatprep.mubr.f32.mxu0 0.0
    %2351 = vmatmul.mubr.f32.gmra.mrb[0].mxu0 %v1979
    %v2352 = vpop.f32.mrb[0].mxu0
    %v2353 = vadd.f32 %v1801, %v2352
    %v2354 = vpop.f32.mrb[0].mxu0
    %2355 = vmatprep.mubr.f32.mxu0 0.0
    %2356 = vmatmul.mubr.f32.gmra.mrb[0].mxu0 %v1982
    %v2357 = vpop.f32.mrb[0].mxu0
    %v2358 = vadd.f32 %v1801, %v2357
    %v2359 = vpop.f32.mrb[0].mxu0
    %2360 = vmatprep.mubr.f32.mxu0 0.0
    %2361 = vmatmul.mubr.f32.gmra.mrb[0].mxu0 %v1985
    %v2362 = vpop.f32.mrb[0].mxu0
    %v2363 = vadd.f32 %v1801, %v2362
    %v2364 = vpop.f32.mrb[0].mxu0
    %2365 = vmatprep.mubr.f32.mxu0 0.0
    %2366 = vmatmul.mubr.f32.gmra.mrb[0].mxu0 %v1988
    %v2367 = vpop.f32.mrb[0].mxu0
    %v2368 = vadd.f32 %v1801, %v2367
    %v2369 = vpop.f32.mrb[0].mxu0
    %2370 = vmatprep.mubr.f32.mxu0 0.0
    %2371 = vmatmul.mubr.f32.gmra.mrb[0].mxu0 %v1991
    %v2372 = vpop.f32.mrb[0].mxu0
    %v2373 = vadd.f32 %v1801, %v2372
    %v2374 = vpop.f32.mrb[0].mxu0
    %2375 = vmatprep.mubr.f32.mxu0 0.0
    %2376 = vmatmul.mubr.f32.gmra.mrb[0].mxu0 %v1994
    %v2377 = vpop.f32.mrb[0].mxu0
    %v2378 = vadd.f32 %v1801, %v2377
    %v2379 = vpop.f32.mrb[0].mxu0
    %2380 = vdwg.mxu0
    %v2381 = vxor.u32 %v2063, 2147483648
    %v2382 = vxor.u32 %v2068, 2147483648
    %v2383 = vxor.u32 %v2073, 2147483648
    %v2384 = vxor.u32 %v2078, 2147483648
    %v2385 = vxor.u32 %v2083, 2147483648
    %v2386 = vxor.u32 %v2088, 2147483648
    %v2387 = vxor.u32 %v2093, 2147483648
    %v2388 = vxor.u32 %v2098, 2147483648
    %v2389 = vxor.u32 %v2103, 2147483648
    %v2390 = vxor.u32 %v2108, 2147483648
    %v2391 = vxor.u32 %v2113, 2147483648
    %v2392 = vxor.u32 %v2118, 2147483648
    %v2393 = vxor.u32 %v2123, 2147483648
    %v2394 = vxor.u32 %v2128, 2147483648
    %v2395 = vxor.u32 %v2133, 2147483648
    %v2396 = vxor.u32 %v2138, 2147483648
    %v2397 = vxor.u32 %v2143, 2147483648
    %v2398 = vxor.u32 %v2148, 2147483648
    %v2399 = vxor.u32 %v2153, 2147483648
    %v2400 = vxor.u32 %v2158, 2147483648
    %v2401 = vxor.u32 %v2163, 2147483648
    %v2402 = vxor.u32 %v2168, 2147483648
    %v2403 = vxor.u32 %v2173, 2147483648
    %v2404 = vxor.u32 %v2178, 2147483648
    %v2405 = vxor.u32 %v2183, 2147483648
    %v2406 = vxor.u32 %v2188, 2147483648
    %v2407 = vxor.u32 %v2193, 2147483648
    %v2408 = vxor.u32 %v2198, 2147483648
    %v2409 = vxor.u32 %v2203, 2147483648
    %v2410 = vxor.u32 %v2208, 2147483648
    %v2411 = vxor.u32 %v2213, 2147483648
    %v2412 = vxor.u32 %v2218, 2147483648
    %v2413 = vxor.u32 %v2223, 2147483648
    %v2414 = vxor.u32 %v2228, 2147483648
    %v2415 = vxor.u32 %v2233, 2147483648
    %v2416 = vxor.u32 %v2238, 2147483648
    %v2417 = vxor.u32 %v2243, 2147483648
    %v2418 = vxor.u32 %v2248, 2147483648
    %v2419 = vxor.u32 %v2253, 2147483648
    %v2420 = vxor.u32 %v2258, 2147483648
    %v2421 = vxor.u32 %v2263, 2147483648
    %v2422 = vxor.u32 %v2268, 2147483648
    %v2423 = vxor.u32 %v2273, 2147483648
    %v2424 = vxor.u32 %v2278, 2147483648
    %v2425 = vxor.u32 %v2283, 2147483648
    %v2426 = vxor.u32 %v2288, 2147483648
    %v2427 = vxor.u32 %v2293, 2147483648
    %v2428 = vxor.u32 %v2298, 2147483648
    %v2429 = vxor.u32 %v2303, 2147483648
    %v2430 = vxor.u32 %v2308, 2147483648
    %v2431 = vxor.u32 %v2313, 2147483648
    %v2432 = vxor.u32 %v2318, 2147483648
    %v2433 = vxor.u32 %v2323, 2147483648
    %v2434 = vxor.u32 %v2328, 2147483648
    %v2435 = vxor.u32 %v2333, 2147483648
    %v2436 = vxor.u32 %v2338, 2147483648
    %v2437 = vxor.u32 %v2343, 2147483648
    %v2438 = vxor.u32 %v2348, 2147483648
    %v2439 = vxor.u32 %v2353, 2147483648
    %v2440 = vxor.u32 %v2358, 2147483648
    %v2441 = vxor.u32 %v2363, 2147483648
    %v2442 = vxor.u32 %v2368, 2147483648
    %v2443 = vxor.u32 %v2373, 2147483648
    %v2444 = vxor.u32 %v2378, 2147483648
    %v2445 = vmul.f32 %v2381, 1.442695
    %v2446 = vpow.pop %v2445
    %v2447 = vmul.f32 %v2382, 1.442695
    %v2448 = vpow.pop %v2447
    %v2449 = vmul.f32 %v2383, 1.442695
    %v2450 = vpow.pop %v2449
    %v2451 = vmul.f32 %v2384, 1.442695
    %v2452 = vpow.pop %v2451
    %v2453 = vmul.f32 %v2385, 1.442695
    %v2454 = vpow.pop %v2453
    %v2455 = vmul.f32 %v2386, 1.442695
    %v2456 = vpow.pop %v2455
    %v2457 = vmul.f32 %v2387, 1.442695
    %v2458 = vpow.pop %v2457
    %v2459 = vmul.f32 %v2388, 1.442695
    %v2460 = vpow.pop %v2459
    %v2461 = vmul.f32 %v2389, 1.442695
    %v2462 = vpow.pop %v2461
    %v2463 = vmul.f32 %v2390, 1.442695
    %v2464 = vpow.pop %v2463
    %v2465 = vmul.f32 %v2391, 1.442695
    %v2466 = vpow.pop %v2465
    %v2467 = vmul.f32 %v2392, 1.442695
    %v2468 = vpow.pop %v2467
    %v2469 = vmul.f32 %v2393, 1.442695
    %v2470 = vpow.pop %v2469
    %v2471 = vmul.f32 %v2394, 1.442695
    %v2472 = vpow.pop %v2471
    %v2473 = vmul.f32 %v2395, 1.442695
    %v2474 = vpow.pop %v2473
    %v2475 = vmul.f32 %v2396, 1.442695
    %v2476 = vpow.pop %v2475
    %v2477 = vmul.f32 %v2397, 1.442695
    %v2478 = vpow.pop %v2477
    %v2479 = vmul.f32 %v2398, 1.442695
    %v2480 = vpow.pop %v2479
    %v2481 = vmul.f32 %v2399, 1.442695
    %v2482 = vpow.pop %v2481
    %v2483 = vmul.f32 %v2400, 1.442695
    %v2484 = vpow.pop %v2483
    %v2485 = vmul.f32 %v2401, 1.442695
    %v2486 = vpow.pop %v2485
    %v2487 = vmul.f32 %v2402, 1.442695
    %v2488 = vpow.pop %v2487
    %v2489 = vmul.f32 %v2403, 1.442695
    %v2490 = vpow.pop %v2489
    %v2491 = vmul.f32 %v2404, 1.442695
    %v2492 = vpow.pop %v2491
    %v2493 = vmul.f32 %v2405, 1.442695
    %v2494 = vpow.pop %v2493
    %v2495 = vmul.f32 %v2406, 1.442695
    %v2496 = vpow.pop %v2495
    %v2497 = vmul.f32 %v2407, 1.442695
    %v2498 = vpow.pop %v2497
    %v2499 = vmul.f32 %v2408, 1.442695
    %v2500 = vpow.pop %v2499
    %v2501 = vmul.f32 %v2409, 1.442695
    %v2502 = vpow.pop %v2501
    %v2503 = vmul.f32 %v2410, 1.442695
    %v2504 = vpow.pop %v2503
    %v2505 = vmul.f32 %v2411, 1.442695
    %v2506 = vpow.pop %v2505
    %v2507 = vmul.f32 %v2412, 1.442695
    %v2508 = vpow.pop %v2507
    %v2509 = vmul.f32 %v2413, 1.442695
    %v2510 = vpow.pop %v2509
    %v2511 = vmul.f32 %v2414, 1.442695
    %v2512 = vpow.pop %v2511
    %v2513 = vmul.f32 %v2415, 1.442695
    %v2514 = vpow.pop %v2513
    %v2515 = vmul.f32 %v2416, 1.442695
    %v2516 = vpow.pop %v2515
    %v2517 = vmul.f32 %v2417, 1.442695
    %v2518 = vpow.pop %v2517
    %v2519 = vmul.f32 %v2418, 1.442695
    %v2520 = vpow.pop %v2519
    %v2521 = vmul.f32 %v2419, 1.442695
    %v2522 = vpow.pop %v2521
    %v2523 = vmul.f32 %v2420, 1.442695
    %v2524 = vpow.pop %v2523
    %v2525 = vmul.f32 %v2421, 1.442695
    %v2526 = vpow.pop %v2525
    %v2527 = vmul.f32 %v2422, 1.442695
    %v2528 = vpow.pop %v2527
    %v2529 = vmul.f32 %v2423, 1.442695
    %v2530 = vpow.pop %v2529
    %v2531 = vmul.f32 %v2424, 1.442695
    %v2532 = vpow.pop %v2531
    %v2533 = vmul.f32 %v2425, 1.442695
    %v2534 = vpow.pop %v2533
    %v2535 = vmul.f32 %v2426, 1.442695
    %v2536 = vpow.pop %v2535
    %v2537 = vmul.f32 %v2427, 1.442695
    %v2538 = vpow.pop %v2537
    %v2539 = vmul.f32 %v2428, 1.442695
    %v2540 = vpow.pop %v2539
    %v2541 = vmul.f32 %v2429, 1.442695
    %v2542 = vpow.pop %v2541
    %v2543 = vmul.f32 %v2430, 1.442695
    %v2544 = vpow.pop %v2543
    %v2545 = vmul.f32 %v2431, 1.442695
    %v2546 = vpow.pop %v2545
    %v2547 = vmul.f32 %v2432, 1.442695
    %v2548 = vpow.pop %v2547
    %v2549 = vmul.f32 %v2433, 1.442695
    %v2550 = vpow.pop %v2549
    %v2551 = vmul.f32 %v2434, 1.442695
    %v2552 = vpow.pop %v2551
    %v2553 = vmul.f32 %v2435, 1.442695
    %v2554 = vpow.pop %v2553
    %v2555 = vmul.f32 %v2436, 1.442695
    %v2556 = vpow.pop %v2555
    %v2557 = vmul.f32 %v2437, 1.442695
    %v2558 = vpow.pop %v2557
    %v2559 = vmul.f32 %v2438, 1.442695
    %v2560 = vpow.pop %v2559
    %v2561 = vmul.f32 %v2439, 1.442695
    %v2562 = vpow.pop %v2561
    %v2563 = vmul.f32 %v2440, 1.442695
    %v2564 = vpow.pop %v2563
    %v2565 = vmul.f32 %v2441, 1.442695
    %v2566 = vpow.pop %v2565
    %v2567 = vmul.f32 %v2442, 1.442695
    %v2568 = vpow.pop %v2567
    %v2569 = vmul.f32 %v2443, 1.442695
    %v2570 = vpow.pop %v2569
    %v2571 = vmul.f32 %v2444, 1.442695
    %v2572 = vpow.pop %v2571
    %v2573 = vadd.f32 %v2446, 1.0
    %v2574 = vadd.f32 %v2448, 1.0
    %v2575 = vadd.f32 %v2450, 1.0
    %v2576 = vadd.f32 %v2452, 1.0
    %v2577 = vadd.f32 %v2454, 1.0
    %v2578 = vadd.f32 %v2456, 1.0
    %v2579 = vadd.f32 %v2458, 1.0
    %v2580 = vadd.f32 %v2460, 1.0
    %v2581 = vadd.f32 %v2462, 1.0
    %v2582 = vadd.f32 %v2464, 1.0
    %v2583 = vadd.f32 %v2466, 1.0
    %v2584 = vadd.f32 %v2468, 1.0
    %v2585 = vadd.f32 %v2470, 1.0
    %v2586 = vadd.f32 %v2472, 1.0
    %v2587 = vadd.f32 %v2474, 1.0
    %v2588 = vadd.f32 %v2476, 1.0
    %v2589 = vadd.f32 %v2478, 1.0
    %v2590 = vadd.f32 %v2480, 1.0
    %v2591 = vadd.f32 %v2482, 1.0
    %v2592 = vadd.f32 %v2484, 1.0
    %v2593 = vadd.f32 %v2486, 1.0
    %v2594 = vadd.f32 %v2488, 1.0
    %v2595 = vadd.f32 %v2490, 1.0
    %v2596 = vadd.f32 %v2492, 1.0
    %v2597 = vadd.f32 %v2494, 1.0
    %v2598 = vadd.f32 %v2496, 1.0
    %v2599 = vadd.f32 %v2498, 1.0
    %v2600 = vadd.f32 %v2500, 1.0
    %v2601 = vadd.f32 %v2502, 1.0
    %v2602 = vadd.f32 %v2504, 1.0
    %v2603 = vadd.f32 %v2506, 1.0
    %v2604 = vadd.f32 %v2508, 1.0
    %v2605 = vadd.f32 %v2510, 1.0
    %v2606 = vadd.f32 %v2512, 1.0
    %v2607 = vadd.f32 %v2514, 1.0
    %v2608 = vadd.f32 %v2516, 1.0
    %v2609 = vadd.f32 %v2518, 1.0
    %v2610 = vadd.f32 %v2520, 1.0
    %v2611 = vadd.f32 %v2522, 1.0
    %v2612 = vadd.f32 %v2524, 1.0
    %v2613 = vadd.f32 %v2526, 1.0
    %v2614 = vadd.f32 %v2528, 1.0
    %v2615 = vadd.f32 %v2530, 1.0
    %v2616 = vadd.f32 %v2532, 1.0
    %v2617 = vadd.f32 %v2534, 1.0
    %v2618 = vadd.f32 %v2536, 1.0
    %v2619 = vadd.f32 %v2538, 1.0
    %v2620 = vadd.f32 %v2540, 1.0
    %v2621 = vadd.f32 %v2542, 1.0
    %v2622 = vadd.f32 %v2544, 1.0
    %v2623 = vadd.f32 %v2546, 1.0
    %v2624 = vadd.f32 %v2548, 1.0
    %v2625 = vadd.f32 %v2550, 1.0
    %v2626 = vadd.f32 %v2552, 1.0
    %v2627 = vadd.f32 %v2554, 1.0
    %v2628 = vadd.f32 %v2556, 1.0
    %v2629 = vadd.f32 %v2558, 1.0
    %v2630 = vadd.f32 %v2560, 1.0
    %v2631 = vadd.f32 %v2562, 1.0
    %v2632 = vadd.f32 %v2564, 1.0
    %v2633 = vadd.f32 %v2566, 1.0
    %v2634 = vadd.f32 %v2568, 1.0
    %v2635 = vadd.f32 %v2570, 1.0
    %v2636 = vadd.f32 %v2572, 1.0
    %v2637 = vrcp.pop %v2573
    %v2638 = vmul.f32 1.0, %v2637
    %v2639 = vrcp.pop %v2574
    %v2640 = vmul.f32 1.0, %v2639
    %v2641 = vrcp.pop %v2575
    %v2642 = vmul.f32 1.0, %v2641
    %v2643 = vrcp.pop %v2576
    %v2644 = vmul.f32 1.0, %v2643
    %v2645 = vrcp.pop %v2577
    %v2646 = vmul.f32 1.0, %v2645
    %v2647 = vrcp.pop %v2578
    %v2648 = vmul.f32 1.0, %v2647
    %v2649 = vrcp.pop %v2579
    %v2650 = vmul.f32 1.0, %v2649
    %v2651 = vrcp.pop %v2580
    %v2652 = vmul.f32 1.0, %v2651
    %v2653 = vrcp.pop %v2581
    %v2654 = vmul.f32 1.0, %v2653
    %v2655 = vrcp.pop %v2582
    %v2656 = vmul.f32 1.0, %v2655
    %v2657 = vrcp.pop %v2583
    %v2658 = vmul.f32 1.0, %v2657
    %v2659 = vrcp.pop %v2584
    %v2660 = vmul.f32 1.0, %v2659
    %v2661 = vrcp.pop %v2585
    %v2662 = vmul.f32 1.0, %v2661
    %v2663 = vrcp.pop %v2586
    %v2664 = vmul.f32 1.0, %v2663
    %v2665 = vrcp.pop %v2587
    %v2666 = vmul.f32 1.0, %v2665
    %v2667 = vrcp.pop %v2588
    %v2668 = vmul.f32 1.0, %v2667
    %v2669 = vrcp.pop %v2589
    %v2670 = vmul.f32 1.0, %v2669
    %v2671 = vrcp.pop %v2590
    %v2672 = vmul.f32 1.0, %v2671
    %v2673 = vrcp.pop %v2591
    %v2674 = vmul.f32 1.0, %v2673
    %v2675 = vrcp.pop %v2592
    %v2676 = vmul.f32 1.0, %v2675
    %v2677 = vrcp.pop %v2593
    %v2678 = vmul.f32 1.0, %v2677
    %v2679 = vrcp.pop %v2594
    %v2680 = vmul.f32 1.0, %v2679
    %v2681 = vrcp.pop %v2595
    %v2682 = vmul.f32 1.0, %v2681
    %v2683 = vrcp.pop %v2596
    %v2684 = vmul.f32 1.0, %v2683
    %v2685 = vrcp.pop %v2597
    %v2686 = vmul.f32 1.0, %v2685
    %v2687 = vrcp.pop %v2598
    %v2688 = vmul.f32 1.0, %v2687
    %v2689 = vrcp.pop %v2599
    %v2690 = vmul.f32 1.0, %v2689
    %v2691 = vrcp.pop %v2600
    %v2692 = vmul.f32 1.0, %v2691
    %v2693 = vrcp.pop %v2601
    %v2694 = vmul.f32 1.0, %v2693
    %v2695 = vrcp.pop %v2602
    %v2696 = vmul.f32 1.0, %v2695
    %v2697 = vrcp.pop %v2603
    %v2698 = vmul.f32 1.0, %v2697
    %v2699 = vrcp.pop %v2604
    %v2700 = vmul.f32 1.0, %v2699
    %v2701 = vrcp.pop %v2605
    %v2702 = vmul.f32 1.0, %v2701
    %v2703 = vrcp.pop %v2606
    %v2704 = vmul.f32 1.0, %v2703
    %v2705 = vrcp.pop %v2607
    %v2706 = vmul.f32 1.0, %v2705
    %v2707 = vrcp.pop %v2608
    %v2708 = vmul.f32 1.0, %v2707
    %v2709 = vrcp.pop %v2609
    %v2710 = vmul.f32 1.0, %v2709
    %v2711 = vrcp.pop %v2610
    %v2712 = vmul.f32 1.0, %v2711
    %v2713 = vrcp.pop %v2611
    %v2714 = vmul.f32 1.0, %v2713
    %v2715 = vrcp.pop %v2612
    %v2716 = vmul.f32 1.0, %v2715
    %v2717 = vrcp.pop %v2613
    %v2718 = vmul.f32 1.0, %v2717
    %v2719 = vrcp.pop %v2614
    %v2720 = vmul.f32 1.0, %v2719
    %v2721 = vrcp.pop %v2615
    %v2722 = vmul.f32 1.0, %v2721
    %v2723 = vrcp.pop %v2616
    %v2724 = vmul.f32 1.0, %v2723
    %v2725 = vrcp.pop %v2617
    %v2726 = vmul.f32 1.0, %v2725
    %v2727 = vrcp.pop %v2618
    %v2728 = vmul.f32 1.0, %v2727
    %v2729 = vrcp.pop %v2619
    %v2730 = vmul.f32 1.0, %v2729
    %v2731 = vrcp.pop %v2620
    %v2732 = vmul.f32 1.0, %v2731
    %v2733 = vrcp.pop %v2621
    %v2734 = vmul.f32 1.0, %v2733
    %v2735 = vrcp.pop %v2622
    %v2736 = vmul.f32 1.0, %v2735
    %v2737 = vrcp.pop %v2623
    %v2738 = vmul.f32 1.0, %v2737
    %v2739 = vrcp.pop %v2624
    %v2740 = vmul.f32 1.0, %v2739
    %v2741 = vrcp.pop %v2625
    %v2742 = vmul.f32 1.0, %v2741
    %v2743 = vrcp.pop %v2626
    %v2744 = vmul.f32 1.0, %v2743
    %v2745 = vrcp.pop %v2627
    %v2746 = vmul.f32 1.0, %v2745
    %v2747 = vrcp.pop %v2628
    %v2748 = vmul.f32 1.0, %v2747
    %v2749 = vrcp.pop %v2629
    %v2750 = vmul.f32 1.0, %v2749
    %v2751 = vrcp.pop %v2630
    %v2752 = vmul.f32 1.0, %v2751
    %v2753 = vrcp.pop %v2631
    %v2754 = vmul.f32 1.0, %v2753
    %v2755 = vrcp.pop %v2632
    %v2756 = vmul.f32 1.0, %v2755
    %v2757 = vrcp.pop %v2633
    %v2758 = vmul.f32 1.0, %v2757
    %v2759 = vrcp.pop %v2634
    %v2760 = vmul.f32 1.0, %v2759
    %v2761 = vrcp.pop %v2635
    %v2762 = vmul.f32 1.0, %v2761
    %v2763 = vrcp.pop %v2636
    %v2764 = vmul.f32 1.0, %v2763
    %v2765 = vmul.f32 %v2063, %v2638
    %v2766 = vmul.f32 %v2068, %v2640
    %v2767 = vmul.f32 %v2073, %v2642
    %v2768 = vmul.f32 %v2078, %v2644
    %v2769 = vmul.f32 %v2083, %v2646
    %v2770 = vmul.f32 %v2088, %v2648
    %v2771 = vmul.f32 %v2093, %v2650
    %v2772 = vmul.f32 %v2098, %v2652
    %v2773 = vmul.f32 %v2103, %v2654
    %v2774 = vmul.f32 %v2108, %v2656
    %v2775 = vmul.f32 %v2113, %v2658
    %v2776 = vmul.f32 %v2118, %v2660
    %v2777 = vmul.f32 %v2123, %v2662
    %v2778 = vmul.f32 %v2128, %v2664
    %v2779 = vmul.f32 %v2133, %v2666
    %v2780 = vmul.f32 %v2138, %v2668
    %v2781 = vmul.f32 %v2143, %v2670
    %v2782 = vmul.f32 %v2148, %v2672
    %v2783 = vmul.f32 %v2153, %v2674
    %v2784 = vmul.f32 %v2158, %v2676
    %v2785 = vmul.f32 %v2163, %v2678
    %v2786 = vmul.f32 %v2168, %v2680
    %v2787 = vmul.f32 %v2173, %v2682
    %v2788 = vmul.f32 %v2178, %v2684
    %v2789 = vmul.f32 %v2183, %v2686
    %v2790 = vmul.f32 %v2188, %v2688
    %v2791 = vmul.f32 %v2193, %v2690
    %v2792 = vmul.f32 %v2198, %v2692
    %v2793 = vmul.f32 %v2203, %v2694
    %v2794 = vmul.f32 %v2208, %v2696
    %v2795 = vmul.f32 %v2213, %v2698
    %v2796 = vmul.f32 %v2218, %v2700
    %v2797 = vmul.f32 %v2223, %v2702
    %v2798 = vmul.f32 %v2228, %v2704
    %v2799 = vmul.f32 %v2233, %v2706
    %v2800 = vmul.f32 %v2238, %v2708
    %v2801 = vmul.f32 %v2243, %v2710
    %v2802 = vmul.f32 %v2248, %v2712
    %v2803 = vmul.f32 %v2253, %v2714
    %v2804 = vmul.f32 %v2258, %v2716
    %v2805 = vmul.f32 %v2263, %v2718
    %v2806 = vmul.f32 %v2268, %v2720
    %v2807 = vmul.f32 %v2273, %v2722
    %v2808 = vmul.f32 %v2278, %v2724
    %v2809 = vmul.f32 %v2283, %v2726
    %v2810 = vmul.f32 %v2288, %v2728
    %v2811 = vmul.f32 %v2293, %v2730
    %v2812 = vmul.f32 %v2298, %v2732
    %v2813 = vmul.f32 %v2303, %v2734
    %v2814 = vmul.f32 %v2308, %v2736
    %v2815 = vmul.f32 %v2313, %v2738
    %v2816 = vmul.f32 %v2318, %v2740
    %v2817 = vmul.f32 %v2323, %v2742
    %v2818 = vmul.f32 %v2328, %v2744
    %v2819 = vmul.f32 %v2333, %v2746
    %v2820 = vmul.f32 %v2338, %v2748
    %v2821 = vmul.f32 %v2343, %v2750
    %v2822 = vmul.f32 %v2348, %v2752
    %v2823 = vmul.f32 %v2353, %v2754
    %v2824 = vmul.f32 %v2358, %v2756
    %v2825 = vmul.f32 %v2363, %v2758
    %v2826 = vmul.f32 %v2368, %v2760
    %v2827 = vmul.f32 %v2373, %v2762
    %v2828 = vmul.f32 %v2378, %v2764
    %v2829 = vld [vmem:[%s8] sm:$0xff]
    %v2830 = vld [vmem:[%s8 + $0x8] sm:$0xff]
    %v2831 = vld [vmem:[%s8 + $0x10] sm:$0xff]
    %v2832 = vld [vmem:[%s8 + $0x18] sm:$0xff]
    %v2833 = vld [vmem:[%s8 + $0x20] sm:$0xff]
    %v2834 = vld [vmem:[%s8 + $0x28] sm:$0xff]
    %v2835 = vld [vmem:[%s8 + $0x30] sm:$0xff]
    %v2836 = vld [vmem:[%s8 + $0x38] sm:$0xff]
    %v2837 = vld [vmem:[%s9] sm:$0x1]
    %v2839 = vlaneseq
    %v2840 = vshrl.u32 %v2839, 7
    %v2841 = vsub.s32 0, %v2840
    %v2842 = vrot.slane %v2837, %v2841
    %v2845 = vsel %vm1150, %v2765, 0
    %v2848 = vsel %vm1150, %v2766, 0
    %v2851 = vsel %vm1150, %v2767, 0
    %v2854 = vsel %vm1150, %v2768, 0
    %v2857 = vsel %vm1150, %v2769, 0
    %v2860 = vsel %vm1150, %v2770, 0
    %v2863 = vsel %vm1150, %v2771, 0
    %v2866 = vsel %vm1150, %v2772, 0
    %v2869 = vsel %vm1150, %v2773, 0
    %v2872 = vsel %vm1150, %v2774, 0
    %v2875 = vsel %vm1150, %v2775, 0
    %v2878 = vsel %vm1150, %v2776, 0
    %v2881 = vsel %vm1150, %v2777, 0
    %v2884 = vsel %vm1150, %v2778, 0
    %v2887 = vsel %vm1150, %v2779, 0
    %v2890 = vsel %vm1150, %v2780, 0
    %v2893 = vsel %vm1150, %v2781, 0
    %v2896 = vsel %vm1150, %v2782, 0
    %v2899 = vsel %vm1150, %v2783, 0
    %v2902 = vsel %vm1150, %v2784, 0
    %v2905 = vsel %vm1150, %v2785, 0
    %v2908 = vsel %vm1150, %v2786, 0
    %v2911 = vsel %vm1150, %v2787, 0
    %v2914 = vsel %vm1150, %v2788, 0
    %v2917 = vsel %vm1150, %v2789, 0
    %v2920 = vsel %vm1150, %v2790, 0
    %v2923 = vsel %vm1150, %v2791, 0
    %v2926 = vsel %vm1150, %v2792, 0
    %v2929 = vsel %vm1150, %v2793, 0
    %v2932 = vsel %vm1150, %v2794, 0
    %v2935 = vsel %vm1150, %v2795, 0
    %v2938 = vsel %vm1150, %v2796, 0
    %v2941 = vsel %vm1150, %v2797, 0
    %v2944 = vsel %vm1150, %v2798, 0
    %v2947 = vsel %vm1150, %v2799, 0
    %v2950 = vsel %vm1150, %v2800, 0
    %v2953 = vsel %vm1150, %v2801, 0
    %v2956 = vsel %vm1150, %v2802, 0
    %v2959 = vsel %vm1150, %v2803, 0
    %v2962 = vsel %vm1150, %v2804, 0
    %v2965 = vsel %vm1150, %v2805, 0
    %v2968 = vsel %vm1150, %v2806, 0
    %v2971 = vsel %vm1150, %v2807, 0
    %v2974 = vsel %vm1150, %v2808, 0
    %v2977 = vsel %vm1150, %v2809, 0
    %v2980 = vsel %vm1150, %v2810, 0
    %v2983 = vsel %vm1150, %v2811, 0
    %v2986 = vsel %vm1150, %v2812, 0
    %v2989 = vsel %vm1150, %v2813, 0
    %v2992 = vsel %vm1150, %v2814, 0
    %v2995 = vsel %vm1150, %v2815, 0
    %v2998 = vsel %vm1150, %v2816, 0
    %v3001 = vsel %vm1150, %v2817, 0
    %v3004 = vsel %vm1150, %v2818, 0
    %v3007 = vsel %vm1150, %v2819, 0
    %v3010 = vsel %vm1150, %v2820, 0
    %v3013 = vsel %vm1150, %v2821, 0
    %v3016 = vsel %vm1150, %v2822, 0
    %v3019 = vsel %vm1150, %v2823, 0
    %v3022 = vsel %vm1150, %v2824, 0
    %v3025 = vsel %vm1150, %v2825, 0
    %v3028 = vsel %vm1150, %v2826, 0
    %v3031 = vsel %vm1150, %v2827, 0
    %v3034 = vsel %vm1150, %v2828, 0
    %3036 = vmatprep.subr.mxu0 0.0
    %3037 = vmatpush1.msra.mxu0 %v2829
    %3038 = vmatprep.subr.mxu0 0.0
    %3039 = vmatpush1.msra.mxu0 %v2830
    %3040 = vmatprep.subr.mxu0 0.0
    %3041 = vmatpush1.msra.mxu0 %v2831
    %3042 = vmatprep.subr.mxu0 0.0
    %3043 = vmatpush1.msra.mxu0 %v2832
    %3044 = vmatprep.subr.mxu0 0.0
    %3045 = vmatpush1.msra.mxu0 %v2833
    %3046 = vmatprep.subr.mxu0 0.0
    %3047 = vmatpush1.msra.mxu0 %v2834
    %3048 = vmatprep.subr.mxu0 0.0
    %3049 = vmatpush1.msra.mxu0 %v2835
    %3050 = vmatprep.subr.mxu0 0.0
    %3051 = vmatpush1.msra.mxu0 %v2836
    %3052 = vmatprep.subr.mxu0 0.0
    %3053 = vmatpush1.msra.mxu0 0.0
    %3054 = vmatprep.subr.mxu0 0.0
    %3055 = vmatpush1.msra.mxu0 0.0
    %3056 = vmatprep.subr.mxu0 0.0
    %3057 = vmatpush1.msra.mxu0 0.0
    %3058 = vmatprep.subr.mxu0 0.0
    %3059 = vmatpush1.msra.mxu0 0.0
    %3060 = vmatprep.subr.mxu0 0.0
    %3061 = vmatpush1.msra.mxu0 0.0
    %3062 = vmatprep.subr.mxu0 0.0
    %3063 = vmatpush1.msra.mxu0 0.0
    %3064 = vmatprep.subr.mxu0 0.0
    %3065 = vmatpush1.msra.mxu0 0.0
    %3066 = vmatprep.subr.mxu0 0.0
    %3067 = vmatpush1.msra.mxu0 0.0
    %3068 = vmatprep.subr.mxu0 0.0
    %3069 = vmatpush1.msra.mxu0 0.0
    %3070 = vmatprep.subr.mxu0 0.0
    %3071 = vmatpush1.msra.mxu0 0.0
    %3072 = vmatprep.subr.mxu0 0.0
    %3073 = vmatpush1.msra.mxu0 0.0
    %3074 = vmatprep.subr.mxu0 0.0
    %3075 = vmatpush1.msra.mxu0 0.0
    %3076 = vmatprep.subr.mxu0 0.0
    %3077 = vmatpush1.msra.mxu0 0.0
    %3078 = vmatprep.subr.mxu0 0.0
    %3079 = vmatpush1.msra.mxu0 0.0
    %3080 = vmatprep.subr.mxu0 0.0
    %3081 = vmatpush1.msra.mxu0 0.0
    %3082 = vmatprep.subr.mxu0 0.0
    %3083 = vmatpush1.msra.mxu0 0.0
    %3084 = vmatprep.subr.mxu0 0.0
    %3085 = vmatpush1.msra.mxu0 0.0
    %3086 = vmatprep.subr.mxu0 0.0
    %3087 = vmatpush1.msra.mxu0 0.0
    %3088 = vmatprep.subr.mxu0 0.0
    %3089 = vmatpush1.msra.mxu0 0.0
    %3090 = vmatprep.subr.mxu0 0.0
    %3091 = vmatpush1.msra.mxu0 0.0
    %3092 = vmatprep.subr.mxu0 0.0
    %3093 = vmatpush1.msra.mxu0 0.0
    %3094 = vmatprep.subr.mxu0 0.0
    %3095 = vmatpush1.msra.mxu0 0.0
    %3096 = vmatprep.subr.mxu0 0.0
    %3097 = vmatpush1.msra.mxu0 0.0
    %3098 = vmatprep.subr.mxu0 0.0
    %3099 = vmatpush1.msra.mxu0 0.0
    %3100 = vmatprep.mubr.f32.mxu0 0.0
    %3101 = vmatmul.mubr.f32.gmra.mrb[0].mxu0 %v2845
    %v3102 = vpop.f32.mrb[0].mxu0
    %v3103 = vadd.f32 %v2842, %v3102
    %v3104 = vpop.f32.mrb[0].mxu0
    %3105 = vmatprep.mubr.f32.mxu0 0.0
    %3106 = vmatmul.mubr.f32.gmra.mrb[0].mxu0 %v2848
    %v3107 = vpop.f32.mrb[0].mxu0
    %v3108 = vadd.f32 %v2842, %v3107
    %v3109 = vpop.f32.mrb[0].mxu0
    %3110 = vmatprep.mubr.f32.mxu0 0.0
    %3111 = vmatmul.mubr.f32.gmra.mrb[0].mxu0 %v2851
    %v3112 = vpop.f32.mrb[0].mxu0
    %v3113 = vadd.f32 %v2842, %v3112
    %v3114 = vpop.f32.mrb[0].mxu0
    %3115 = vmatprep.mubr.f32.mxu0 0.0
    %3116 = vmatmul.mubr.f32.gmra.mrb[0].mxu0 %v2854
    %v3117 = vpop.f32.mrb[0].mxu0
    %v3118 = vadd.f32 %v2842, %v3117
    %v3119 = vpop.f32.mrb[0].mxu0
    %3120 = vmatprep.mubr.f32.mxu0 0.0
    %3121 = vmatmul.mubr.f32.gmra.mrb[0].mxu0 %v2857
    %v3122 = vpop.f32.mrb[0].mxu0
    %v3123 = vadd.f32 %v2842, %v3122
    %v3124 = vpop.f32.mrb[0].mxu0
    %3125 = vmatprep.mubr.f32.mxu0 0.0
    %3126 = vmatmul.mubr.f32.gmra.mrb[0].mxu0 %v2860
    %v3127 = vpop.f32.mrb[0].mxu0
    %v3128 = vadd.f32 %v2842, %v3127
    %v3129 = vpop.f32.mrb[0].mxu0
    %3130 = vmatprep.mubr.f32.mxu0 0.0
    %3131 = vmatmul.mubr.f32.gmra.mrb[0].mxu0 %v2863
    %v3132 = vpop.f32.mrb[0].mxu0
    %v3133 = vadd.f32 %v2842, %v3132
    %v3134 = vpop.f32.mrb[0].mxu0
    %3135 = vmatprep.mubr.f32.mxu0 0.0
    %3136 = vmatmul.mubr.f32.gmra.mrb[0].mxu0 %v2866
    %v3137 = vpop.f32.mrb[0].mxu0
    %v3138 = vadd.f32 %v2842, %v3137
    %v3139 = vpop.f32.mrb[0].mxu0
    %3140 = vmatprep.mubr.f32.mxu0 0.0
    %3141 = vmatmul.mubr.f32.gmra.mrb[0].mxu0 %v2869
    %v3142 = vpop.f32.mrb[0].mxu0
    %v3143 = vadd.f32 %v2842, %v3142
    %v3144 = vpop.f32.mrb[0].mxu0
    %3145 = vmatprep.mubr.f32.mxu0 0.0
    %3146 = vmatmul.mubr.f32.gmra.mrb[0].mxu0 %v2872
    %v3147 = vpop.f32.mrb[0].mxu0
    %v3148 = vadd.f32 %v2842, %v3147
    %v3149 = vpop.f32.mrb[0].mxu0
    %3150 = vmatprep.mubr.f32.mxu0 0.0
    %3151 = vmatmul.mubr.f32.gmra.mrb[0].mxu0 %v2875
    %v3152 = vpop.f32.mrb[0].mxu0
    %v3153 = vadd.f32 %v2842, %v3152
    %v3154 = vpop.f32.mrb[0].mxu0
    %3155 = vmatprep.mubr.f32.mxu0 0.0
    %3156 = vmatmul.mubr.f32.gmra.mrb[0].mxu0 %v2878
    %v3157 = vpop.f32.mrb[0].mxu0
    %v3158 = vadd.f32 %v2842, %v3157
    %v3159 = vpop.f32.mrb[0].mxu0
    %3160 = vmatprep.mubr.f32.mxu0 0.0
    %3161 = vmatmul.mubr.f32.gmra.mrb[0].mxu0 %v2881
    %v3162 = vpop.f32.mrb[0].mxu0
    %v3163 = vadd.f32 %v2842, %v3162
    %v3164 = vpop.f32.mrb[0].mxu0
    %3165 = vmatprep.mubr.f32.mxu0 0.0
    %3166 = vmatmul.mubr.f32.gmra.mrb[0].mxu0 %v2884
    %v3167 = vpop.f32.mrb[0].mxu0
    %v3168 = vadd.f32 %v2842, %v3167
    %v3169 = vpop.f32.mrb[0].mxu0
    %3170 = vmatprep.mubr.f32.mxu0 0.0
    %3171 = vmatmul.mubr.f32.gmra.mrb[0].mxu0 %v2887
    %v3172 = vpop.f32.mrb[0].mxu0
    %v3173 = vadd.f32 %v2842, %v3172
    %v3174 = vpop.f32.mrb[0].mxu0
    %3175 = vmatprep.mubr.f32.mxu0 0.0
    %3176 = vmatmul.mubr.f32.gmra.mrb[0].mxu0 %v2890
    %v3177 = vpop.f32.mrb[0].mxu0
    %v3178 = vadd.f32 %v2842, %v3177
    %v3179 = vpop.f32.mrb[0].mxu0
    %3180 = vmatprep.mubr.f32.mxu0 0.0
    %3181 = vmatmul.mubr.f32.gmra.mrb[0].mxu0 %v2893
    %v3182 = vpop.f32.mrb[0].mxu0
    %v3183 = vadd.f32 %v2842, %v3182
    %v3184 = vpop.f32.mrb[0].mxu0
    %3185 = vmatprep.mubr.f32.mxu0 0.0
    %3186 = vmatmul.mubr.f32.gmra.mrb[0].mxu0 %v2896
    %v3187 = vpop.f32.mrb[0].mxu0
    %v3188 = vadd.f32 %v2842, %v3187
    %v3189 = vpop.f32.mrb[0].mxu0
    %3190 = vmatprep.mubr.f32.mxu0 0.0
    %3191 = vmatmul.mubr.f32.gmra.mrb[0].mxu0 %v2899
    %v3192 = vpop.f32.mrb[0].mxu0
    %v3193 = vadd.f32 %v2842, %v3192
    %v3194 = vpop.f32.mrb[0].mxu0
    %3195 = vmatprep.mubr.f32.mxu0 0.0
    %3196 = vmatmul.mubr.f32.gmra.mrb[0].mxu0 %v2902
    %v3197 = vpop.f32.mrb[0].mxu0
    %v3198 = vadd.f32 %v2842, %v3197
    %v3199 = vpop.f32.mrb[0].mxu0
    %3200 = vmatprep.mubr.f32.mxu0 0.0
    %3201 = vmatmul.mubr.f32.gmra.mrb[0].mxu0 %v2905
    %v3202 = vpop.f32.mrb[0].mxu0
    %v3203 = vadd.f32 %v2842, %v3202
    %v3204 = vpop.f32.mrb[0].mxu0
    %3205 = vmatprep.mubr.f32.mxu0 0.0
    %3206 = vmatmul.mubr.f32.gmra.mrb[0].mxu0 %v2908
    %v3207 = vpop.f32.mrb[0].mxu0
    %v3208 = vadd.f32 %v2842, %v3207
    %v3209 = vpop.f32.mrb[0].mxu0
    %3210 = vmatprep.mubr.f32.mxu0 0.0
    %3211 = vmatmul.mubr.f32.gmra.mrb[0].mxu0 %v2911
    %v3212 = vpop.f32.mrb[0].mxu0
    %v3213 = vadd.f32 %v2842, %v3212
    %v3214 = vpop.f32.mrb[0].mxu0
    %3215 = vmatprep.mubr.f32.mxu0 0.0
    %3216 = vmatmul.mubr.f32.gmra.mrb[0].mxu0 %v2914
    %v3217 = vpop.f32.mrb[0].mxu0
    %v3218 = vadd.f32 %v2842, %v3217
    %v3219 = vpop.f32.mrb[0].mxu0
    %3220 = vmatprep.mubr.f32.mxu0 0.0
    %3221 = vmatmul.mubr.f32.gmra.mrb[0].mxu0 %v2917
    %v3222 = vpop.f32.mrb[0].mxu0
    %v3223 = vadd.f32 %v2842, %v3222
    %v3224 = vpop.f32.mrb[0].mxu0
    %3225 = vmatprep.mubr.f32.mxu0 0.0
    %3226 = vmatmul.mubr.f32.gmra.mrb[0].mxu0 %v2920
    %v3227 = vpop.f32.mrb[0].mxu0
    %v3228 = vadd.f32 %v2842, %v3227
    %v3229 = vpop.f32.mrb[0].mxu0
    %3230 = vmatprep.mubr.f32.mxu0 0.0
    %3231 = vmatmul.mubr.f32.gmra.mrb[0].mxu0 %v2923
    %v3232 = vpop.f32.mrb[0].mxu0
    %v3233 = vadd.f32 %v2842, %v3232
    %v3234 = vpop.f32.mrb[0].mxu0
    %3235 = vmatprep.mubr.f32.mxu0 0.0
    %3236 = vmatmul.mubr.f32.gmra.mrb[0].mxu0 %v2926
    %v3237 = vpop.f32.mrb[0].mxu0
    %v3238 = vadd.f32 %v2842, %v3237
    %v3239 = vpop.f32.mrb[0].mxu0
    %3240 = vmatprep.mubr.f32.mxu0 0.0
    %3241 = vmatmul.mubr.f32.gmra.mrb[0].mxu0 %v2929
    %v3242 = vpop.f32.mrb[0].mxu0
    %v3243 = vadd.f32 %v2842, %v3242
    %v3244 = vpop.f32.mrb[0].mxu0
    %3245 = vmatprep.mubr.f32.mxu0 0.0
    %3246 = vmatmul.mubr.f32.gmra.mrb[0].mxu0 %v2932
    %v3247 = vpop.f32.mrb[0].mxu0
    %v3248 = vadd.f32 %v2842, %v3247
    %v3249 = vpop.f32.mrb[0].mxu0
    %3250 = vmatprep.mubr.f32.mxu0 0.0
    %3251 = vmatmul.mubr.f32.gmra.mrb[0].mxu0 %v2935
    %v3252 = vpop.f32.mrb[0].mxu0
    %v3253 = vadd.f32 %v2842, %v3252
    %v3254 = vpop.f32.mrb[0].mxu0
    %3255 = vmatprep.mubr.f32.mxu0 0.0
    %3256 = vmatmul.mubr.f32.gmra.mrb[0].mxu0 %v2938
    %v3257 = vpop.f32.mrb[0].mxu0
    %v3258 = vadd.f32 %v2842, %v3257
    %v3259 = vpop.f32.mrb[0].mxu0
    %3260 = vmatprep.mubr.f32.mxu0 0.0
    %3261 = vmatmul.mubr.f32.gmra.mrb[0].mxu0 %v2941
    %v3262 = vpop.f32.mrb[0].mxu0
    %v3263 = vadd.f32 %v2842, %v3262
    %v3264 = vpop.f32.mrb[0].mxu0
    %3265 = vmatprep.mubr.f32.mxu0 0.0
    %3266 = vmatmul.mubr.f32.gmra.mrb[0].mxu0 %v2944
    %v3267 = vpop.f32.mrb[0].mxu0
    %v3268 = vadd.f32 %v2842, %v3267
    %v3269 = vpop.f32.mrb[0].mxu0
    %3270 = vmatprep.mubr.f32.mxu0 0.0
    %3271 = vmatmul.mubr.f32.gmra.mrb[0].mxu0 %v2947
    %v3272 = vpop.f32.mrb[0].mxu0
    %v3273 = vadd.f32 %v2842, %v3272
    %v3274 = vpop.f32.mrb[0].mxu0
    %3275 = vmatprep.mubr.f32.mxu0 0.0
    %3276 = vmatmul.mubr.f32.gmra.mrb[0].mxu0 %v2950
    %v3277 = vpop.f32.mrb[0].mxu0
    %v3278 = vadd.f32 %v2842, %v3277
    %v3279 = vpop.f32.mrb[0].mxu0
    %3280 = vmatprep.mubr.f32.mxu0 0.0
    %3281 = vmatmul.mubr.f32.gmra.mrb[0].mxu0 %v2953
    %v3282 = vpop.f32.mrb[0].mxu0
    %v3283 = vadd.f32 %v2842, %v3282
    %v3284 = vpop.f32.mrb[0].mxu0
    %3285 = vmatprep.mubr.f32.mxu0 0.0
    %3286 = vmatmul.mubr.f32.gmra.mrb[0].mxu0 %v2956
    %v3287 = vpop.f32.mrb[0].mxu0
    %v3288 = vadd.f32 %v2842, %v3287
    %v3289 = vpop.f32.mrb[0].mxu0
    %3290 = vmatprep.mubr.f32.mxu0 0.0
    %3291 = vmatmul.mubr.f32.gmra.mrb[0].mxu0 %v2959
    %v3292 = vpop.f32.mrb[0].mxu0
    %v3293 = vadd.f32 %v2842, %v3292
    %v3294 = vpop.f32.mrb[0].mxu0
    %3295 = vmatprep.mubr.f32.mxu0 0.0
    %3296 = vmatmul.mubr.f32.gmra.mrb[0].mxu0 %v2962
    %v3297 = vpop.f32.mrb[0].mxu0
    %v3298 = vadd.f32 %v2842, %v3297
    %v3299 = vpop.f32.mrb[0].mxu0
    %3300 = vmatprep.mubr.f32.mxu0 0.0
    %3301 = vmatmul.mubr.f32.gmra.mrb[0].mxu0 %v2965
    %v3302 = vpop.f32.mrb[0].mxu0
    %v3303 = vadd.f32 %v2842, %v3302
    %v3304 = vpop.f32.mrb[0].mxu0
    %3305 = vmatprep.mubr.f32.mxu0 0.0
    %3306 = vmatmul.mubr.f32.gmra.mrb[0].mxu0 %v2968
    %v3307 = vpop.f32.mrb[0].mxu0
    %v3308 = vadd.f32 %v2842, %v3307
    %v3309 = vpop.f32.mrb[0].mxu0
    %3310 = vmatprep.mubr.f32.mxu0 0.0
    %3311 = vmatmul.mubr.f32.gmra.mrb[0].mxu0 %v2971
    %v3312 = vpop.f32.mrb[0].mxu0
    %v3313 = vadd.f32 %v2842, %v3312
    %v3314 = vpop.f32.mrb[0].mxu0
    %3315 = vmatprep.mubr.f32.mxu0 0.0
    %3316 = vmatmul.mubr.f32.gmra.mrb[0].mxu0 %v2974
    %v3317 = vpop.f32.mrb[0].mxu0
    %v3318 = vadd.f32 %v2842, %v3317
    %v3319 = vpop.f32.mrb[0].mxu0
    %3320 = vmatprep.mubr.f32.mxu0 0.0
    %3321 = vmatmul.mubr.f32.gmra.mrb[0].mxu0 %v2977
    %v3322 = vpop.f32.mrb[0].mxu0
    %v3323 = vadd.f32 %v2842, %v3322
    %v3324 = vpop.f32.mrb[0].mxu0
    %3325 = vmatprep.mubr.f32.mxu0 0.0
    %3326 = vmatmul.mubr.f32.gmra.mrb[0].mxu0 %v2980
    %v3327 = vpop.f32.mrb[0].mxu0
    %v3328 = vadd.f32 %v2842, %v3327
    %v3329 = vpop.f32.mrb[0].mxu0
    %3330 = vmatprep.mubr.f32.mxu0 0.0
    %3331 = vmatmul.mubr.f32.gmra.mrb[0].mxu0 %v2983
    %v3332 = vpop.f32.mrb[0].mxu0
    %v3333 = vadd.f32 %v2842, %v3332
    %v3334 = vpop.f32.mrb[0].mxu0
    %3335 = vmatprep.mubr.f32.mxu0 0.0
    %3336 = vmatmul.mubr.f32.gmra.mrb[0].mxu0 %v2986
    %v3337 = vpop.f32.mrb[0].mxu0
    %v3338 = vadd.f32 %v2842, %v3337
    %v3339 = vpop.f32.mrb[0].mxu0
    %3340 = vmatprep.mubr.f32.mxu0 0.0
    %3341 = vmatmul.mubr.f32.gmra.mrb[0].mxu0 %v2989
    %v3342 = vpop.f32.mrb[0].mxu0
    %v3343 = vadd.f32 %v2842, %v3342
    %v3344 = vpop.f32.mrb[0].mxu0
    %3345 = vmatprep.mubr.f32.mxu0 0.0
    %3346 = vmatmul.mubr.f32.gmra.mrb[0].mxu0 %v2992
    %v3347 = vpop.f32.mrb[0].mxu0
    %v3348 = vadd.f32 %v2842, %v3347
    %v3349 = vpop.f32.mrb[0].mxu0
    %3350 = vmatprep.mubr.f32.mxu0 0.0
    %3351 = vmatmul.mubr.f32.gmra.mrb[0].mxu0 %v2995
    %v3352 = vpop.f32.mrb[0].mxu0
    %v3353 = vadd.f32 %v2842, %v3352
    %v3354 = vpop.f32.mrb[0].mxu0
    %3355 = vmatprep.mubr.f32.mxu0 0.0
    %3356 = vmatmul.mubr.f32.gmra.mrb[0].mxu0 %v2998
    %v3357 = vpop.f32.mrb[0].mxu0
    %v3358 = vadd.f32 %v2842, %v3357
    %v3359 = vpop.f32.mrb[0].mxu0
    %3360 = vmatprep.mubr.f32.mxu0 0.0
    %3361 = vmatmul.mubr.f32.gmra.mrb[0].mxu0 %v3001
    %v3362 = vpop.f32.mrb[0].mxu0
    %v3363 = vadd.f32 %v2842, %v3362
    %v3364 = vpop.f32.mrb[0].mxu0
    %3365 = vmatprep.mubr.f32.mxu0 0.0
    %3366 = vmatmul.mubr.f32.gmra.mrb[0].mxu0 %v3004
    %v3367 = vpop.f32.mrb[0].mxu0
    %v3368 = vadd.f32 %v2842, %v3367
    %v3369 = vpop.f32.mrb[0].mxu0
    %3370 = vmatprep.mubr.f32.mxu0 0.0
    %3371 = vmatmul.mubr.f32.gmra.mrb[0].mxu0 %v3007
    %v3372 = vpop.f32.mrb[0].mxu0
    %v3373 = vadd.f32 %v2842, %v3372
    %v3374 = vpop.f32.mrb[0].mxu0
    %3375 = vmatprep.mubr.f32.mxu0 0.0
    %3376 = vmatmul.mubr.f32.gmra.mrb[0].mxu0 %v3010
    %v3377 = vpop.f32.mrb[0].mxu0
    %v3378 = vadd.f32 %v2842, %v3377
    %v3379 = vpop.f32.mrb[0].mxu0
    %3380 = vmatprep.mubr.f32.mxu0 0.0
    %3381 = vmatmul.mubr.f32.gmra.mrb[0].mxu0 %v3013
    %v3382 = vpop.f32.mrb[0].mxu0
    %v3383 = vadd.f32 %v2842, %v3382
    %v3384 = vpop.f32.mrb[0].mxu0
    %3385 = vmatprep.mubr.f32.mxu0 0.0
    %3386 = vmatmul.mubr.f32.gmra.mrb[0].mxu0 %v3016
    %v3387 = vpop.f32.mrb[0].mxu0
    %v3388 = vadd.f32 %v2842, %v3387
    %v3389 = vpop.f32.mrb[0].mxu0
    %3390 = vmatprep.mubr.f32.mxu0 0.0
    %3391 = vmatmul.mubr.f32.gmra.mrb[0].mxu0 %v3019
    %v3392 = vpop.f32.mrb[0].mxu0
    %v3393 = vadd.f32 %v2842, %v3392
    %v3394 = vpop.f32.mrb[0].mxu0
    %3395 = vmatprep.mubr.f32.mxu0 0.0
    %3396 = vmatmul.mubr.f32.gmra.mrb[0].mxu0 %v3022
    %v3397 = vpop.f32.mrb[0].mxu0
    %v3398 = vadd.f32 %v2842, %v3397
    %v3399 = vpop.f32.mrb[0].mxu0
    %3400 = vmatprep.mubr.f32.mxu0 0.0
    %3401 = vmatmul.mubr.f32.gmra.mrb[0].mxu0 %v3025
    %v3402 = vpop.f32.mrb[0].mxu0
    %v3403 = vadd.f32 %v2842, %v3402
    %v3404 = vpop.f32.mrb[0].mxu0
    %3405 = vmatprep.mubr.f32.mxu0 0.0
    %3406 = vmatmul.mubr.f32.gmra.mrb[0].mxu0 %v3028
    %v3407 = vpop.f32.mrb[0].mxu0
    %v3408 = vadd.f32 %v2842, %v3407
    %v3409 = vpop.f32.mrb[0].mxu0
    %3410 = vmatprep.mubr.f32.mxu0 0.0
    %3411 = vmatmul.mubr.f32.gmra.mrb[0].mxu0 %v3031
    %v3412 = vpop.f32.mrb[0].mxu0
    %v3413 = vadd.f32 %v2842, %v3412
    %v3414 = vpop.f32.mrb[0].mxu0
    %3415 = vmatprep.mubr.f32.mxu0 0.0
    %3416 = vmatmul.mubr.f32.gmra.mrb[0].mxu0 %v3034
    %v3417 = vpop.f32.mrb[0].mxu0
    %v3418 = vadd.f32 %v2842, %v3417
    %v3419 = vpop.f32.mrb[0].mxu0
    %3420 = vdwg.mxu0
    %v3421 = vmul.f32 %v1410, %v3103
    %v3422 = vmul.f32 %v1415, %v3108
    %v3423 = vmul.f32 %v1420, %v3113
    %v3424 = vmul.f32 %v1425, %v3118
    %v3425 = vmul.f32 %v1430, %v3123
    %v3426 = vmul.f32 %v1435, %v3128
    %v3427 = vmul.f32 %v1440, %v3133
    %v3428 = vmul.f32 %v1445, %v3138
    %v3429 = vmul.f32 %v1450, %v3143
    %v3430 = vmul.f32 %v1455, %v3148
    %v3431 = vmul.f32 %v1460, %v3153
    %v3432 = vmul.f32 %v1465, %v3158
    %v3433 = vmul.f32 %v1470, %v3163
    %v3434 = vmul.f32 %v1475, %v3168
    %v3435 = vmul.f32 %v1480, %v3173
    %v3436 = vmul.f32 %v1485, %v3178
    %v3437 = vmul.f32 %v1490, %v3183
    %v3438 = vmul.f32 %v1495, %v3188
    %v3439 = vmul.f32 %v1500, %v3193
    %v3440 = vmul.f32 %v1505, %v3198
    %v3441 = vmul.f32 %v1510, %v3203
    %v3442 = vmul.f32 %v1515, %v3208
    %v3443 = vmul.f32 %v1520, %v3213
    %v3444 = vmul.f32 %v1525, %v3218
    %v3445 = vmul.f32 %v1530, %v3223
    %v3446 = vmul.f32 %v1535, %v3228
    %v3447 = vmul.f32 %v1540, %v3233
    %v3448 = vmul.f32 %v1545, %v3238
    %v3449 = vmul.f32 %v1550, %v3243
    %v3450 = vmul.f32 %v1555, %v3248
    %v3451 = vmul.f32 %v1560, %v3253
    %v3452 = vmul.f32 %v1565, %v3258
    %v3453 = vmul.f32 %v1570, %v3263
    %v3454 = vmul.f32 %v1575, %v3268
    %v3455 = vmul.f32 %v1580, %v3273
    %v3456 = vmul.f32 %v1585, %v3278
    %v3457 = vmul.f32 %v1590, %v3283
    %v3458 = vmul.f32 %v1595, %v3288
    %v3459 = vmul.f32 %v1600, %v3293
    %v3460 = vmul.f32 %v1605, %v3298
    %v3461 = vmul.f32 %v1610, %v3303
    %v3462 = vmul.f32 %v1615, %v3308
    %v3463 = vmul.f32 %v1620, %v3313
    %v3464 = vmul.f32 %v1625, %v3318
    %v3465 = vmul.f32 %v1630, %v3323
    %v3466 = vmul.f32 %v1635, %v3328
    %v3467 = vmul.f32 %v1640, %v3333
    %v3468 = vmul.f32 %v1645, %v3338
    %v3469 = vmul.f32 %v1650, %v3343
    %v3470 = vmul.f32 %v1655, %v3348
    %v3471 = vmul.f32 %v1660, %v3353
    %v3472 = vmul.f32 %v1665, %v3358
    %v3473 = vmul.f32 %v1670, %v3363
    %v3474 = vmul.f32 %v1675, %v3368
    %v3475 = vmul.f32 %v1680, %v3373
    %v3476 = vmul.f32 %v1685, %v3378
    %v3477 = vmul.f32 %v1690, %v3383
    %v3478 = vmul.f32 %v1695, %v3388
    %v3479 = vmul.f32 %v1700, %v3393
    %v3480 = vmul.f32 %v1705, %v3398
    %v3481 = vmul.f32 %v1710, %v3403
    %v3482 = vmul.f32 %v1715, %v3408
    %v3483 = vmul.f32 %v1720, %v3413
    %v3484 = vmul.f32 %v1725, %v3418
    %3485 = vxpose.xlu0.b32.start [1/16] %v3421, 128
    %3486 = vxpose.xlu0.b32.cont [2/16] %v3422, 128
    %3487 = vxpose.xlu0.b32.cont [3/16] %v3423, 128
    %3488 = vxpose.xlu0.b32.cont [4/16] %v3424, 128
    %3489 = vxpose.xlu0.b32.cont [5/16] %v3425, 128
    %3490 = vxpose.xlu0.b32.cont [6/16] %v3426, 128
    %3491 = vxpose.xlu0.b32.cont [7/16] %v3427, 128
    %3492 = vxpose.xlu0.b32.cont [8/16] %v3428, 128
    %3493 = vxpose.xlu0.b32.cont [9/16] %v3429, 128
    %3494 = vxpose.xlu0.b32.cont [10/16] %v3430, 128
    %3495 = vxpose.xlu0.b32.cont [11/16] %v3431, 128
    %3496 = vxpose.xlu0.b32.cont [12/16] %v3432, 128
    %3497 = vxpose.xlu0.b32.cont [13/16] %v3433, 128
    %3498 = vxpose.xlu0.b32.cont [14/16] %v3434, 128
    %3499 = vxpose.xlu0.b32.cont [15/16] %v3435, 128
    %3500 = vxpose.xlu0.b32.end [16/16] %v3436, 128
    %v3501 = vpop.trf.xlu0
    %v3502 = vpop.trf.xlu0
    %v3503 = vpop.trf.xlu0
    %v3504 = vpop.trf.xlu0
    %v3505 = vpop.trf.xlu0
    %v3506 = vpop.trf.xlu0
    %v3507 = vpop.trf.xlu0
    %v3508 = vpop.trf.xlu0
    %v3509 = vpop.trf.xlu0
    %v3510 = vpop.trf.xlu0
    %v3511 = vpop.trf.xlu0
    %v3512 = vpop.trf.xlu0
    %v3513 = vpop.trf.xlu0
    %v3514 = vpop.trf.xlu0
    %v3515 = vpop.trf.xlu0
    %v3516 = vpop.trf.xlu0
    %3517 = vxpose.xlu0.b32.start [1/16] %v3437, 128
    %3518 = vxpose.xlu0.b32.cont [2/16] %v3438, 128
    %3519 = vxpose.xlu0.b32.cont [3/16] %v3439, 128
    %3520 = vxpose.xlu0.b32.cont [4/16] %v3440, 128
    %3521 = vxpose.xlu0.b32.cont [5/16] %v3441, 128
    %3522 = vxpose.xlu0.b32.cont [6/16] %v3442, 128
    %3523 = vxpose.xlu0.b32.cont [7/16] %v3443, 128
    %3524 = vxpose.xlu0.b32.cont [8/16] %v3444, 128
    %3525 = vxpose.xlu0.b32.cont [9/16] %v3445, 128
    %3526 = vxpose.xlu0.b32.cont [10/16] %v3446, 128
    %3527 = vxpose.xlu0.b32.cont [11/16] %v3447, 128
    %3528 = vxpose.xlu0.b32.cont [12/16] %v3448, 128
    %3529 = vxpose.xlu0.b32.cont [13/16] %v3449, 128
    %3530 = vxpose.xlu0.b32.cont [14/16] %v3450, 128
    %3531 = vxpose.xlu0.b32.cont [15/16] %v3451, 128
    %3532 = vxpose.xlu0.b32.end [16/16] %v3452, 128
    %v3533 = vpop.trf.xlu0
    %v3534 = vpop.trf.xlu0
    %v3535 = vpop.trf.xlu0
    %v3536 = vpop.trf.xlu0
    %v3537 = vpop.trf.xlu0
    %v3538 = vpop.trf.xlu0
    %v3539 = vpop.trf.xlu0
    %v3540 = vpop.trf.xlu0
    %v3541 = vpop.trf.xlu0
    %v3542 = vpop.trf.xlu0
    %v3543 = vpop.trf.xlu0
    %v3544 = vpop.trf.xlu0
    %v3545 = vpop.trf.xlu0
    %v3546 = vpop.trf.xlu0
    %v3547 = vpop.trf.xlu0
    %v3548 = vpop.trf.xlu0
    %3549 = vxpose.xlu0.b32.start [1/16] %v3453, 128
    %3550 = vxpose.xlu0.b32.cont [2/16] %v3454, 128
    %3551 = vxpose.xlu0.b32.cont [3/16] %v3455, 128
    %3552 = vxpose.xlu0.b32.cont [4/16] %v3456, 128
    %3553 = vxpose.xlu0.b32.cont [5/16] %v3457, 128
    %3554 = vxpose.xlu0.b32.cont [6/16] %v3458, 128
    %3555 = vxpose.xlu0.b32.cont [7/16] %v3459, 128
    %3556 = vxpose.xlu0.b32.cont [8/16] %v3460, 128
    %3557 = vxpose.xlu0.b32.cont [9/16] %v3461, 128
    %3558 = vxpose.xlu0.b32.cont [10/16] %v3462, 128
    %3559 = vxpose.xlu0.b32.cont [11/16] %v3463, 128
    %3560 = vxpose.xlu0.b32.cont [12/16] %v3464, 128
    %3561 = vxpose.xlu0.b32.cont [13/16] %v3465, 128
    %3562 = vxpose.xlu0.b32.cont [14/16] %v3466, 128
    %3563 = vxpose.xlu0.b32.cont [15/16] %v3467, 128
    %3564 = vxpose.xlu0.b32.end [16/16] %v3468, 128
    %v3565 = vpop.trf.xlu0
    %v3566 = vpop.trf.xlu0
    %v3567 = vpop.trf.xlu0
    %v3568 = vpop.trf.xlu0
    %v3569 = vpop.trf.xlu0
    %v3570 = vpop.trf.xlu0
    %v3571 = vpop.trf.xlu0
    %v3572 = vpop.trf.xlu0
    %v3573 = vpop.trf.xlu0
    %v3574 = vpop.trf.xlu0
    %v3575 = vpop.trf.xlu0
    %v3576 = vpop.trf.xlu0
    %v3577 = vpop.trf.xlu0
    %v3578 = vpop.trf.xlu0
    %v3579 = vpop.trf.xlu0
    %v3580 = vpop.trf.xlu0
    %3581 = vxpose.xlu0.b32.start [1/16] %v3469, 128
    %3582 = vxpose.xlu0.b32.cont [2/16] %v3470, 128
    %3583 = vxpose.xlu0.b32.cont [3/16] %v3471, 128
    %3584 = vxpose.xlu0.b32.cont [4/16] %v3472, 128
    %3585 = vxpose.xlu0.b32.cont [5/16] %v3473, 128
    %3586 = vxpose.xlu0.b32.cont [6/16] %v3474, 128
    %3587 = vxpose.xlu0.b32.cont [7/16] %v3475, 128
    %3588 = vxpose.xlu0.b32.cont [8/16] %v3476, 128
    %3589 = vxpose.xlu0.b32.cont [9/16] %v3477, 128
    %3590 = vxpose.xlu0.b32.cont [10/16] %v3478, 128
    %3591 = vxpose.xlu0.b32.cont [11/16] %v3479, 128
    %3592 = vxpose.xlu0.b32.cont [12/16] %v3480, 128
    %3593 = vxpose.xlu0.b32.cont [13/16] %v3481, 128
    %3594 = vxpose.xlu0.b32.cont [14/16] %v3482, 128
    %3595 = vxpose.xlu0.b32.cont [15/16] %v3483, 128
    %3596 = vxpose.xlu0.b32.end [16/16] %v3484, 128
    %v3597 = vpop.trf.xlu0
    %v3598 = vpop.trf.xlu0
    %v3599 = vpop.trf.xlu0
    %v3600 = vpop.trf.xlu0
    %v3601 = vpop.trf.xlu0
    %v3602 = vpop.trf.xlu0
    %v3603 = vpop.trf.xlu0
    %v3604 = vpop.trf.xlu0
    %v3605 = vpop.trf.xlu0
    %v3606 = vpop.trf.xlu0
    %v3607 = vpop.trf.xlu0
    %v3608 = vpop.trf.xlu0
    %v3609 = vpop.trf.xlu0
    %v3610 = vpop.trf.xlu0
    %v3611 = vpop.trf.xlu0
    %v3612 = vpop.trf.xlu0
    %v3613 = vadd.f32 %v3501, %v3502
    %v3614 = vrot.slane %v3613, 4
    %v3615 = vadd.f32 %v3613, %v3614
    %v3616 = vrot.slane %v3615, 2
    %v3617 = vadd.f32 %v3615, %v3616
    %v3618 = vrot.slane %v3617, 1
    %v3619 = vadd.f32 %v3617, %v3618
    %v3620 = vadd.f32 %v3533, %v3534
    %v3621 = vrot.slane %v3620, 4
    %v3622 = vadd.f32 %v3620, %v3621
    %v3623 = vrot.slane %v3622, 2
    %v3624 = vadd.f32 %v3622, %v3623
    %v3625 = vrot.slane %v3624, 1
    %v3626 = vadd.f32 %v3624, %v3625
    %v3627 = vadd.f32 %v3565, %v3566
    %v3628 = vrot.slane %v3627, 4
    %v3629 = vadd.f32 %v3627, %v3628
    %v3630 = vrot.slane %v3629, 2
    %v3631 = vadd.f32 %v3629, %v3630
    %v3632 = vrot.slane %v3631, 1
    %v3633 = vadd.f32 %v3631, %v3632
    %v3634 = vadd.f32 %v3597, %v3598
    %v3635 = vrot.slane %v3634, 4
    %v3636 = vadd.f32 %v3634, %v3635
    %v3637 = vrot.slane %v3636, 2
    %v3638 = vadd.f32 %v3636, %v3637
    %v3639 = vrot.slane %v3638, 1
    %v3640 = vadd.f32 %v3638, %v3639
    %v3641 = vxor.u32 %v3619, 2147483648
    %v3642 = vxor.u32 %v3626, 2147483648
    %v3643 = vxor.u32 %v3633, 2147483648
    %v3644 = vxor.u32 %v3640, 2147483648
    %v3645 = vmul.f32 %v3641, 1.442695
    %v3646 = vpow.pop %v3645
    %v3647 = vmul.f32 %v3642, 1.442695
    %v3648 = vpow.pop %v3647
    %v3649 = vmul.f32 %v3643, 1.442695
    %v3650 = vpow.pop %v3649
    %v3651 = vmul.f32 %v3644, 1.442695
    %v3652 = vpow.pop %v3651
    %v3653 = vadd.f32 %v3646, 1.0
    %v3654 = vadd.f32 %v3648, 1.0
    %v3655 = vadd.f32 %v3650, 1.0
    %v3656 = vadd.f32 %v3652, 1.0
    %v3657 = vrcp.pop %v3653
    %v3658 = vmul.f32 1.0, %v3657
    %v3659 = vrcp.pop %v3654
    %v3660 = vmul.f32 1.0, %v3659
    %v3661 = vrcp.pop %v3655
    %v3662 = vmul.f32 1.0, %v3661
    %v3663 = vrcp.pop %v3656
    %v3664 = vmul.f32 1.0, %v3663
    %v3669 = vcombine.low %v3658, %v3660
    %v3670 = vcombine.low %v3662, %v3664
    %v3672 = vunpack.c.l.s4 1966171168
    %v3673 = vunpack.c.0.s8 %v3672
    %v3674 = vlaneseq
    %v3675 = vshrl.u32 %v3674, 7
    %v3676 = vsub.s32 %v3673, %v3675
    %v3677 = vrot.slane %v3669, %v3676
    %v3679 = vunpack.c.l.s4 1966171168
    %v3680 = vunpack.c.0.s8 %v3679
    %v3681 = vlaneseq
    %v3682 = vshrl.u32 %v3681, 7
    %v3683 = vsub.s32 %v3680, %v3682
    %v3684 = vrot.slane %v3670, %v3683
    %v3685 = vcombine.low %v3677, %v3684
    %v3687 = vunpack.c.l.s4 1966171168
    %v3688 = vunpack.c.0.s8 %v3687
    %v3689 = vlaneseq
    %v3690 = vshrl.u32 %v3689, 7
    %v3691 = vsub.s32 %v3688, %v3690
    %v3692 = vrot.slane %v3685, %v3691
    %v3694 = vlaneseq
    %vm3695 = vcmp.ge.s32.totalorder %v3694, 0
    %vm3696 = vcmp.lt.s32.totalorder %v3694, 512
    %vm3697 = vmand %vm3695, %vm3696
    %3698 = vst.msk [vmem:[#allocation2] sm:$0xf] %vm3697, %v3692
    // Predicated region
    $region42: #{tpu_custom_call.1} parent=1 // pred_check
      _
    $region43: #{tpu_custom_call.1} parent=1 // pred_check_branch
      %3700 = sbr.rel (0) target = $region45
    $region44: #{tpu_custom_call.1} parent=1 // pred_region
      %s3702 = ssub.s32 64, 64
      %3703 = vsyncadd [#allocation3], %s3702
      %s3705 = sshll.u32 [#allocation2], 4
      %s3706 = int_to_ptr.vmem [resolvable:$true] %s3705
      %3708 = dma.vmem_to_hbm [thread:$0]  %s3706, 64, %s10, [#allocation3]
    $region45: #{tpu_custom_call.1} parent=1 // pred_fallthru
      _
    // Predicated region
    $region46: #{tpu_custom_call.1} parent=1 // pred_check
      _
    $region47: #{tpu_custom_call.1} parent=1 // pred_check_branch
      %3710 = sbr.rel (0) target = $region49
    $region48: #{tpu_custom_call.1} parent=1 // pred_region
      %3711 = dma.done [#allocation3], 64
    $region49: #{tpu_custom_call.1} parent=1 // pred_fallthru
      _
    %3712 = vsyncpa [#allocation3], 1

</llo_original>
